<compile_context>
chip_gen: v7x
topology: tpu7x:2x2x1
jax: 0.10.0
libtpu: 0.0.40
codegen_flags: <defaults>
</compile_context>

<pallas_src>
import functools
import math

import jax
import jax.numpy as jnp
from jax import lax
from jax.experimental import pallas as pl
from jax.experimental.pallas import tpu as pltpu

NEG_SLOPE = 0.1  # nn.LeakyReLU(negative_slope=0.1)

# Tap offsets (dy, dx), row-major — must match the weight packing below.
OFF_UP = [(dy, dx) for dy in (-2, -1, 0, 1) for dx in (-2, -1, 0, 1)]  # deconv
OFF_3 = [(dy, dx) for dy in (-1, 0, 1) for dx in (-1, 0, 1)]           # 3x3


def _leaky_relu(v):
    return jnp.where(v >= 0, v, NEG_SLOPE * v)


# ---------------------------------------------------------------------------
# Fused Pallas kernel: deconv + conv1 + (conv2 on [x1 | skip]) per batch image
# ---------------------------------------------------------------------------
def _up2d_fused_kernel(xu_ref, skip_ref, mup_ref, m3_ref,
                       wup_ref, bup_ref, wc1_ref, bc1_ref, wc2_ref, bc2_ref,
                       out_ref, *, Wo):
    mup = mup_ref[...]        # [16, P] f32 boundary masks for the 4x4 taps
    m3 = m3_ref[...]          # [ 9, P] f32 boundary masks for the 3x3 taps

    def tap_slab(feat, offsets, mask):
        # feat: [C, P].  Returns [len(offsets)*C, P]; for tap t = (dy, dx) the
        # rows t*C:(t+1)*C hold feat at spatial offset (+dy, +dx), zeroed
        # outside the image (== zero padding / zero sub-pixel positions).
        cols = []
        for t, (dy, dx) in enumerate(offsets):
            s = dy * Wo + dx
            shifted = feat if s == 0 else jnp.roll(feat, -s, axis=1)
            cols.append(shifted * mask[t:t + 1])
        return jnp.concatenate(cols, axis=0)

    # Stage 1: ConvTranspose2d(Cin, Cin, 4, stride=2, padding=1) + LeakyReLU,
    # computed as a 16-tap stride-1 conv over the zero-interleaved input:
    #   out[Y,X] = sum_{dy,dx in [-2,1]} xu[Y+dy, X+dx] * Wt[:, :, 1-dy, 1-dx]
    xu = xu_ref[0]                                               # [Cin, P]
    x0 = jnp.dot(wup_ref[...], tap_slab(xu, OFF_UP, mup),
                 preferred_element_type=jnp.float32) + bup_ref[...]
    x0 = _leaky_relu(x0)                                         # [Cin, P]

    # Stage 2: Conv2d(Cin, Cout, 3, padding=1) + LeakyReLU
    x1 = jnp.dot(wc1_ref[...], tap_slab(x0, OFF_3, m3),
                 preferred_element_type=jnp.float32) + bc1_ref[...]
    x1 = _leaky_relu(x1)                                         # [Cout, P]

    # Stage 3: Conv2d(2*Cout, Cout, 3, padding=1) on cat((x1, skip)) + LeakyReLU.
    # The concat never materializes in HBM: the weight is split and the two tap
    # slabs are stacked in VMEM, then contracted in a single matmul.
    slab = jnp.concatenate(
        [tap_slab(x1, OFF_3, m3), tap_slab(skip_ref[0], OFF_3, m3)], axis=0)
    x2 = jnp.dot(wc2_ref[...], slab,
                 preferred_element_type=jnp.float32) + bc2_ref[...]
    out_ref[0] = _leaky_relu(x2).astype(out_ref.dtype)


# ---------------------------------------------------------------------------
# Wrapper (NCHW in / NCHW out, like PyTorch)
# ---------------------------------------------------------------------------
def up2d_forward(params, x_nchw, skip_nchw):
    B, Cin, H, W = x_nchw.shape
    Cout = skip_nchw.shape[1]
    Ho, Wo = 2 * H, 2 * W
    P = Ho * Wo  # flat spatial axis (lanes); 1024 at H=W=16

    # Sub-pixel zero-interleave of the low-res input at output resolution
    # (cheap strided store on the small HxW tensor; replaces dilate+pad glue).
    xu = jnp.zeros((B, Cin, Ho, Wo), x_nchw.dtype)
    xu = xu.at[:, :, ::2, ::2].set(x_nchw).reshape(B, Cin, P)
    skip_flat = skip_nchw.reshape(B, Cout, P)          # metadata-only reshape

    # Precompute per-tap boundary masks once (resident in VMEM for the call).
    pos = jnp.arange(P, dtype=jnp.int32)
    yy, xx = pos // Wo, pos % Wo

    def build_masks(offsets):
        rows = [((yy + dy >= 0) & (yy + dy < Ho) &
                 (xx + dx >= 0) & (xx + dx < Wo)) for dy, dx in offsets]
        return jnp.stack(rows).astype(jnp.float32)     # [KT, P]

    mask_up = build_masks(OFF_UP)                      # [16, P]
    mask_3 = build_masks(OFF_3)                        # [ 9, P]

    kernel = functools.partial(_up2d_fused_kernel, Wo=Wo)
    out = pl.pallas_call(
        kernel,
        out_shape=jax.ShapeDtypeStruct((B, Cout, P), jnp.float32),
        grid_spec=pltpu.PrefetchScalarGridSpec(
            num_scalar_prefetch=0,
            grid=(B,),
            in_specs=[
                pl.BlockSpec((1, Cin, P), lambda b: (b, 0, 0)),    # xu
                pl.BlockSpec((1, Cout, P), lambda b: (b, 0, 0)),   # skip
                pl.BlockSpec(mask_up.shape, lambda b: (0, 0)),     # masks 4x4
                pl.BlockSpec(mask_3.shape, lambda b: (0, 0)),      # masks 3x3
                pl.BlockSpec(params["w_up"].shape, lambda b: (0, 0)),
                pl.BlockSpec(params["b_up"].shape, lambda b: (0, 0)),
                pl.BlockSpec(params["w_c1"].shape, lambda b: (0, 0)),
                pl.BlockSpec(params["b_c1"].shape, lambda b: (0, 0)),
                pl.BlockSpec(params["w_c2"].shape, lambda b: (0, 0)),
                pl.BlockSpec(params["b_c2"].shape, lambda b: (0, 0)),
            ],
            out_specs=pl.BlockSpec((1, Cout, P), lambda b: (b, 0, 0)),
        ),
        compiler_params=pltpu.CompilerParams(
            dimension_semantics=("parallel",)),
    )(xu, skip_flat, mask_up, mask_3,
      params["w_up"], params["b_up"], params["w_c1"], params["b_c1"],
      params["w_c2"], params["b_c2"])
    return out.reshape(B, Cout, Ho, Wo)


# ---------------------------------------------------------------------------
# Parameters: PyTorch layouts (raw) and kernel-packed 2D layouts
# ---------------------------------------------------------------------------
def init_raw_params(key, cin, cout):
    """PyTorch-layout weights: deconv [I,O,4,4], convs [O,I,3,3], biases [O]."""
    ks = jax.random.split(key, 6)

    def u(k, shape, fan_in):
        bound = 1.0 / math.sqrt(fan_in)
        return jax.random.uniform(k, shape, jnp.float32, -bound, bound)

    return {
        "wt_up": u(ks[0], (cin, cin, 4, 4), cin * 16),
        "b_up": u(ks[1], (cin,), cin * 16),
        "w_c1": u(ks[2], (cout, cin, 3, 3), cin * 9),
        "b_c1": u(ks[3], (cout,), cin * 9),
        "w_c2": u(ks[4], (cout, 2 * cout, 3, 3), 2 * cout * 9),
        "b_c2": u(ks[5], (cout,), 2 * cout * 9),
    }


def _conv_w2d(w_oihw):
    # [O, I, kh, kw] -> [O, kh*kw*I]  (tap-major, channel-minor columns,
    # matching the tap_slab row order inside the kernel).
    o, i, kh, kw = w_oihw.shape
    return jnp.transpose(w_oihw, (0, 2, 3, 1)).reshape(o, kh * kw * i)


def pack_params(raw, cin, cout):
    # Deconv weight [I, O, 4, 4]: out[Y,X] = sum xu[Y+dy,X+dx] * Wt[:,:,1-dy,1-dx]
    # with (dy,dx) in {-2..1}^2 enumerated row-major -> flip spatially, then
    # arrange [O, (a*4+b)*Cin + ci].
    wf = raw["wt_up"][:, :, ::-1, ::-1]                          # [I, O, 4, 4]
    w_up = jnp.transpose(wf, (1, 2, 3, 0)).reshape(cin, 16 * cin)
    w_c1 = _conv_w2d(raw["w_c1"])
    w_c2 = jnp.concatenate(
        [_conv_w2d(raw["w_c2"][:, :cout]),       # x1 half of the channel-concat
         _conv_w2d(raw["w_c2"][:, cout:])],      # skip half
        axis=1)
    return {
        "w_up": w_up, "b_up": raw["b_up"].reshape(cin, 1),
        "w_c1": w_c1, "b_c1": raw["b_c1"].reshape(cout, 1),
        "w_c2": w_c2, "b_c2": raw["b_c2"].reshape(cout, 1),
    }


# ---------------------------------------------------------------------------
# Independent pure-XLA reference (true transposed conv via lhs_dilation)
# ---------------------------------------------------------------------------
def up2d_reference(raw, x, skip):
    hp = lax.Precision.HIGHEST
    w_up_oihw = jnp.transpose(raw["wt_up"], (1, 0, 2, 3))[:, :, ::-1, ::-1]
    x0 = lax.conv_general_dilated(
        x, w_up_oihw, window_strides=(1, 1), padding=[(2, 2), (2, 2)],
        lhs_dilation=(2, 2), dimension_numbers=("NCHW", "OIHW", "NCHW"),
        precision=hp)
    x0 = _leaky_relu(x0 + raw["b_up"][None, :, None, None])
    x1 = lax.conv_general_dilated(
        x0, raw["w_c1"], window_strides=(1, 1), padding=[(1, 1), (1, 1)],
        dimension_numbers=("NCHW", "OIHW", "NCHW"), precision=hp)
    x1 = _leaky_relu(x1 + raw["b_c1"][None, :, None, None])
    xc = jnp.concatenate([x1, skip], axis=1)
    x2 = lax.conv_general_dilated(
        xc, raw["w_c2"], window_strides=(1, 1), padding=[(1, 1), (1, 1)],
        dimension_numbers=("NCHW", "OIHW", "NCHW"), precision=hp)
    return _leaky_relu(x2 + raw["b_c2"][None, :, None, None])


if __name__ == "__main__":
    key = jax.random.PRNGKey(0)
    k_p, k_x, k_s = jax.random.split(key, 3)

    B, Cin, Cout, H, W = 2, 4, 4, 16, 16
    x = jax.random.normal(k_x, (B, Cin, H, W), jnp.float32)              # NCHW
    skip = jax.random.normal(k_s, (B, Cout, 2 * H, 2 * W), jnp.float32)  # NCHW

    raw = init_raw_params(k_p, Cin, Cout)
    params = pack_params(raw, Cin, Cout)

    fwd = jax.jit(up2d_forward)
    out = jax.block_until_ready(fwd(params, x, skip))

    ref = up2d_reference(raw, x, skip)
    assert out.shape == (B, Cout, 2 * H, 2 * W), out.shape
    max_err = float(jnp.max(jnp.abs(out - ref)))
    assert jnp.allclose(out, ref, atol=1e-2, rtol=1e-2), f"mismatch: {max_err}"

    print("KERNEL_OK")
</pallas_src>

<mosaic_0001>
module attributes {stable_mosaic.version = 11 : i64} {
  func.func @_up2d_fused_kernel(%arg0: i32, %arg1: memref<1x4x1024xf32, #tpu.memory_space<vmem>>, %arg2: memref<1x4x1024xf32, #tpu.memory_space<vmem>>, %arg3: memref<16x1024xf32, #tpu.memory_space<vmem>>, %arg4: memref<9x1024xf32, #tpu.memory_space<vmem>>, %arg5: memref<4x64xf32, #tpu.memory_space<vmem>>, %arg6: memref<4x1xf32, #tpu.memory_space<vmem>>, %arg7: memref<4x36xf32, #tpu.memory_space<vmem>>, %arg8: memref<4x1xf32, #tpu.memory_space<vmem>>, %arg9: memref<4x72xf32, #tpu.memory_space<vmem>>, %arg10: memref<4x1xf32, #tpu.memory_space<vmem>>, %arg11: memref<1x4x1024xf32, #tpu.memory_space<vmem>>) attributes {dimension_semantics = [#tpu.dimension_semantics<parallel>], iteration_bounds = array<i64: 2>, scalar_prefetch = 0 : i64, scratch_operands = 0 : i64, tpu.core_type = #tpu.core_type<tc>, window_params = [{transform_indices = @transform_0, window_bounds = array<i64: 1, 4, 1024>}, {transform_indices = @transform_1, window_bounds = array<i64: 1, 4, 1024>}, {pipeline_mode = #tpu.pipeline_mode<synchronous>, transform_indices = @transform_2, window_bounds = array<i64: 16, 1024>}, {pipeline_mode = #tpu.pipeline_mode<synchronous>, transform_indices = @transform_3, window_bounds = array<i64: 9, 1024>}, {pipeline_mode = #tpu.pipeline_mode<synchronous>, transform_indices = @transform_4, window_bounds = array<i64: 4, 64>}, {pipeline_mode = #tpu.pipeline_mode<synchronous>, transform_indices = @transform_5, window_bounds = array<i64: 4, 1>}, {pipeline_mode = #tpu.pipeline_mode<synchronous>, transform_indices = @transform_6, window_bounds = array<i64: 4, 36>}, {pipeline_mode = #tpu.pipeline_mode<synchronous>, transform_indices = @transform_7, window_bounds = array<i64: 4, 1>}, {pipeline_mode = #tpu.pipeline_mode<synchronous>, transform_indices = @transform_8, window_bounds = array<i64: 4, 72>}, {pipeline_mode = #tpu.pipeline_mode<synchronous>, transform_indices = @transform_9, window_bounds = array<i64: 4, 1>}, {transform_indices = @transform_10, window_bounds = array<i64: 1, 4, 1024>}]} {
    %c0 = arith.constant 0 : index
    %c0_0 = arith.constant 0 : index
    %0 = vector.load %arg3[%c0, %c0_0] : memref<16x1024xf32, #tpu.memory_space<vmem>>, vector<16x1024xf32>
    %c0_1 = arith.constant 0 : index
    %c0_2 = arith.constant 0 : index
    %1 = vector.load %arg4[%c0_1, %c0_2] : memref<9x1024xf32, #tpu.memory_space<vmem>>, vector<9x1024xf32>
    %c0_3 = arith.constant 0 : index
    %c0_4 = arith.constant 0 : index
    %c0_5 = arith.constant 0 : index
    %2 = vector.load %arg1[%c0_3, %c0_4, %c0_5] : memref<1x4x1024xf32, #tpu.memory_space<vmem>>, vector<1x4x1024xf32>
    %3 = vector.shape_cast %2 : vector<1x4x1024xf32> to vector<4x1024xf32>
    %c0_6 = arith.constant 0 : index
    %c0_7 = arith.constant 0 : index
    %4 = vector.load %arg5[%c0_6, %c0_7] : memref<4x64xf32, #tpu.memory_space<vmem>>, vector<4x64xf32>
    %5 = vector.extract_strided_slice %3 {offsets = [0, 958], sizes = [4, 66], strides = [1, 1]} : vector<4x1024xf32> to vector<4x66xf32>
    %6 = vector.extract_strided_slice %3 {offsets = [0, 0], sizes = [4, 958], strides = [1, 1]} : vector<4x1024xf32> to vector<4x958xf32>
    %7 = tpu.concatenate %5, %6 in 1 : vector<4x66xf32>, vector<4x958xf32> -> vector<4x1024xf32>
    %8 = vector.extract_strided_slice %0 {offsets = [0, 0], sizes = [1, 1024], strides = [1, 1]} : vector<16x1024xf32> to vector<1x1024xf32>
    %9 = vector.broadcast %8 : vector<1x1024xf32> to vector<4x1024xf32>
    %10 = arith.mulf %7, %9 : vector<4x1024xf32>
    %11 = vector.extract_strided_slice %3 {offsets = [0, 959], sizes = [4, 65], strides = [1, 1]} : vector<4x1024xf32> to vector<4x65xf32>
    %12 = vector.extract_strided_slice %3 {offsets = [0, 0], sizes = [4, 959], strides = [1, 1]} : vector<4x1024xf32> to vector<4x959xf32>
    %13 = tpu.concatenate %11, %12 in 1 : vector<4x65xf32>, vector<4x959xf32> -> vector<4x1024xf32>
    %14 = vector.extract_strided_slice %0 {offsets = [1, 0], sizes = [1, 1024], strides = [1, 1]} : vector<16x1024xf32> to vector<1x1024xf32>
    %15 = vector.broadcast %14 : vector<1x1024xf32> to vector<4x1024xf32>
    %16 = arith.mulf %13, %15 : vector<4x1024xf32>
    %17 = vector.extract_strided_slice %3 {offsets = [0, 960], sizes = [4, 64], strides = [1, 1]} : vector<4x1024xf32> to vector<4x64xf32>
    %18 = vector.extract_strided_slice %3 {offsets = [0, 0], sizes = [4, 960], strides = [1, 1]} : vector<4x1024xf32> to vector<4x960xf32>
    %19 = tpu.concatenate %17, %18 in 1 : vector<4x64xf32>, vector<4x960xf32> -> vector<4x1024xf32>
    %20 = vector.extract_strided_slice %0 {offsets = [2, 0], sizes = [1, 1024], strides = [1, 1]} : vector<16x1024xf32> to vector<1x1024xf32>
    %21 = vector.broadcast %20 : vector<1x1024xf32> to vector<4x1024xf32>
    %22 = arith.mulf %19, %21 : vector<4x1024xf32>
    %23 = vector.extract_strided_slice %3 {offsets = [0, 961], sizes = [4, 63], strides = [1, 1]} : vector<4x1024xf32> to vector<4x63xf32>
    %24 = vector.extract_strided_slice %3 {offsets = [0, 0], sizes = [4, 961], strides = [1, 1]} : vector<4x1024xf32> to vector<4x961xf32>
    %25 = tpu.concatenate %23, %24 in 1 : vector<4x63xf32>, vector<4x961xf32> -> vector<4x1024xf32>
    %26 = vector.extract_strided_slice %0 {offsets = [3, 0], sizes = [1, 1024], strides = [1, 1]} : vector<16x1024xf32> to vector<1x1024xf32>
    %27 = vector.broadcast %26 : vector<1x1024xf32> to vector<4x1024xf32>
    %28 = arith.mulf %25, %27 : vector<4x1024xf32>
    %29 = vector.extract_strided_slice %3 {offsets = [0, 990], sizes = [4, 34], strides = [1, 1]} : vector<4x1024xf32> to vector<4x34xf32>
    %30 = vector.extract_strided_slice %3 {offsets = [0, 0], sizes = [4, 990], strides = [1, 1]} : vector<4x1024xf32> to vector<4x990xf32>
    %31 = tpu.concatenate %29, %30 in 1 : vector<4x34xf32>, vector<4x990xf32> -> vector<4x1024xf32>
    %32 = vector.extract_strided_slice %0 {offsets = [4, 0], sizes = [1, 1024], strides = [1, 1]} : vector<16x1024xf32> to vector<1x1024xf32>
    %33 = vector.broadcast %32 : vector<1x1024xf32> to vector<4x1024xf32>
    %34 = arith.mulf %31, %33 : vector<4x1024xf32>
    %35 = vector.extract_strided_slice %3 {offsets = [0, 991], sizes = [4, 33], strides = [1, 1]} : vector<4x1024xf32> to vector<4x33xf32>
    %36 = vector.extract_strided_slice %3 {offsets = [0, 0], sizes = [4, 991], strides = [1, 1]} : vector<4x1024xf32> to vector<4x991xf32>
    %37 = tpu.concatenate %35, %36 in 1 : vector<4x33xf32>, vector<4x991xf32> -> vector<4x1024xf32>
    %38 = vector.extract_strided_slice %0 {offsets = [5, 0], sizes = [1, 1024], strides = [1, 1]} : vector<16x1024xf32> to vector<1x1024xf32>
    %39 = vector.broadcast %38 : vector<1x1024xf32> to vector<4x1024xf32>
    %40 = arith.mulf %37, %39 : vector<4x1024xf32>
    %41 = vector.extract_strided_slice %3 {offsets = [0, 992], sizes = [4, 32], strides = [1, 1]} : vector<4x1024xf32> to vector<4x32xf32>
    %42 = vector.extract_strided_slice %3 {offsets = [0, 0], sizes = [4, 992], strides = [1, 1]} : vector<4x1024xf32> to vector<4x992xf32>
    %43 = tpu.concatenate %41, %42 in 1 : vector<4x32xf32>, vector<4x992xf32> -> vector<4x1024xf32>
    %44 = vector.extract_strided_slice %0 {offsets = [6, 0], sizes = [1, 1024], strides = [1, 1]} : vector<16x1024xf32> to vector<1x1024xf32>
    %45 = vector.broadcast %44 : vector<1x1024xf32> to vector<4x1024xf32>
    %46 = arith.mulf %43, %45 : vector<4x1024xf32>
    %47 = vector.extract_strided_slice %3 {offsets = [0, 993], sizes = [4, 31], strides = [1, 1]} : vector<4x1024xf32> to vector<4x31xf32>
    %48 = vector.extract_strided_slice %3 {offsets = [0, 0], sizes = [4, 993], strides = [1, 1]} : vector<4x1024xf32> to vector<4x993xf32>
    %49 = tpu.concatenate %47, %48 in 1 : vector<4x31xf32>, vector<4x993xf32> -> vector<4x1024xf32>
    %50 = vector.extract_strided_slice %0 {offsets = [7, 0], sizes = [1, 1024], strides = [1, 1]} : vector<16x1024xf32> to vector<1x1024xf32>
    %51 = vector.broadcast %50 : vector<1x1024xf32> to vector<4x1024xf32>
    %52 = arith.mulf %49, %51 : vector<4x1024xf32>
    %53 = vector.extract_strided_slice %3 {offsets = [0, 1022], sizes = [4, 2], strides = [1, 1]} : vector<4x1024xf32> to vector<4x2xf32>
    %54 = vector.extract_strided_slice %3 {offsets = [0, 0], sizes = [4, 1022], strides = [1, 1]} : vector<4x1024xf32> to vector<4x1022xf32>
    %55 = tpu.concatenate %53, %54 in 1 : vector<4x2xf32>, vector<4x1022xf32> -> vector<4x1024xf32>
    %56 = vector.extract_strided_slice %0 {offsets = [8, 0], sizes = [1, 1024], strides = [1, 1]} : vector<16x1024xf32> to vector<1x1024xf32>
    %57 = vector.broadcast %56 : vector<1x1024xf32> to vector<4x1024xf32>
    %58 = arith.mulf %55, %57 : vector<4x1024xf32>
    %59 = vector.extract_strided_slice %3 {offsets = [0, 1023], sizes = [4, 1], strides = [1, 1]} : vector<4x1024xf32> to vector<4x1xf32>
    %60 = vector.extract_strided_slice %3 {offsets = [0, 0], sizes = [4, 1023], strides = [1, 1]} : vector<4x1024xf32> to vector<4x1023xf32>
    %61 = tpu.concatenate %59, %60 in 1 : vector<4x1xf32>, vector<4x1023xf32> -> vector<4x1024xf32>
    %62 = vector.extract_strided_slice %0 {offsets = [9, 0], sizes = [1, 1024], strides = [1, 1]} : vector<16x1024xf32> to vector<1x1024xf32>
    %63 = vector.broadcast %62 : vector<1x1024xf32> to vector<4x1024xf32>
    %64 = arith.mulf %61, %63 : vector<4x1024xf32>
    %65 = vector.extract_strided_slice %0 {offsets = [10, 0], sizes = [1, 1024], strides = [1, 1]} : vector<16x1024xf32> to vector<1x1024xf32>
    %66 = vector.broadcast %65 : vector<1x1024xf32> to vector<4x1024xf32>
    %67 = arith.mulf %3, %66 : vector<4x1024xf32>
    %68 = vector.extract_strided_slice %3 {offsets = [0, 1], sizes = [4, 1023], strides = [1, 1]} : vector<4x1024xf32> to vector<4x1023xf32>
    %69 = vector.extract_strided_slice %3 {offsets = [0, 0], sizes = [4, 1], strides = [1, 1]} : vector<4x1024xf32> to vector<4x1xf32>
    %70 = tpu.concatenate %68, %69 in 1 : vector<4x1023xf32>, vector<4x1xf32> -> vector<4x1024xf32>
    %71 = vector.extract_strided_slice %0 {offsets = [11, 0], sizes = [1, 1024], strides = [1, 1]} : vector<16x1024xf32> to vector<1x1024xf32>
    %72 = vector.broadcast %71 : vector<1x1024xf32> to vector<4x1024xf32>
    %73 = arith.mulf %70, %72 : vector<4x1024xf32>
    %74 = vector.extract_strided_slice %3 {offsets = [0, 30], sizes = [4, 994], strides = [1, 1]} : vector<4x1024xf32> to vector<4x994xf32>
    %75 = vector.extract_strided_slice %3 {offsets = [0, 0], sizes = [4, 30], strides = [1, 1]} : vector<4x1024xf32> to vector<4x30xf32>
    %76 = tpu.concatenate %74, %75 in 1 : vector<4x994xf32>, vector<4x30xf32> -> vector<4x1024xf32>
    %77 = vector.extract_strided_slice %0 {offsets = [12, 0], sizes = [1, 1024], strides = [1, 1]} : vector<16x1024xf32> to vector<1x1024xf32>
    %78 = vector.broadcast %77 : vector<1x1024xf32> to vector<4x1024xf32>
    %79 = arith.mulf %76, %78 : vector<4x1024xf32>
    %80 = vector.extract_strided_slice %3 {offsets = [0, 31], sizes = [4, 993], strides = [1, 1]} : vector<4x1024xf32> to vector<4x993xf32>
    %81 = vector.extract_strided_slice %3 {offsets = [0, 0], sizes = [4, 31], strides = [1, 1]} : vector<4x1024xf32> to vector<4x31xf32>
    %82 = tpu.concatenate %80, %81 in 1 : vector<4x993xf32>, vector<4x31xf32> -> vector<4x1024xf32>
    %83 = vector.extract_strided_slice %0 {offsets = [13, 0], sizes = [1, 1024], strides = [1, 1]} : vector<16x1024xf32> to vector<1x1024xf32>
    %84 = vector.broadcast %83 : vector<1x1024xf32> to vector<4x1024xf32>
    %85 = arith.mulf %82, %84 : vector<4x1024xf32>
    %86 = vector.extract_strided_slice %3 {offsets = [0, 32], sizes = [4, 992], strides = [1, 1]} : vector<4x1024xf32> to vector<4x992xf32>
    %87 = vector.extract_strided_slice %3 {offsets = [0, 0], sizes = [4, 32], strides = [1, 1]} : vector<4x1024xf32> to vector<4x32xf32>
    %88 = tpu.concatenate %86, %87 in 1 : vector<4x992xf32>, vector<4x32xf32> -> vector<4x1024xf32>
    %89 = vector.extract_strided_slice %0 {offsets = [14, 0], sizes = [1, 1024], strides = [1, 1]} : vector<16x1024xf32> to vector<1x1024xf32>
    %90 = vector.broadcast %89 : vector<1x1024xf32> to vector<4x1024xf32>
    %91 = arith.mulf %88, %90 : vector<4x1024xf32>
    %92 = vector.extract_strided_slice %3 {offsets = [0, 33], sizes = [4, 991], strides = [1, 1]} : vector<4x1024xf32> to vector<4x991xf32>
    %93 = vector.extract_strided_slice %3 {offsets = [0, 0], sizes = [4, 33], strides = [1, 1]} : vector<4x1024xf32> to vector<4x33xf32>
    %94 = tpu.concatenate %92, %93 in 1 : vector<4x991xf32>, vector<4x33xf32> -> vector<4x1024xf32>
    %95 = vector.extract_strided_slice %0 {offsets = [15, 0], sizes = [1, 1024], strides = [1, 1]} : vector<16x1024xf32> to vector<1x1024xf32>
    %96 = vector.broadcast %95 : vector<1x1024xf32> to vector<4x1024xf32>
    %97 = arith.mulf %94, %96 : vector<4x1024xf32>
    %98 = tpu.concatenate %10, %16, %22, %28, %34, %40, %46, %52, %58, %64, %67, %73, %79, %85, %91, %97 in 0 : vector<4x1024xf32>, vector<4x1024xf32>, vector<4x1024xf32>, vector<4x1024xf32>, vector<4x1024xf32>, vector<4x1024xf32>, vector<4x1024xf32>, vector<4x1024xf32>, vector<4x1024xf32>, vector<4x1024xf32>, vector<4x1024xf32>, vector<4x1024xf32>, vector<4x1024xf32>, vector<4x1024xf32>, vector<4x1024xf32>, vector<4x1024xf32> -> vector<64x1024xf32>
    %cst = arith.constant dense<0.000000e+00> : vector<4x1024xf32>
    %99 = tpu.matmul %4, %98, %cst {dimension_numbers = #tpu.dot_dimension_numbers<[1], [0], [0], [1], [0, 0, 1, 1], [], []>} : vector<4x64xf32>, vector<64x1024xf32>, vector<4x1024xf32> -> vector<4x1024xf32>
    %c0_8 = arith.constant 0 : index
    %c0_9 = arith.constant 0 : index
    %100 = vector.load %arg6[%c0_8, %c0_9] : memref<4x1xf32, #tpu.memory_space<vmem>>, vector<4x1xf32>
    %101 = vector.broadcast %100 : vector<4x1xf32> to vector<4x1024xf32>
    %102 = arith.addf %99, %101 : vector<4x1024xf32>
    %cst_10 = arith.constant 0.000000e+00 : f32
    %103 = vector.broadcast %cst_10 : f32 to vector<4x1024xf32>
    %104 = arith.cmpf oge, %102, %103 : vector<4x1024xf32>
    %cst_11 = arith.constant 1.000000e-01 : f32
    %105 = vector.broadcast %cst_11 : f32 to vector<4x1024xf32>
    %106 = arith.mulf %105, %102 : vector<4x1024xf32>
    %107 = arith.select %104, %102, %106 : vector<4x1024xi1>, vector<4x1024xf32>
    %c0_12 = arith.constant 0 : index
    %c0_13 = arith.constant 0 : index
    %108 = vector.load %arg7[%c0_12, %c0_13] : memref<4x36xf32, #tpu.memory_space<vmem>>, vector<4x36xf32>
    %109 = vector.extract_strided_slice %107 {offsets = [0, 991], sizes = [4, 33], strides = [1, 1]} : vector<4x1024xf32> to vector<4x33xf32>
    %110 = vector.extract_strided_slice %107 {offsets = [0, 0], sizes = [4, 991], strides = [1, 1]} : vector<4x1024xf32> to vector<4x991xf32>
    %111 = tpu.concatenate %109, %110 in 1 : vector<4x33xf32>, vector<4x991xf32> -> vector<4x1024xf32>
    %112 = vector.extract_strided_slice %1 {offsets = [0, 0], sizes = [1, 1024], strides = [1, 1]} : vector<9x1024xf32> to vector<1x1024xf32>
    %113 = vector.broadcast %112 : vector<1x1024xf32> to vector<4x1024xf32>
    %114 = arith.mulf %111, %113 : vector<4x1024xf32>
    %115 = vector.extract_strided_slice %107 {offsets = [0, 992], sizes = [4, 32], strides = [1, 1]} : vector<4x1024xf32> to vector<4x32xf32>
    %116 = vector.extract_strided_slice %107 {offsets = [0, 0], sizes = [4, 992], strides = [1, 1]} : vector<4x1024xf32> to vector<4x992xf32>
    %117 = tpu.concatenate %115, %116 in 1 : vector<4x32xf32>, vector<4x992xf32> -> vector<4x1024xf32>
    %118 = vector.extract_strided_slice %1 {offsets = [1, 0], sizes = [1, 1024], strides = [1, 1]} : vector<9x1024xf32> to vector<1x1024xf32>
    %119 = vector.broadcast %118 : vector<1x1024xf32> to vector<4x1024xf32>
    %120 = arith.mulf %117, %119 : vector<4x1024xf32>
    %121 = vector.extract_strided_slice %107 {offsets = [0, 993], sizes = [4, 31], strides = [1, 1]} : vector<4x1024xf32> to vector<4x31xf32>
    %122 = vector.extract_strided_slice %107 {offsets = [0, 0], sizes = [4, 993], strides = [1, 1]} : vector<4x1024xf32> to vector<4x993xf32>
    %123 = tpu.concatenate %121, %122 in 1 : vector<4x31xf32>, vector<4x993xf32> -> vector<4x1024xf32>
    %124 = vector.extract_strided_slice %1 {offsets = [2, 0], sizes = [1, 1024], strides = [1, 1]} : vector<9x1024xf32> to vector<1x1024xf32>
    %125 = vector.broadcast %124 : vector<1x1024xf32> to vector<4x1024xf32>
    %126 = arith.mulf %123, %125 : vector<4x1024xf32>
    %127 = vector.extract_strided_slice %107 {offsets = [0, 1023], sizes = [4, 1], strides = [1, 1]} : vector<4x1024xf32> to vector<4x1xf32>
    %128 = vector.extract_strided_slice %107 {offsets = [0, 0], sizes = [4, 1023], strides = [1, 1]} : vector<4x1024xf32> to vector<4x1023xf32>
    %129 = tpu.concatenate %127, %128 in 1 : vector<4x1xf32>, vector<4x1023xf32> -> vector<4x1024xf32>
    %130 = vector.extract_strided_slice %1 {offsets = [3, 0], sizes = [1, 1024], strides = [1, 1]} : vector<9x1024xf32> to vector<1x1024xf32>
    %131 = vector.broadcast %130 : vector<1x1024xf32> to vector<4x1024xf32>
    %132 = arith.mulf %129, %131 : vector<4x1024xf32>
    %133 = vector.extract_strided_slice %1 {offsets = [4, 0], sizes = [1, 1024], strides = [1, 1]} : vector<9x1024xf32> to vector<1x1024xf32>
    %134 = vector.broadcast %133 : vector<1x1024xf32> to vector<4x1024xf32>
    %135 = arith.mulf %107, %134 : vector<4x1024xf32>
    %136 = vector.extract_strided_slice %107 {offsets = [0, 1], sizes = [4, 1023], strides = [1, 1]} : vector<4x1024xf32> to vector<4x1023xf32>
    %137 = vector.extract_strided_slice %107 {offsets = [0, 0], sizes = [4, 1], strides = [1, 1]} : vector<4x1024xf32> to vector<4x1xf32>
    %138 = tpu.concatenate %136, %137 in 1 : vector<4x1023xf32>, vector<4x1xf32> -> vector<4x1024xf32>
    %139 = vector.extract_strided_slice %1 {offsets = [5, 0], sizes = [1, 1024], strides = [1, 1]} : vector<9x1024xf32> to vector<1x1024xf32>
    %140 = vector.broadcast %139 : vector<1x1024xf32> to vector<4x1024xf32>
    %141 = arith.mulf %138, %140 : vector<4x1024xf32>
    %142 = vector.extract_strided_slice %107 {offsets = [0, 31], sizes = [4, 993], strides = [1, 1]} : vector<4x1024xf32> to vector<4x993xf32>
    %143 = vector.extract_strided_slice %107 {offsets = [0, 0], sizes = [4, 31], strides = [1, 1]} : vector<4x1024xf32> to vector<4x31xf32>
    %144 = tpu.concatenate %142, %143 in 1 : vector<4x993xf32>, vector<4x31xf32> -> vector<4x1024xf32>
    %145 = vector.extract_strided_slice %1 {offsets = [6, 0], sizes = [1, 1024], strides = [1, 1]} : vector<9x1024xf32> to vector<1x1024xf32>
    %146 = vector.broadcast %145 : vector<1x1024xf32> to vector<4x1024xf32>
    %147 = arith.mulf %144, %146 : vector<4x1024xf32>
    %148 = vector.extract_strided_slice %107 {offsets = [0, 32], sizes = [4, 992], strides = [1, 1]} : vector<4x1024xf32> to vector<4x992xf32>
    %149 = vector.extract_strided_slice %107 {offsets = [0, 0], sizes = [4, 32], strides = [1, 1]} : vector<4x1024xf32> to vector<4x32xf32>
    %150 = tpu.concatenate %148, %149 in 1 : vector<4x992xf32>, vector<4x32xf32> -> vector<4x1024xf32>
    %151 = vector.extract_strided_slice %1 {offsets = [7, 0], sizes = [1, 1024], strides = [1, 1]} : vector<9x1024xf32> to vector<1x1024xf32>
    %152 = vector.broadcast %151 : vector<1x1024xf32> to vector<4x1024xf32>
    %153 = arith.mulf %150, %152 : vector<4x1024xf32>
    %154 = vector.extract_strided_slice %107 {offsets = [0, 33], sizes = [4, 991], strides = [1, 1]} : vector<4x1024xf32> to vector<4x991xf32>
    %155 = vector.extract_strided_slice %107 {offsets = [0, 0], sizes = [4, 33], strides = [1, 1]} : vector<4x1024xf32> to vector<4x33xf32>
    %156 = tpu.concatenate %154, %155 in 1 : vector<4x991xf32>, vector<4x33xf32> -> vector<4x1024xf32>
    %157 = vector.extract_strided_slice %1 {offsets = [8, 0], sizes = [1, 1024], strides = [1, 1]} : vector<9x1024xf32> to vector<1x1024xf32>
    %158 = vector.broadcast %157 : vector<1x1024xf32> to vector<4x1024xf32>
    %159 = arith.mulf %156, %158 : vector<4x1024xf32>
    %160 = tpu.concatenate %114, %120, %126, %132, %135, %141, %147, %153, %159 in 0 : vector<4x1024xf32>, vector<4x1024xf32>, vector<4x1024xf32>, vector<4x1024xf32>, vector<4x1024xf32>, vector<4x1024xf32>, vector<4x1024xf32>, vector<4x1024xf32>, vector<4x1024xf32> -> vector<36x1024xf32>
    %cst_14 = arith.constant dense<0.000000e+00> : vector<4x1024xf32>
    %161 = tpu.matmul %108, %160, %cst_14 {dimension_numbers = #tpu.dot_dimension_numbers<[1], [0], [0], [1], [0, 0, 1, 1], [], []>} : vector<4x36xf32>, vector<36x1024xf32>, vector<4x1024xf32> -> vector<4x1024xf32>
    %c0_15 = arith.constant 0 : index
    %c0_16 = arith.constant 0 : index
    %162 = vector.load %arg8[%c0_15, %c0_16] : memref<4x1xf32, #tpu.memory_space<vmem>>, vector<4x1xf32>
    %163 = vector.broadcast %162 : vector<4x1xf32> to vector<4x1024xf32>
    %164 = arith.addf %161, %163 : vector<4x1024xf32>
    %cst_17 = arith.constant 0.000000e+00 : f32
    %165 = vector.broadcast %cst_17 : f32 to vector<4x1024xf32>
    %166 = arith.cmpf oge, %164, %165 : vector<4x1024xf32>
    %cst_18 = arith.constant 1.000000e-01 : f32
    %167 = vector.broadcast %cst_18 : f32 to vector<4x1024xf32>
    %168 = arith.mulf %167, %164 : vector<4x1024xf32>
    %169 = arith.select %166, %164, %168 : vector<4x1024xi1>, vector<4x1024xf32>
    %170 = vector.extract_strided_slice %169 {offsets = [0, 991], sizes = [4, 33], strides = [1, 1]} : vector<4x1024xf32> to vector<4x33xf32>
    %171 = vector.extract_strided_slice %169 {offsets = [0, 0], sizes = [4, 991], strides = [1, 1]} : vector<4x1024xf32> to vector<4x991xf32>
    %172 = tpu.concatenate %170, %171 in 1 : vector<4x33xf32>, vector<4x991xf32> -> vector<4x1024xf32>
    %173 = vector.extract_strided_slice %1 {offsets = [0, 0], sizes = [1, 1024], strides = [1, 1]} : vector<9x1024xf32> to vector<1x1024xf32>
    %174 = vector.broadcast %173 : vector<1x1024xf32> to vector<4x1024xf32>
    %175 = arith.mulf %172, %174 : vector<4x1024xf32>
    %176 = vector.extract_strided_slice %169 {offsets = [0, 992], sizes = [4, 32], strides = [1, 1]} : vector<4x1024xf32> to vector<4x32xf32>
    %177 = vector.extract_strided_slice %169 {offsets = [0, 0], sizes = [4, 992], strides = [1, 1]} : vector<4x1024xf32> to vector<4x992xf32>
    %178 = tpu.concatenate %176, %177 in 1 : vector<4x32xf32>, vector<4x992xf32> -> vector<4x1024xf32>
    %179 = vector.extract_strided_slice %1 {offsets = [1, 0], sizes = [1, 1024], strides = [1, 1]} : vector<9x1024xf32> to vector<1x1024xf32>
    %180 = vector.broadcast %179 : vector<1x1024xf32> to vector<4x1024xf32>
    %181 = arith.mulf %178, %180 : vector<4x1024xf32>
    %182 = vector.extract_strided_slice %169 {offsets = [0, 993], sizes = [4, 31], strides = [1, 1]} : vector<4x1024xf32> to vector<4x31xf32>
    %183 = vector.extract_strided_slice %169 {offsets = [0, 0], sizes = [4, 993], strides = [1, 1]} : vector<4x1024xf32> to vector<4x993xf32>
    %184 = tpu.concatenate %182, %183 in 1 : vector<4x31xf32>, vector<4x993xf32> -> vector<4x1024xf32>
    %185 = vector.extract_strided_slice %1 {offsets = [2, 0], sizes = [1, 1024], strides = [1, 1]} : vector<9x1024xf32> to vector<1x1024xf32>
    %186 = vector.broadcast %185 : vector<1x1024xf32> to vector<4x1024xf32>
    %187 = arith.mulf %184, %186 : vector<4x1024xf32>
    %188 = vector.extract_strided_slice %169 {offsets = [0, 1023], sizes = [4, 1], strides = [1, 1]} : vector<4x1024xf32> to vector<4x1xf32>
    %189 = vector.extract_strided_slice %169 {offsets = [0, 0], sizes = [4, 1023], strides = [1, 1]} : vector<4x1024xf32> to vector<4x1023xf32>
    %190 = tpu.concatenate %188, %189 in 1 : vector<4x1xf32>, vector<4x1023xf32> -> vector<4x1024xf32>
    %191 = vector.extract_strided_slice %1 {offsets = [3, 0], sizes = [1, 1024], strides = [1, 1]} : vector<9x1024xf32> to vector<1x1024xf32>
    %192 = vector.broadcast %191 : vector<1x1024xf32> to vector<4x1024xf32>
    %193 = arith.mulf %190, %192 : vector<4x1024xf32>
    %194 = vector.extract_strided_slice %1 {offsets = [4, 0], sizes = [1, 1024], strides = [1, 1]} : vector<9x1024xf32> to vector<1x1024xf32>
    %195 = vector.broadcast %194 : vector<1x1024xf32> to vector<4x1024xf32>
    %196 = arith.mulf %169, %195 : vector<4x1024xf32>
    %197 = vector.extract_strided_slice %169 {offsets = [0, 1], sizes = [4, 1023], strides = [1, 1]} : vector<4x1024xf32> to vector<4x1023xf32>
    %198 = vector.extract_strided_slice %169 {offsets = [0, 0], sizes = [4, 1], strides = [1, 1]} : vector<4x1024xf32> to vector<4x1xf32>
    %199 = tpu.concatenate %197, %198 in 1 : vector<4x1023xf32>, vector<4x1xf32> -> vector<4x1024xf32>
    %200 = vector.extract_strided_slice %1 {offsets = [5, 0], sizes = [1, 1024], strides = [1, 1]} : vector<9x1024xf32> to vector<1x1024xf32>
    %201 = vector.broadcast %200 : vector<1x1024xf32> to vector<4x1024xf32>
    %202 = arith.mulf %199, %201 : vector<4x1024xf32>
    %203 = vector.extract_strided_slice %169 {offsets = [0, 31], sizes = [4, 993], strides = [1, 1]} : vector<4x1024xf32> to vector<4x993xf32>
    %204 = vector.extract_strided_slice %169 {offsets = [0, 0], sizes = [4, 31], strides = [1, 1]} : vector<4x1024xf32> to vector<4x31xf32>
    %205 = tpu.concatenate %203, %204 in 1 : vector<4x993xf32>, vector<4x31xf32> -> vector<4x1024xf32>
    %206 = vector.extract_strided_slice %1 {offsets = [6, 0], sizes = [1, 1024], strides = [1, 1]} : vector<9x1024xf32> to vector<1x1024xf32>
    %207 = vector.broadcast %206 : vector<1x1024xf32> to vector<4x1024xf32>
    %208 = arith.mulf %205, %207 : vector<4x1024xf32>
    %209 = vector.extract_strided_slice %169 {offsets = [0, 32], sizes = [4, 992], strides = [1, 1]} : vector<4x1024xf32> to vector<4x992xf32>
    %210 = vector.extract_strided_slice %169 {offsets = [0, 0], sizes = [4, 32], strides = [1, 1]} : vector<4x1024xf32> to vector<4x32xf32>
    %211 = tpu.concatenate %209, %210 in 1 : vector<4x992xf32>, vector<4x32xf32> -> vector<4x1024xf32>
    %212 = vector.extract_strided_slice %1 {offsets = [7, 0], sizes = [1, 1024], strides = [1, 1]} : vector<9x1024xf32> to vector<1x1024xf32>
    %213 = vector.broadcast %212 : vector<1x1024xf32> to vector<4x1024xf32>
    %214 = arith.mulf %211, %213 : vector<4x1024xf32>
    %215 = vector.extract_strided_slice %169 {offsets = [0, 33], sizes = [4, 991], strides = [1, 1]} : vector<4x1024xf32> to vector<4x991xf32>
    %216 = vector.extract_strided_slice %169 {offsets = [0, 0], sizes = [4, 33], strides = [1, 1]} : vector<4x1024xf32> to vector<4x33xf32>
    %217 = tpu.concatenate %215, %216 in 1 : vector<4x991xf32>, vector<4x33xf32> -> vector<4x1024xf32>
    %218 = vector.extract_strided_slice %1 {offsets = [8, 0], sizes = [1, 1024], strides = [1, 1]} : vector<9x1024xf32> to vector<1x1024xf32>
    %219 = vector.broadcast %218 : vector<1x1024xf32> to vector<4x1024xf32>
    %220 = arith.mulf %217, %219 : vector<4x1024xf32>
    %221 = tpu.concatenate %175, %181, %187, %193, %196, %202, %208, %214, %220 in 0 : vector<4x1024xf32>, vector<4x1024xf32>, vector<4x1024xf32>, vector<4x1024xf32>, vector<4x1024xf32>, vector<4x1024xf32>, vector<4x1024xf32>, vector<4x1024xf32>, vector<4x1024xf32> -> vector<36x1024xf32>
    %c0_19 = arith.constant 0 : index
    %c0_20 = arith.constant 0 : index
    %c0_21 = arith.constant 0 : index
    %222 = vector.load %arg2[%c0_19, %c0_20, %c0_21] : memref<1x4x1024xf32, #tpu.memory_space<vmem>>, vector<1x4x1024xf32>
    %223 = vector.shape_cast %222 : vector<1x4x1024xf32> to vector<4x1024xf32>
    %224 = vector.extract_strided_slice %223 {offsets = [0, 991], sizes = [4, 33], strides = [1, 1]} : vector<4x1024xf32> to vector<4x33xf32>
    %225 = vector.extract_strided_slice %223 {offsets = [0, 0], sizes = [4, 991], strides = [1, 1]} : vector<4x1024xf32> to vector<4x991xf32>
    %226 = tpu.concatenate %224, %225 in 1 : vector<4x33xf32>, vector<4x991xf32> -> vector<4x1024xf32>
    %227 = vector.extract_strided_slice %1 {offsets = [0, 0], sizes = [1, 1024], strides = [1, 1]} : vector<9x1024xf32> to vector<1x1024xf32>
    %228 = vector.broadcast %227 : vector<1x1024xf32> to vector<4x1024xf32>
    %229 = arith.mulf %226, %228 : vector<4x1024xf32>
    %230 = vector.extract_strided_slice %223 {offsets = [0, 992], sizes = [4, 32], strides = [1, 1]} : vector<4x1024xf32> to vector<4x32xf32>
    %231 = vector.extract_strided_slice %223 {offsets = [0, 0], sizes = [4, 992], strides = [1, 1]} : vector<4x1024xf32> to vector<4x992xf32>
    %232 = tpu.concatenate %230, %231 in 1 : vector<4x32xf32>, vector<4x992xf32> -> vector<4x1024xf32>
    %233 = vector.extract_strided_slice %1 {offsets = [1, 0], sizes = [1, 1024], strides = [1, 1]} : vector<9x1024xf32> to vector<1x1024xf32>
    %234 = vector.broadcast %233 : vector<1x1024xf32> to vector<4x1024xf32>
    %235 = arith.mulf %232, %234 : vector<4x1024xf32>
    %236 = vector.extract_strided_slice %223 {offsets = [0, 993], sizes = [4, 31], strides = [1, 1]} : vector<4x1024xf32> to vector<4x31xf32>
    %237 = vector.extract_strided_slice %223 {offsets = [0, 0], sizes = [4, 993], strides = [1, 1]} : vector<4x1024xf32> to vector<4x993xf32>
    %238 = tpu.concatenate %236, %237 in 1 : vector<4x31xf32>, vector<4x993xf32> -> vector<4x1024xf32>
    %239 = vector.extract_strided_slice %1 {offsets = [2, 0], sizes = [1, 1024], strides = [1, 1]} : vector<9x1024xf32> to vector<1x1024xf32>
    %240 = vector.broadcast %239 : vector<1x1024xf32> to vector<4x1024xf32>
    %241 = arith.mulf %238, %240 : vector<4x1024xf32>
    %242 = vector.extract_strided_slice %223 {offsets = [0, 1023], sizes = [4, 1], strides = [1, 1]} : vector<4x1024xf32> to vector<4x1xf32>
    %243 = vector.extract_strided_slice %223 {offsets = [0, 0], sizes = [4, 1023], strides = [1, 1]} : vector<4x1024xf32> to vector<4x1023xf32>
    %244 = tpu.concatenate %242, %243 in 1 : vector<4x1xf32>, vector<4x1023xf32> -> vector<4x1024xf32>
    %245 = vector.extract_strided_slice %1 {offsets = [3, 0], sizes = [1, 1024], strides = [1, 1]} : vector<9x1024xf32> to vector<1x1024xf32>
    %246 = vector.broadcast %245 : vector<1x1024xf32> to vector<4x1024xf32>
    %247 = arith.mulf %244, %246 : vector<4x1024xf32>
    %248 = vector.extract_strided_slice %1 {offsets = [4, 0], sizes = [1, 1024], strides = [1, 1]} : vector<9x1024xf32> to vector<1x1024xf32>
    %249 = vector.broadcast %248 : vector<1x1024xf32> to vector<4x1024xf32>
    %250 = arith.mulf %223, %249 : vector<4x1024xf32>
    %251 = vector.extract_strided_slice %223 {offsets = [0, 1], sizes = [4, 1023], strides = [1, 1]} : vector<4x1024xf32> to vector<4x1023xf32>
    %252 = vector.extract_strided_slice %223 {offsets = [0, 0], sizes = [4, 1], strides = [1, 1]} : vector<4x1024xf32> to vector<4x1xf32>
    %253 = tpu.concatenate %251, %252 in 1 : vector<4x1023xf32>, vector<4x1xf32> -> vector<4x1024xf32>
    %254 = vector.extract_strided_slice %1 {offsets = [5, 0], sizes = [1, 1024], strides = [1, 1]} : vector<9x1024xf32> to vector<1x1024xf32>
    %255 = vector.broadcast %254 : vector<1x1024xf32> to vector<4x1024xf32>
    %256 = arith.mulf %253, %255 : vector<4x1024xf32>
    %257 = vector.extract_strided_slice %223 {offsets = [0, 31], sizes = [4, 993], strides = [1, 1]} : vector<4x1024xf32> to vector<4x993xf32>
    %258 = vector.extract_strided_slice %223 {offsets = [0, 0], sizes = [4, 31], strides = [1, 1]} : vector<4x1024xf32> to vector<4x31xf32>
    %259 = tpu.concatenate %257, %258 in 1 : vector<4x993xf32>, vector<4x31xf32> -> vector<4x1024xf32>
    %260 = vector.extract_strided_slice %1 {offsets = [6, 0], sizes = [1, 1024], strides = [1, 1]} : vector<9x1024xf32> to vector<1x1024xf32>
    %261 = vector.broadcast %260 : vector<1x1024xf32> to vector<4x1024xf32>
    %262 = arith.mulf %259, %261 : vector<4x1024xf32>
    %263 = vector.extract_strided_slice %223 {offsets = [0, 32], sizes = [4, 992], strides = [1, 1]} : vector<4x1024xf32> to vector<4x992xf32>
    %264 = vector.extract_strided_slice %223 {offsets = [0, 0], sizes = [4, 32], strides = [1, 1]} : vector<4x1024xf32> to vector<4x32xf32>
    %265 = tpu.concatenate %263, %264 in 1 : vector<4x992xf32>, vector<4x32xf32> -> vector<4x1024xf32>
    %266 = vector.extract_strided_slice %1 {offsets = [7, 0], sizes = [1, 1024], strides = [1, 1]} : vector<9x1024xf32> to vector<1x1024xf32>
    %267 = vector.broadcast %266 : vector<1x1024xf32> to vector<4x1024xf32>
    %268 = arith.mulf %265, %267 : vector<4x1024xf32>
    %269 = vector.extract_strided_slice %223 {offsets = [0, 33], sizes = [4, 991], strides = [1, 1]} : vector<4x1024xf32> to vector<4x991xf32>
    %270 = vector.extract_strided_slice %223 {offsets = [0, 0], sizes = [4, 33], strides = [1, 1]} : vector<4x1024xf32> to vector<4x33xf32>
    %271 = tpu.concatenate %269, %270 in 1 : vector<4x991xf32>, vector<4x33xf32> -> vector<4x1024xf32>
    %272 = vector.extract_strided_slice %1 {offsets = [8, 0], sizes = [1, 1024], strides = [1, 1]} : vector<9x1024xf32> to vector<1x1024xf32>
    %273 = vector.broadcast %272 : vector<1x1024xf32> to vector<4x1024xf32>
    %274 = arith.mulf %271, %273 : vector<4x1024xf32>
    %275 = tpu.concatenate %229, %235, %241, %247, %250, %256, %262, %268, %274 in 0 : vector<4x1024xf32>, vector<4x1024xf32>, vector<4x1024xf32>, vector<4x1024xf32>, vector<4x1024xf32>, vector<4x1024xf32>, vector<4x1024xf32>, vector<4x1024xf32>, vector<4x1024xf32> -> vector<36x1024xf32>
    %276 = tpu.concatenate %221, %275 in 0 : vector<36x1024xf32>, vector<36x1024xf32> -> vector<72x1024xf32>
    %c0_22 = arith.constant 0 : index
    %c0_23 = arith.constant 0 : index
    %277 = vector.load %arg9[%c0_22, %c0_23] : memref<4x72xf32, #tpu.memory_space<vmem>>, vector<4x72xf32>
    %cst_24 = arith.constant dense<0.000000e+00> : vector<4x1024xf32>
    %278 = tpu.matmul %277, %276, %cst_24 {dimension_numbers = #tpu.dot_dimension_numbers<[1], [0], [0], [1], [0, 0, 1, 1], [], []>} : vector<4x72xf32>, vector<72x1024xf32>, vector<4x1024xf32> -> vector<4x1024xf32>
    %c0_25 = arith.constant 0 : index
    %c0_26 = arith.constant 0 : index
    %279 = vector.load %arg10[%c0_25, %c0_26] : memref<4x1xf32, #tpu.memory_space<vmem>>, vector<4x1xf32>
    %280 = vector.broadcast %279 : vector<4x1xf32> to vector<4x1024xf32>
    %281 = arith.addf %278, %280 : vector<4x1024xf32>
    %cst_27 = arith.constant 0.000000e+00 : f32
    %282 = vector.broadcast %cst_27 : f32 to vector<4x1024xf32>
    %283 = arith.cmpf oge, %281, %282 : vector<4x1024xf32>
    %cst_28 = arith.constant 1.000000e-01 : f32
    %284 = vector.broadcast %cst_28 : f32 to vector<4x1024xf32>
    %285 = arith.mulf %284, %281 : vector<4x1024xf32>
    %286 = arith.select %283, %281, %285 : vector<4x1024xi1>, vector<4x1024xf32>
    %c0_29 = arith.constant 0 : index
    %c0_30 = arith.constant 0 : index
    %c0_31 = arith.constant 0 : index
    %287 = vector.load %arg11[%c0_29, %c0_30, %c0_31] : memref<1x4x1024xf32, #tpu.memory_space<vmem>>, vector<1x4x1024xf32>
    %288 = vector.shape_cast %287 : vector<1x4x1024xf32> to vector<4x1024xf32>
    %289 = vector.shape_cast %286 : vector<4x1024xf32> to vector<1x4x1024xf32>
    tpu.vector_store %arg11[%c0_29, %c0_30, %c0_31], %289 {strides = array<i32>} : memref<1x4x1024xf32, #tpu.memory_space<vmem>>, vector<1x4x1024xf32>,
    return
  }
  func.func @transform_0(%arg0: i32) -> (i32, i32, i32) {
    %c0_i32 = arith.constant 0 : i32
    %c0_i32_0 = arith.constant 0 : i32
    %c0_i32_1 = arith.constant 0 : i32
    return %arg0, %c0_i32, %c0_i32_0 : i32, i32, i32
  }
  func.func @transform_1(%arg0: i32) -> (i32, i32, i32) {
    %c0_i32 = arith.constant 0 : i32
    %c0_i32_0 = arith.constant 0 : i32
    %c0_i32_1 = arith.constant 0 : i32
    return %arg0, %c0_i32, %c0_i32_0 : i32, i32, i32
  }
  func.func @transform_2(%arg0: i32) -> (i32, i32) {
    %c0_i32 = arith.constant 0 : i32
    %c0_i32_0 = arith.constant 0 : i32
    %c0_i32_1 = arith.constant 0 : i32
    return %c0_i32, %c0_i32_0 : i32, i32
  }
  func.func @transform_3(%arg0: i32) -> (i32, i32) {
    %c0_i32 = arith.constant 0 : i32
    %c0_i32_0 = arith.constant 0 : i32
    %c0_i32_1 = arith.constant 0 : i32
    return %c0_i32, %c0_i32_0 : i32, i32
  }
  func.func @transform_4(%arg0: i32) -> (i32, i32) {
    %c0_i32 = arith.constant 0 : i32
    %c0_i32_0 = arith.constant 0 : i32
    %c0_i32_1 = arith.constant 0 : i32
    return %c0_i32, %c0_i32_0 : i32, i32
  }
  func.func @transform_5(%arg0: i32) -> (i32, i32) {
    %c0_i32 = arith.constant 0 : i32
    %c0_i32_0 = arith.constant 0 : i32
    %c0_i32_1 = arith.constant 0 : i32
    return %c0_i32, %c0_i32_0 : i32, i32
  }
  func.func @transform_6(%arg0: i32) -> (i32, i32) {
    %c0_i32 = arith.constant 0 : i32
    %c0_i32_0 = arith.constant 0 : i32
    %c0_i32_1 = arith.constant 0 : i32
    return %c0_i32, %c0_i32_0 : i32, i32
  }
  func.func @transform_7(%arg0: i32) -> (i32, i32) {
    %c0_i32 = arith.constant 0 : i32
    %c0_i32_0 = arith.constant 0 : i32
    %c0_i32_1 = arith.constant 0 : i32
    return %c0_i32, %c0_i32_0 : i32, i32
  }
  func.func @transform_8(%arg0: i32) -> (i32, i32) {
    %c0_i32 = arith.constant 0 : i32
    %c0_i32_0 = arith.constant 0 : i32
    %c0_i32_1 = arith.constant 0 : i32
    return %c0_i32, %c0_i32_0 : i32, i32
  }
  func.func @transform_9(%arg0: i32) -> (i32, i32) {
    %c0_i32 = arith.constant 0 : i32
    %c0_i32_0 = arith.constant 0 : i32
    %c0_i32_1 = arith.constant 0 : i32
    return %c0_i32, %c0_i32_0 : i32, i32
  }
  func.func @transform_10(%arg0: i32) -> (i32, i32, i32) {
    %c0_i32 = arith.constant 0 : i32
    %c0_i32_0 = arith.constant 0 : i32
    %c0_i32_1 = arith.constant 0 : i32
    return %arg0, %c0_i32, %c0_i32_0 : i32, i32, i32
  }
}

</mosaic_0001>

<llo_original>
// kernel: up2d_forward.1
$region0: #{up2d_forward.1}
  #allocation0 [shape = 'u32[]', space=smem, size = 0x4, offset = 0x4, fixed_abs, tag = 'smem constant byte address 0x4 - core index']
  #allocation1 [shape = 'u32[144,128]{1,0:T(1,128)}', space=vmem, size = 0x12000, scoped, tag = 'internal scratch']
  %s0 = inlined_call_operand.vmem [shape: f32[2,4,1024], index: 0, kind: input, shape index: {}]
  %s1 = inlined_call_operand.vmem [shape: f32[2,4,1024], index: 1, kind: input, shape index: {}]
  %s2 = inlined_call_operand.vmem [shape: f32[16,1024], index: 2, kind: input, shape index: {}]
  %s3 = inlined_call_operand.vmem [shape: f32[9,1024], index: 3, kind: input, shape index: {}]
  %s4 = inlined_call_operand.vmem [shape: f32[4,64], index: 4, kind: input, shape index: {}]
  %s5 = inlined_call_operand.vmem [shape: f32[4,1], index: 5, kind: input, shape index: {}]
  %s6 = inlined_call_operand.vmem [shape: f32[4,36], index: 6, kind: input, shape index: {}]
  %s7 = inlined_call_operand.vmem [shape: f32[4,1], index: 7, kind: input, shape index: {}]
  %s8 = inlined_call_operand.vmem [shape: f32[4,72], index: 8, kind: input, shape index: {}]
  %s9 = inlined_call_operand.vmem [shape: f32[4,1], index: 9, kind: input, shape index: {}]
  %s10 = inlined_call_operand.vmem [shape: f32[2,4,1024], index: 10, kind: output, shape index: {}]
  %s11 = sld [smem:[#allocation0]]
  $region73: #{up2d_forward.1} parent=0
    _
  %s13 = ssub.s32 1, %s11
  %s14 = scalar_select 0, %s13, %s11
  loop: start=0, step=1, limit=4
  $region2: #{up2d_forward.1} parent=0 // loop_pre_header
    _
  $region3: #{up2d_forward.1} parent=0 // loop_header
    %s16 = sphi 0, %s20
    %p17 = scmp.ge.s32.totalorder %s16, 4
    %s26 = sphi 0, %s28
    %s29 = sphi 0, %s26
    %s30 = sphi 0, %s29
    %s46 = sphi 0, %s30
    %s52 = sphi 0, %s54
    %s55 = sphi 0, %s52
    %s56 = sphi 0, %s55
    %s72 = sphi 0, %s56
    %s76 = sphi 0, %s76
    %s78 = sphi 0, %s76
    %s79 = sphi 0, %s78
    %s93 = sphi 0, %s79
    %s97 = sphi 0, %s97
    %s99 = sphi 0, %s97
    %s100 = sphi 0, %s99
    %s114 = sphi 0, %s100
    %s118 = sphi 0, %s118
    %s120 = sphi 0, %s118
    %s121 = sphi 0, %s120
    %s135 = sphi 0, %s121
    %s139 = sphi 0, %s139
    %s141 = sphi 0, %s139
    %s142 = sphi 0, %s141
    %s156 = sphi 0, %s142
    %s160 = sphi 0, %s160
    %s162 = sphi 0, %s160
    %s163 = sphi 0, %s162
    %s177 = sphi 0, %s163
    %s181 = sphi 0, %s181
    %s183 = sphi 0, %s181
    %s184 = sphi 0, %s183
    %s198 = sphi 0, %s184
    %s202 = sphi 0, %s202
    %s204 = sphi 0, %s202
    %s205 = sphi 0, %s204
    %s219 = sphi 0, %s205
    %s223 = sphi 0, %s223
    %s225 = sphi 0, %s223
    %s226 = sphi 0, %s225
    %s240 = sphi 0, %s226
    %s246 = sphi 0, %s248
    %s249 = sphi 0, %s246
    %s250 = sphi 0, %s249
    %s266 = sphi 0, %s250
  $region4: #{up2d_forward.1} parent=0 // loop_header_branch
    %19 = sbr.rel (%p17) target = $region8
  $region5: #{up2d_forward.1} parent=0 // loop_body
    %s21 = ssub.s32 %s16, 1
    %s22 = ssub.s32 %s16, 2
    %s23 = sadd.s32 %s16, 1
    %s24 = ssub.s32 %s16, %s23
    %p25 = scmp.eq.s32.totalorder %s24, 0
    %s27 = sadd.s32 %s26, 1
    %s28 = scalar_select %p25, %s26, %s27
    %p31 = pneg %p25
    %p32 = scmp.eq.s32.totalorder %s16, 1
    %p33 = por %p31, %p32
    %p34 = scmp.ne.s32.totalorder %s26, %s29
    %p35 = scmp.eq.s32.totalorder %s16, 0
    %p36 = por %p34, %p35
    %p37 = scmp.ne.s32.totalorder %s26, %s29
    %p38 = scmp.eq.s32.totalorder %s21, 1
    %p39 = por %p37, %p38
    %p40 = scmp.ne.s32.totalorder %s29, %s30
    %p41 = scmp.eq.s32.totalorder %s21, 0
    %p42 = por %p40, %p41
    %p43 = scmp.ne.s32.totalorder %s29, %s30
    %p44 = scmp.eq.s32.totalorder %s22, 1
    %p45 = por %p43, %p44
    %p47 = scmp.ne.s32.totalorder %s30, %s46
    %p48 = scmp.eq.s32.totalorder %s22, 0
    %p49 = por %p47, %p48
    %s50 = ssub.s32 %s16, %s23
    %p51 = scmp.eq.s32.totalorder %s50, 0
    %s53 = sadd.s32 %s52, 1
    %s54 = scalar_select %p51, %s52, %s53
    %p57 = pneg %p51
    %p58 = scmp.eq.s32.totalorder %s16, 1
    %p59 = por %p57, %p58
    %p60 = scmp.ne.s32.totalorder %s52, %s55
    %p61 = scmp.eq.s32.totalorder %s16, 0
    %p62 = por %p60, %p61
    %p63 = scmp.ne.s32.totalorder %s52, %s55
    %p64 = scmp.eq.s32.totalorder %s21, 1
    %p65 = por %p63, %p64
    %p66 = scmp.ne.s32.totalorder %s55, %s56
    %p67 = scmp.eq.s32.totalorder %s21, 0
    %p68 = por %p66, %p67
    %p69 = scmp.ne.s32.totalorder %s55, %s56
    %p70 = scmp.eq.s32.totalorder %s22, 1
    %p71 = por %p69, %p70
    %p73 = scmp.ne.s32.totalorder %s56, %s72
    %p74 = scmp.eq.s32.totalorder %s22, 0
    %p75 = por %p73, %p74
    %s77 = sadd.s32 %s76, 1
    %p80 = scmp.eq.s32.totalorder %s16, 1
    %p81 = scmp.ne.s32.totalorder %s76, %s78
    %p82 = scmp.eq.s32.totalorder %s16, 0
    %p83 = por %p81, %p82
    %p84 = scmp.ne.s32.totalorder %s76, %s78
    %p85 = scmp.eq.s32.totalorder %s21, 1
    %p86 = por %p84, %p85
    %p87 = scmp.ne.s32.totalorder %s78, %s79
    %p88 = scmp.eq.s32.totalorder %s21, 0
    %p89 = por %p87, %p88
    %p90 = scmp.ne.s32.totalorder %s78, %s79
    %p91 = scmp.eq.s32.totalorder %s22, 1
    %p92 = por %p90, %p91
    %p94 = scmp.ne.s32.totalorder %s79, %s93
    %p95 = scmp.eq.s32.totalorder %s22, 0
    %p96 = por %p94, %p95
    %s98 = sadd.s32 %s97, 1
    %p101 = scmp.eq.s32.totalorder %s16, 1
    %p102 = scmp.ne.s32.totalorder %s97, %s99
    %p103 = scmp.eq.s32.totalorder %s16, 0
    %p104 = por %p102, %p103
    %p105 = scmp.ne.s32.totalorder %s97, %s99
    %p106 = scmp.eq.s32.totalorder %s21, 1
    %p107 = por %p105, %p106
    %p108 = scmp.ne.s32.totalorder %s99, %s100
    %p109 = scmp.eq.s32.totalorder %s21, 0
    %p110 = por %p108, %p109
    %p111 = scmp.ne.s32.totalorder %s99, %s100
    %p112 = scmp.eq.s32.totalorder %s22, 1
    %p113 = por %p111, %p112
    %p115 = scmp.ne.s32.totalorder %s100, %s114
    %p116 = scmp.eq.s32.totalorder %s22, 0
    %p117 = por %p115, %p116
    %s119 = sadd.s32 %s118, 1
    %p122 = scmp.eq.s32.totalorder %s16, 1
    %p123 = scmp.ne.s32.totalorder %s118, %s120
    %p124 = scmp.eq.s32.totalorder %s16, 0
    %p125 = por %p123, %p124
    %p126 = scmp.ne.s32.totalorder %s118, %s120
    %p127 = scmp.eq.s32.totalorder %s21, 1
    %p128 = por %p126, %p127
    %p129 = scmp.ne.s32.totalorder %s120, %s121
    %p130 = scmp.eq.s32.totalorder %s21, 0
    %p131 = por %p129, %p130
    %p132 = scmp.ne.s32.totalorder %s120, %s121
    %p133 = scmp.eq.s32.totalorder %s22, 1
    %p134 = por %p132, %p133
    %p136 = scmp.ne.s32.totalorder %s121, %s135
    %p137 = scmp.eq.s32.totalorder %s22, 0
    %p138 = por %p136, %p137
    %s140 = sadd.s32 %s139, 1
    %p143 = scmp.eq.s32.totalorder %s16, 1
    %p144 = scmp.ne.s32.totalorder %s139, %s141
    %p145 = scmp.eq.s32.totalorder %s16, 0
    %p146 = por %p144, %p145
    %p147 = scmp.ne.s32.totalorder %s139, %s141
    %p148 = scmp.eq.s32.totalorder %s21, 1
    %p149 = por %p147, %p148
    %p150 = scmp.ne.s32.totalorder %s141, %s142
    %p151 = scmp.eq.s32.totalorder %s21, 0
    %p152 = por %p150, %p151
    %p153 = scmp.ne.s32.totalorder %s141, %s142
    %p154 = scmp.eq.s32.totalorder %s22, 1
    %p155 = por %p153, %p154
    %p157 = scmp.ne.s32.totalorder %s142, %s156
    %p158 = scmp.eq.s32.totalorder %s22, 0
    %p159 = por %p157, %p158
    %s161 = sadd.s32 %s160, 1
    %p164 = scmp.eq.s32.totalorder %s16, 1
    %p165 = scmp.ne.s32.totalorder %s160, %s162
    %p166 = scmp.eq.s32.totalorder %s16, 0
    %p167 = por %p165, %p166
    %p168 = scmp.ne.s32.totalorder %s160, %s162
    %p169 = scmp.eq.s32.totalorder %s21, 1
    %p170 = por %p168, %p169
    %p171 = scmp.ne.s32.totalorder %s162, %s163
    %p172 = scmp.eq.s32.totalorder %s21, 0
    %p173 = por %p171, %p172
    %p174 = scmp.ne.s32.totalorder %s162, %s163
    %p175 = scmp.eq.s32.totalorder %s22, 1
    %p176 = por %p174, %p175
    %p178 = scmp.ne.s32.totalorder %s163, %s177
    %p179 = scmp.eq.s32.totalorder %s22, 0
    %p180 = por %p178, %p179
    %s182 = sadd.s32 %s181, 1
    %p185 = scmp.eq.s32.totalorder %s16, 1
    %p186 = scmp.ne.s32.totalorder %s181, %s183
    %p187 = scmp.eq.s32.totalorder %s16, 0
    %p188 = por %p186, %p187
    %p189 = scmp.ne.s32.totalorder %s181, %s183
    %p190 = scmp.eq.s32.totalorder %s21, 1
    %p191 = por %p189, %p190
    %p192 = scmp.ne.s32.totalorder %s183, %s184
    %p193 = scmp.eq.s32.totalorder %s21, 0
    %p194 = por %p192, %p193
    %p195 = scmp.ne.s32.totalorder %s183, %s184
    %p196 = scmp.eq.s32.totalorder %s22, 1
    %p197 = por %p195, %p196
    %p199 = scmp.ne.s32.totalorder %s184, %s198
    %p200 = scmp.eq.s32.totalorder %s22, 0
    %p201 = por %p199, %p200
    %s203 = sadd.s32 %s202, 1
    %p206 = scmp.eq.s32.totalorder %s16, 1
    %p207 = scmp.ne.s32.totalorder %s202, %s204
    %p208 = scmp.eq.s32.totalorder %s16, 0
    %p209 = por %p207, %p208
    %p210 = scmp.ne.s32.totalorder %s202, %s204
    %p211 = scmp.eq.s32.totalorder %s21, 1
    %p212 = por %p210, %p211
    %p213 = scmp.ne.s32.totalorder %s204, %s205
    %p214 = scmp.eq.s32.totalorder %s21, 0
    %p215 = por %p213, %p214
    %p216 = scmp.ne.s32.totalorder %s204, %s205
    %p217 = scmp.eq.s32.totalorder %s22, 1
    %p218 = por %p216, %p217
    %p220 = scmp.ne.s32.totalorder %s205, %s219
    %p221 = scmp.eq.s32.totalorder %s22, 0
    %p222 = por %p220, %p221
    %s224 = sadd.s32 %s223, 1
    %p227 = scmp.eq.s32.totalorder %s16, 1
    %p228 = scmp.ne.s32.totalorder %s223, %s225
    %p229 = scmp.eq.s32.totalorder %s16, 0
    %p230 = por %p228, %p229
    %p231 = scmp.ne.s32.totalorder %s223, %s225
    %p232 = scmp.eq.s32.totalorder %s21, 1
    %p233 = por %p231, %p232
    %p234 = scmp.ne.s32.totalorder %s225, %s226
    %p235 = scmp.eq.s32.totalorder %s21, 0
    %p236 = por %p234, %p235
    %p237 = scmp.ne.s32.totalorder %s225, %s226
    %p238 = scmp.eq.s32.totalorder %s22, 1
    %p239 = por %p237, %p238
    %p241 = scmp.ne.s32.totalorder %s226, %s240
    %p242 = scmp.eq.s32.totalorder %s22, 0
    %p243 = por %p241, %p242
    %s244 = ssub.s32 %s16, %s23
    %p245 = scmp.eq.s32.totalorder %s244, 0
    %s247 = sadd.s32 %s246, 1
    %s248 = scalar_select %p245, %s246, %s247
    %p251 = pneg %p245
    %p252 = scmp.eq.s32.totalorder %s16, 1
    %p253 = por %p251, %p252
    %p254 = scmp.ne.s32.totalorder %s246, %s249
    %p255 = scmp.eq.s32.totalorder %s16, 0
    %p256 = por %p254, %p255
    %p257 = scmp.ne.s32.totalorder %s246, %s249
    %p258 = scmp.eq.s32.totalorder %s21, 1
    %p259 = por %p257, %p258
    %p260 = scmp.ne.s32.totalorder %s249, %s250
    %p261 = scmp.eq.s32.totalorder %s21, 0
    %p262 = por %p260, %p261
    %p263 = scmp.ne.s32.totalorder %s249, %s250
    %p264 = scmp.eq.s32.totalorder %s22, 1
    %p265 = por %p263, %p264
    %p267 = scmp.ne.s32.totalorder %s250, %s266
    %p268 = scmp.eq.s32.totalorder %s22, 0
    %p269 = por %p267, %p268
    %p270 = scmp.le.s32.totalorder 1, %s16
    %p271 = scmp.lt.s32.totalorder %s16, 3
    %p272 = pnand %p270, %p271
    %p273 = pneg %p272
    // Predicated region
    $region9: #{up2d_forward.1} parent=5 // pred_check
      _
    $region10: #{up2d_forward.1} parent=5 // pred_check_branch
      %275 = sbr.rel (%p272) target = $region12
    $region11: #{up2d_forward.1} parent=5 // pred_region
      %s276 = ssub.s32 %s16, 1
      // Predicated region
      $region13: #{up2d_forward.1} parent=11 // pred_check
        %p277 = pneg %p89
      $region14: #{up2d_forward.1} parent=11 // pred_check_branch
        %279 = sbr.rel (%p277) target = $region16
      $region15: #{up2d_forward.1} parent=11 // pred_region
        _
      $region16: #{up2d_forward.1} parent=11 // pred_fallthru
        _
      // Predicated region
      $region17: #{up2d_forward.1} parent=11 // pred_check
        %p280 = pneg %p110
      $region18: #{up2d_forward.1} parent=11 // pred_check_branch
        %282 = sbr.rel (%p280) target = $region20
      $region19: #{up2d_forward.1} parent=11 // pred_region
        _
      $region20: #{up2d_forward.1} parent=11 // pred_fallthru
        _
      // Predicated region
      $region21: #{up2d_forward.1} parent=11 // pred_check
        %p283 = pneg %p131
      $region22: #{up2d_forward.1} parent=11 // pred_check_branch
        %285 = sbr.rel (%p283) target = $region24
      $region23: #{up2d_forward.1} parent=11 // pred_region
        _
      $region24: #{up2d_forward.1} parent=11 // pred_fallthru
        _
      // Predicated region
      $region25: #{up2d_forward.1} parent=11 // pred_check
        %p286 = pneg %p152
      $region26: #{up2d_forward.1} parent=11 // pred_check_branch
        %288 = sbr.rel (%p286) target = $region28
      $region27: #{up2d_forward.1} parent=11 // pred_region
        _
      $region28: #{up2d_forward.1} parent=11 // pred_fallthru
        _
      // Predicated region
      $region29: #{up2d_forward.1} parent=11 // pred_check
        %p289 = pneg %p173
      $region30: #{up2d_forward.1} parent=11 // pred_check_branch
        %291 = sbr.rel (%p289) target = $region32
      $region31: #{up2d_forward.1} parent=11 // pred_region
        _
      $region32: #{up2d_forward.1} parent=11 // pred_fallthru
        _
      // Predicated region
      $region33: #{up2d_forward.1} parent=11 // pred_check
        %p292 = pneg %p194
      $region34: #{up2d_forward.1} parent=11 // pred_check_branch
        %294 = sbr.rel (%p292) target = $region36
      $region35: #{up2d_forward.1} parent=11 // pred_region
        _
      $region36: #{up2d_forward.1} parent=11 // pred_fallthru
        _
      // Predicated region
      $region37: #{up2d_forward.1} parent=11 // pred_check
        %p295 = pneg %p215
      $region38: #{up2d_forward.1} parent=11 // pred_check_branch
        %297 = sbr.rel (%p295) target = $region40
      $region39: #{up2d_forward.1} parent=11 // pred_region
        _
      $region40: #{up2d_forward.1} parent=11 // pred_fallthru
        _
      // Predicated region
      $region41: #{up2d_forward.1} parent=11 // pred_check
        %p298 = pneg %p236
      $region42: #{up2d_forward.1} parent=11 // pred_check_branch
        %300 = sbr.rel (%p298) target = $region44
      $region43: #{up2d_forward.1} parent=11 // pred_region
        _
      $region44: #{up2d_forward.1} parent=11 // pred_fallthru
        _
    $region12: #{up2d_forward.1} parent=5 // pred_fallthru
      _
    %p301 = scmp.lt.s32.totalorder %s16, 2
    // Predicated region
    $region45: #{up2d_forward.1} parent=5 // pred_check
      %p302 = pneg %p301
    $region46: #{up2d_forward.1} parent=5 // pred_check_branch
      %304 = sbr.rel (%p302) target = $region48
    $region47: #{up2d_forward.1} parent=5 // pred_region
      // Predicated region
      $region49: #{up2d_forward.1} parent=47 // pred_check
        %p305 = pneg %p36
      $region50: #{up2d_forward.1} parent=47 // pred_check_branch
        %307 = sbr.rel (%p305) target = $region52
      $region51: #{up2d_forward.1} parent=47 // pred_region
        %p308 = scmp.lt.s32.totalorder %s16, 1
        %s309 = scalar_select %p308, %s16, 1
        %s310 = smul.addr %s309, 8
        %s311 = smul.addr %s310, 4
        %s312 = scalar_lea.vmem %s0, %s311
      $region52: #{up2d_forward.1} parent=47 // pred_fallthru
        _
      // Predicated region
      $region53: #{up2d_forward.1} parent=47 // pred_check
        %p313 = pneg %p62
      $region54: #{up2d_forward.1} parent=47 // pred_check_branch
        %315 = sbr.rel (%p313) target = $region56
      $region55: #{up2d_forward.1} parent=47 // pred_region
        %p316 = scmp.lt.s32.totalorder %s16, 1
        %s317 = scalar_select %p316, %s16, 1
        %s318 = smul.addr %s317, 8
        %s319 = smul.addr %s318, 4
        %s320 = scalar_lea.vmem %s1, %s319
      $region56: #{up2d_forward.1} parent=47 // pred_fallthru
        _
    $region48: #{up2d_forward.1} parent=5 // pred_fallthru
      _
    %p321 = scmp.le.s32.totalorder 1, %s16
    %p322 = scmp.lt.s32.totalorder %s16, 3
    %p323 = pnand %p321, %p322
    %p324 = pneg %p323
    // Predicated region
    $region57: #{up2d_forward.1} parent=5 // pred_check
      _
    $region58: #{up2d_forward.1} parent=5 // pred_check_branch
      %326 = sbr.rel (%p323) target = $region60
    $region59: #{up2d_forward.1} parent=5 // pred_region
      %s327 = ssub.s32 %s16, 1
      %p328 = scmp.lt.s32.totalorder %s21, 1
      %s329 = scalar_select %p328, %s21, 1
      %s330 = smul.addr %s329, 8
      %s331 = smul.addr %s330, 4
      %s332 = scalar_lea.vmem %s0, %s331
      %p333 = pneg %p42
      %p334 = pneg %p39
      %p335 = scmp.lt.s32.totalorder %s21, 1
      %s336 = scalar_select %p335, %s21, 1
      %s337 = smul.addr %s336, 8
      %s338 = smul.addr %s337, 4
      %s339 = scalar_lea.vmem %s1, %s338
      %p340 = pneg %p68
      %p341 = pneg %p65
      %p342 = pneg %p89
      %p343 = pneg %p86
      %p344 = pneg %p110
      %p345 = pneg %p107
      %p346 = pneg %p131
      %p347 = pneg %p128
      %p348 = pneg %p152
      %p349 = pneg %p149
      %p350 = pneg %p173
      %p351 = pneg %p170
      %p352 = pneg %p194
      %p353 = pneg %p191
      %p354 = pneg %p215
      %p355 = pneg %p212
      %p356 = pneg %p236
      %p357 = pneg %p233
      %p358 = pneg %p262
      %p359 = pneg %p259
      %p360 = scmp.lt.s32.totalorder %s21, 1
      %s361 = scalar_select %p360, %s21, 1
      %s362 = smul.addr %s361, 8
      %s363 = smul.addr %s362, 4
      %s364 = scalar_lea.vmem %s10, %s363
      %p365 = scmp.lt.s32.totalorder %s21, 1
      %s366 = scalar_select %p365, %s21, 1
      %s367 = smul.addr %s366, 8
      %s368 = smul.addr %s367, 4
      %s369 = scalar_lea.vmem %s0, %s368
      %p370 = scmp.lt.s32.totalorder %s21, 1
      %s371 = scalar_select %p370, %s21, 1
      %s372 = smul.addr %s371, 8
      %s373 = smul.addr %s372, 4
      %s374 = scalar_lea.vmem %s1, %s373
      %p375 = scmp.lt.s32.totalorder %s21, 1
      %s376 = scalar_select %p375, %s21, 1
      %s377 = smul.addr %s376, 8
      %s378 = smul.addr %s377, 4
      %s379 = scalar_lea.vmem %s10, %s378
      %v380 = vld [vmem:[%s2] sm:$0xff]
      %v381 = vld [vmem:[%s2 + $0x8] sm:$0xff]
      %v382 = vld [vmem:[%s2 + $0x10] sm:$0xff]
      %v383 = vld [vmem:[%s2 + $0x18] sm:$0xff]
      %v384 = vld [vmem:[%s2 + $0x20] sm:$0xff]
      %v385 = vld [vmem:[%s2 + $0x28] sm:$0xff]
      %v386 = vld [vmem:[%s2 + $0x30] sm:$0xff]
      %v387 = vld [vmem:[%s2 + $0x38] sm:$0xff]
      %v388 = vld [vmem:[%s2 + $0x40] sm:$0xff]
      %v389 = vld [vmem:[%s2 + $0x48] sm:$0xff]
      %v390 = vld [vmem:[%s2 + $0x50] sm:$0xff]
      %v391 = vld [vmem:[%s2 + $0x58] sm:$0xff]
      %v392 = vld [vmem:[%s2 + $0x60] sm:$0xff]
      %v393 = vld [vmem:[%s2 + $0x68] sm:$0xff]
      %v394 = vld [vmem:[%s2 + $0x70] sm:$0xff]
      %v395 = vld [vmem:[%s2 + $0x78] sm:$0xff]
      %v396 = vld [vmem:[%s3] sm:$0xff]
      %v397 = vld [vmem:[%s3 + $0x8] sm:$0xff]
      %v398 = vld [vmem:[%s3 + $0x10] sm:$0xff]
      %v399 = vld [vmem:[%s3 + $0x18] sm:$0xff]
      %v400 = vld [vmem:[%s3 + $0x20] sm:$0xff]
      %v401 = vld [vmem:[%s3 + $0x28] sm:$0xff]
      %v402 = vld [vmem:[%s3 + $0x30] sm:$0xff]
      %v403 = vld [vmem:[%s3 + $0x38] sm:$0xff]
      %v404 = vld [vmem:[%s3 + $0x40] sm:$0x1]
      %v405 = vld [vmem:[%s3 + $0x48] sm:$0x1]
      %v406 = vld [vmem:[%s3 + $0x50] sm:$0x1]
      %v407 = vld [vmem:[%s3 + $0x58] sm:$0x1]
      %v408 = vld [vmem:[%s3 + $0x60] sm:$0x1]
      %v409 = vld [vmem:[%s3 + $0x68] sm:$0x1]
      %v410 = vld [vmem:[%s3 + $0x70] sm:$0x1]
      %v411 = vld [vmem:[%s3 + $0x78] sm:$0x1]
      %v412 = vld [vmem:[%s369] sm:$0xff]
      %v413 = vld [vmem:[%s369 + $0x8] sm:$0xff]
      %v414 = vld [vmem:[%s369 + $0x10] sm:$0xff]
      %v415 = vld [vmem:[%s369 + $0x18] sm:$0xff]
      %v416 = vld [vmem:[%s4] sm:$0xf]
      %v418 = vcombine.high %v415, %v415
      %419 = vrot.lane.b32.xlu0 %v418, 66
      %v420 = vpop.permute.xlu0 %419
      %v425 = vcombine.high %v412, %v412
      %v426 = vcombine.high %v413, %v413
      %v427 = vcombine.high %v414, %v414
      %428 = vrot.lane.b32.xlu0 %v412, 66
      %v429 = vpop.permute.xlu0 %428
      %430 = vrot.lane.b32.xlu0 %v425, 66
      %v431 = vpop.permute.xlu0 %430
      %432 = vrot.lane.b32.xlu0 %v413, 66
      %v433 = vpop.permute.xlu0 %432
      %434 = vrot.lane.b32.xlu0 %v426, 66
      %v435 = vpop.permute.xlu0 %434
      %436 = vrot.lane.b32.xlu0 %v414, 66
      %v437 = vpop.permute.xlu0 %436
      %438 = vrot.lane.b32.xlu0 %v427, 66
      %v439 = vpop.permute.xlu0 %438
      %440 = vrot.lane.b32.xlu0 %v415, 66
      %v441 = vpop.permute.xlu0 %440
      %vm442 = vcmask 539648
      %v443 = vsel %vm442, %v429, %v431
      %v444 = vsel %vm442, %v431, %v433
      %v445 = vsel %vm442, %v433, %v435
      %v446 = vsel %vm442, %v435, %v437
      %v447 = vsel %vm442, %v437, %v439
      %v448 = vsel %vm442, %v439, %v441
      %v449 = vsel %vm442, %v441, %v420
      %v458 = vsel %vm442, %v420, %v429
      %v459 = vlaneseq
      %v460 = vshrl.u32 %v459, 7
      %v461 = vsub.s32 0, %v460
      %v462 = vrot.slane %v380, %v461
      %v463 = vlaneseq
      %v464 = vshrl.u32 %v463, 7
      %v465 = vsub.s32 0, %v464
      %v466 = vrot.slane %v381, %v465
      %v467 = vlaneseq
      %v468 = vshrl.u32 %v467, 7
      %v469 = vsub.s32 0, %v468
      %v470 = vrot.slane %v382, %v469
      %v471 = vlaneseq
      %v472 = vshrl.u32 %v471, 7
      %v473 = vsub.s32 0, %v472
      %v474 = vrot.slane %v383, %v473
      %v475 = vlaneseq
      %v476 = vshrl.u32 %v475, 7
      %v477 = vsub.s32 0, %v476
      %v478 = vrot.slane %v384, %v477
      %v479 = vlaneseq
      %v480 = vshrl.u32 %v479, 7
      %v481 = vsub.s32 0, %v480
      %v482 = vrot.slane %v385, %v481
      %v483 = vlaneseq
      %v484 = vshrl.u32 %v483, 7
      %v485 = vsub.s32 0, %v484
      %v486 = vrot.slane %v386, %v485
      %v487 = vlaneseq
      %v488 = vshrl.u32 %v487, 7
      %v489 = vsub.s32 0, %v488
      %v490 = vrot.slane %v387, %v489
      %v491 = vmul.f32 %v458, %v462
      %v492 = vmul.f32 %v443, %v466
      %v493 = vmul.f32 %v444, %v470
      %v494 = vmul.f32 %v445, %v474
      %v495 = vmul.f32 %v446, %v478
      %v496 = vmul.f32 %v447, %v482
      %v497 = vmul.f32 %v448, %v486
      %v498 = vmul.f32 %v449, %v490
      %499 = vrot.lane.b32.xlu0 %v418, 65
      %v500 = vpop.permute.xlu0 %499
      %502 = vrot.lane.b32.xlu0 %v412, 65
      %v503 = vpop.permute.xlu0 %502
      %504 = vrot.lane.b32.xlu0 %v425, 65
      %v505 = vpop.permute.xlu0 %504
      %506 = vrot.lane.b32.xlu0 %v413, 65
      %v507 = vpop.permute.xlu0 %506
      %508 = vrot.lane.b32.xlu0 %v426, 65
      %v509 = vpop.permute.xlu0 %508
      %510 = vrot.lane.b32.xlu0 %v414, 65
      %v511 = vpop.permute.xlu0 %510
      %512 = vrot.lane.b32.xlu0 %v427, 65
      %v513 = vpop.permute.xlu0 %512
      %514 = vrot.lane.b32.xlu0 %v415, 65
      %v515 = vpop.permute.xlu0 %514
      %vm516 = vcmask 531456
      %v517 = vsel %vm516, %v503, %v505
      %v518 = vsel %vm516, %v505, %v507
      %v519 = vsel %vm516, %v507, %v509
      %v520 = vsel %vm516, %v509, %v511
      %v521 = vsel %vm516, %v511, %v513
      %v522 = vsel %vm516, %v513, %v515
      %v523 = vsel %vm516, %v515, %v500
      %v532 = vsel %vm516, %v500, %v503
      %v533 = vlaneseq
      %v534 = vshrl.u32 %v533, 7
      %v535 = vsub.s32 1, %v534
      %v536 = vrot.slane %v380, %v535
      %v537 = vlaneseq
      %v538 = vshrl.u32 %v537, 7
      %v539 = vsub.s32 1, %v538
      %v540 = vrot.slane %v381, %v539
      %v541 = vlaneseq
      %v542 = vshrl.u32 %v541, 7
      %v543 = vsub.s32 1, %v542
      %v544 = vrot.slane %v382, %v543
      %v545 = vlaneseq
      %v546 = vshrl.u32 %v545, 7
      %v547 = vsub.s32 1, %v546
      %v548 = vrot.slane %v383, %v547
      %v549 = vlaneseq
      %v550 = vshrl.u32 %v549, 7
      %v551 = vsub.s32 1, %v550
      %v552 = vrot.slane %v384, %v551
      %v553 = vlaneseq
      %v554 = vshrl.u32 %v553, 7
      %v555 = vsub.s32 1, %v554
      %v556 = vrot.slane %v385, %v555
      %v557 = vlaneseq
      %v558 = vshrl.u32 %v557, 7
      %v559 = vsub.s32 1, %v558
      %v560 = vrot.slane %v386, %v559
      %v561 = vlaneseq
      %v562 = vshrl.u32 %v561, 7
      %v563 = vsub.s32 1, %v562
      %v564 = vrot.slane %v387, %v563
      %v565 = vmul.f32 %v532, %v536
      %v566 = vmul.f32 %v517, %v540
      %v567 = vmul.f32 %v518, %v544
      %v568 = vmul.f32 %v519, %v548
      %v569 = vmul.f32 %v520, %v552
      %v570 = vmul.f32 %v521, %v556
      %v571 = vmul.f32 %v522, %v560
      %v572 = vmul.f32 %v523, %v564
      %573 = vrot.lane.b32.xlu0 %v418, 64
      %v574 = vpop.permute.xlu0 %573
      %576 = vrot.lane.b32.xlu0 %v412, 64
      %v577 = vpop.permute.xlu0 %576
      %578 = vrot.lane.b32.xlu0 %v425, 64
      %v579 = vpop.permute.xlu0 %578
      %580 = vrot.lane.b32.xlu0 %v413, 64
      %v581 = vpop.permute.xlu0 %580
      %582 = vrot.lane.b32.xlu0 %v426, 64
      %v583 = vpop.permute.xlu0 %582
      %584 = vrot.lane.b32.xlu0 %v414, 64
      %v585 = vpop.permute.xlu0 %584
      %586 = vrot.lane.b32.xlu0 %v427, 64
      %v587 = vpop.permute.xlu0 %586
      %588 = vrot.lane.b32.xlu0 %v415, 64
      %v589 = vpop.permute.xlu0 %588
      %vm590 = vcmask 523264
      %v591 = vsel %vm590, %v577, %v579
      %v592 = vsel %vm590, %v579, %v581
      %v593 = vsel %vm590, %v581, %v583
      %v594 = vsel %vm590, %v583, %v585
      %v595 = vsel %vm590, %v585, %v587
      %v596 = vsel %vm590, %v587, %v589
      %v597 = vsel %vm590, %v589, %v574
      %v606 = vsel %vm590, %v574, %v577
      %v607 = vlaneseq
      %v608 = vshrl.u32 %v607, 7
      %v609 = vsub.s32 2, %v608
      %v610 = vrot.slane %v380, %v609
      %v611 = vlaneseq
      %v612 = vshrl.u32 %v611, 7
      %v613 = vsub.s32 2, %v612
      %v614 = vrot.slane %v381, %v613
      %v615 = vlaneseq
      %v616 = vshrl.u32 %v615, 7
      %v617 = vsub.s32 2, %v616
      %v618 = vrot.slane %v382, %v617
      %v619 = vlaneseq
      %v620 = vshrl.u32 %v619, 7
      %v621 = vsub.s32 2, %v620
      %v622 = vrot.slane %v383, %v621
      %v623 = vlaneseq
      %v624 = vshrl.u32 %v623, 7
      %v625 = vsub.s32 2, %v624
      %v626 = vrot.slane %v384, %v625
      %v627 = vlaneseq
      %v628 = vshrl.u32 %v627, 7
      %v629 = vsub.s32 2, %v628
      %v630 = vrot.slane %v385, %v629
      %v631 = vlaneseq
      %v632 = vshrl.u32 %v631, 7
      %v633 = vsub.s32 2, %v632
      %v634 = vrot.slane %v386, %v633
      %v635 = vlaneseq
      %v636 = vshrl.u32 %v635, 7
      %v637 = vsub.s32 2, %v636
      %v638 = vrot.slane %v387, %v637
      %v639 = vmul.f32 %v606, %v610
      %v640 = vmul.f32 %v591, %v614
      %v641 = vmul.f32 %v592, %v618
      %v642 = vmul.f32 %v593, %v622
      %v643 = vmul.f32 %v594, %v626
      %v644 = vmul.f32 %v595, %v630
      %v645 = vmul.f32 %v596, %v634
      %v646 = vmul.f32 %v597, %v638
      %647 = vrot.lane.b32.xlu0 %v418, 63
      %v648 = vpop.permute.xlu0 %647
      %650 = vrot.lane.b32.xlu0 %v412, 63
      %v651 = vpop.permute.xlu0 %650
      %652 = vrot.lane.b32.xlu0 %v425, 63
      %v653 = vpop.permute.xlu0 %652
      %654 = vrot.lane.b32.xlu0 %v413, 63
      %v655 = vpop.permute.xlu0 %654
      %656 = vrot.lane.b32.xlu0 %v426, 63
      %v657 = vpop.permute.xlu0 %656
      %658 = vrot.lane.b32.xlu0 %v414, 63
      %v659 = vpop.permute.xlu0 %658
      %660 = vrot.lane.b32.xlu0 %v427, 63
      %v661 = vpop.permute.xlu0 %660
      %662 = vrot.lane.b32.xlu0 %v415, 63
      %v663 = vpop.permute.xlu0 %662
      %vm664 = vcmask 515072
      %v665 = vsel %vm664, %v651, %v653
      %v666 = vsel %vm664, %v653, %v655
      %v667 = vsel %vm664, %v655, %v657
      %v668 = vsel %vm664, %v657, %v659
      %v669 = vsel %vm664, %v659, %v661
      %v670 = vsel %vm664, %v661, %v663
      %v671 = vsel %vm664, %v663, %v648
      %v680 = vsel %vm664, %v648, %v651
      %v681 = vlaneseq
      %v682 = vshrl.u32 %v681, 7
      %v683 = vsub.s32 3, %v682
      %v684 = vrot.slane %v380, %v683
      %v685 = vlaneseq
      %v686 = vshrl.u32 %v685, 7
      %v687 = vsub.s32 3, %v686
      %v688 = vrot.slane %v381, %v687
      %v689 = vlaneseq
      %v690 = vshrl.u32 %v689, 7
      %v691 = vsub.s32 3, %v690
      %v692 = vrot.slane %v382, %v691
      %v693 = vlaneseq
      %v694 = vshrl.u32 %v693, 7
      %v695 = vsub.s32 3, %v694
      %v696 = vrot.slane %v383, %v695
      %v697 = vlaneseq
      %v698 = vshrl.u32 %v697, 7
      %v699 = vsub.s32 3, %v698
      %v700 = vrot.slane %v384, %v699
      %v701 = vlaneseq
      %v702 = vshrl.u32 %v701, 7
      %v703 = vsub.s32 3, %v702
      %v704 = vrot.slane %v385, %v703
      %v705 = vlaneseq
      %v706 = vshrl.u32 %v705, 7
      %v707 = vsub.s32 3, %v706
      %v708 = vrot.slane %v386, %v707
      %v709 = vlaneseq
      %v710 = vshrl.u32 %v709, 7
      %v711 = vsub.s32 3, %v710
      %v712 = vrot.slane %v387, %v711
      %v713 = vmul.f32 %v680, %v684
      %v714 = vmul.f32 %v665, %v688
      %v715 = vmul.f32 %v666, %v692
      %v716 = vmul.f32 %v667, %v696
      %v717 = vmul.f32 %v668, %v700
      %v718 = vmul.f32 %v669, %v704
      %v719 = vmul.f32 %v670, %v708
      %v720 = vmul.f32 %v671, %v712
      %721 = vrot.lane.b32.xlu0 %v418, 34
      %v722 = vpop.permute.xlu0 %721
      %724 = vrot.lane.b32.xlu0 %v412, 34
      %v725 = vpop.permute.xlu0 %724
      %726 = vrot.lane.b32.xlu0 %v425, 34
      %v727 = vpop.permute.xlu0 %726
      %728 = vrot.lane.b32.xlu0 %v413, 34
      %v729 = vpop.permute.xlu0 %728
      %730 = vrot.lane.b32.xlu0 %v426, 34
      %v731 = vpop.permute.xlu0 %730
      %732 = vrot.lane.b32.xlu0 %v414, 34
      %v733 = vpop.permute.xlu0 %732
      %734 = vrot.lane.b32.xlu0 %v427, 34
      %v735 = vpop.permute.xlu0 %734
      %736 = vrot.lane.b32.xlu0 %v415, 34
      %v737 = vpop.permute.xlu0 %736
      %vm738 = vcmask 277504
      %v739 = vsel %vm738, %v725, %v727
      %v740 = vsel %vm738, %v727, %v729
      %v741 = vsel %vm738, %v729, %v731
      %v742 = vsel %vm738, %v731, %v733
      %v743 = vsel %vm738, %v733, %v735
      %v744 = vsel %vm738, %v735, %v737
      %v745 = vsel %vm738, %v737, %v722
      %v754 = vsel %vm738, %v722, %v725
      %v755 = vlaneseq
      %v756 = vshrl.u32 %v755, 7
      %v757 = vsub.s32 4, %v756
      %v758 = vrot.slane %v380, %v757
      %v759 = vlaneseq
      %v760 = vshrl.u32 %v759, 7
      %v761 = vsub.s32 4, %v760
      %v762 = vrot.slane %v381, %v761
      %v763 = vlaneseq
      %v764 = vshrl.u32 %v763, 7
      %v765 = vsub.s32 4, %v764
      %v766 = vrot.slane %v382, %v765
      %v767 = vlaneseq
      %v768 = vshrl.u32 %v767, 7
      %v769 = vsub.s32 4, %v768
      %v770 = vrot.slane %v383, %v769
      %v771 = vlaneseq
      %v772 = vshrl.u32 %v771, 7
      %v773 = vsub.s32 4, %v772
      %v774 = vrot.slane %v384, %v773
      %v775 = vlaneseq
      %v776 = vshrl.u32 %v775, 7
      %v777 = vsub.s32 4, %v776
      %v778 = vrot.slane %v385, %v777
      %v779 = vlaneseq
      %v780 = vshrl.u32 %v779, 7
      %v781 = vsub.s32 4, %v780
      %v782 = vrot.slane %v386, %v781
      %v783 = vlaneseq
      %v784 = vshrl.u32 %v783, 7
      %v785 = vsub.s32 4, %v784
      %v786 = vrot.slane %v387, %v785
      %v787 = vmul.f32 %v754, %v758
      %v788 = vmul.f32 %v739, %v762
      %v789 = vmul.f32 %v740, %v766
      %v790 = vmul.f32 %v741, %v770
      %v791 = vmul.f32 %v742, %v774
      %v792 = vmul.f32 %v743, %v778
      %v793 = vmul.f32 %v744, %v782
      %v794 = vmul.f32 %v745, %v786
      %795 = vrot.lane.b32.xlu0 %v418, 33
      %v796 = vpop.permute.xlu0 %795
      %798 = vrot.lane.b32.xlu0 %v412, 33
      %v799 = vpop.permute.xlu0 %798
      %800 = vrot.lane.b32.xlu0 %v425, 33
      %v801 = vpop.permute.xlu0 %800
      %802 = vrot.lane.b32.xlu0 %v413, 33
      %v803 = vpop.permute.xlu0 %802
      %804 = vrot.lane.b32.xlu0 %v426, 33
      %v805 = vpop.permute.xlu0 %804
      %806 = vrot.lane.b32.xlu0 %v414, 33
      %v807 = vpop.permute.xlu0 %806
      %808 = vrot.lane.b32.xlu0 %v427, 33
      %v809 = vpop.permute.xlu0 %808
      %810 = vrot.lane.b32.xlu0 %v415, 33
      %v811 = vpop.permute.xlu0 %810
      %vm812 = vcmask 269312
      %v813 = vsel %vm812, %v799, %v801
      %v814 = vsel %vm812, %v801, %v803
      %v815 = vsel %vm812, %v803, %v805
      %v816 = vsel %vm812, %v805, %v807
      %v817 = vsel %vm812, %v807, %v809
      %v818 = vsel %vm812, %v809, %v811
      %v819 = vsel %vm812, %v811, %v796
      %v828 = vsel %vm812, %v796, %v799
      %v829 = vlaneseq
      %v830 = vshrl.u32 %v829, 7
      %v831 = vsub.s32 5, %v830
      %v832 = vrot.slane %v380, %v831
      %v833 = vlaneseq
      %v834 = vshrl.u32 %v833, 7
      %v835 = vsub.s32 5, %v834
      %v836 = vrot.slane %v381, %v835
      %v837 = vlaneseq
      %v838 = vshrl.u32 %v837, 7
      %v839 = vsub.s32 5, %v838
      %v840 = vrot.slane %v382, %v839
      %v841 = vlaneseq
      %v842 = vshrl.u32 %v841, 7
      %v843 = vsub.s32 5, %v842
      %v844 = vrot.slane %v383, %v843
      %v845 = vlaneseq
      %v846 = vshrl.u32 %v845, 7
      %v847 = vsub.s32 5, %v846
      %v848 = vrot.slane %v384, %v847
      %v849 = vlaneseq
      %v850 = vshrl.u32 %v849, 7
      %v851 = vsub.s32 5, %v850
      %v852 = vrot.slane %v385, %v851
      %v853 = vlaneseq
      %v854 = vshrl.u32 %v853, 7
      %v855 = vsub.s32 5, %v854
      %v856 = vrot.slane %v386, %v855
      %v857 = vlaneseq
      %v858 = vshrl.u32 %v857, 7
      %v859 = vsub.s32 5, %v858
      %v860 = vrot.slane %v387, %v859
      %v861 = vmul.f32 %v828, %v832
      %v862 = vmul.f32 %v813, %v836
      %v863 = vmul.f32 %v814, %v840
      %v864 = vmul.f32 %v815, %v844
      %v865 = vmul.f32 %v816, %v848
      %v866 = vmul.f32 %v817, %v852
      %v867 = vmul.f32 %v818, %v856
      %v868 = vmul.f32 %v819, %v860
      %869 = vrot.lane.b32.xlu0 %v418, 32
      %v870 = vpop.permute.xlu0 %869
      %872 = vrot.lane.b32.xlu0 %v412, 32
      %v873 = vpop.permute.xlu0 %872
      %874 = vrot.lane.b32.xlu0 %v425, 32
      %v875 = vpop.permute.xlu0 %874
      %876 = vrot.lane.b32.xlu0 %v413, 32
      %v877 = vpop.permute.xlu0 %876
      %878 = vrot.lane.b32.xlu0 %v426, 32
      %v879 = vpop.permute.xlu0 %878
      %880 = vrot.lane.b32.xlu0 %v414, 32
      %v881 = vpop.permute.xlu0 %880
      %882 = vrot.lane.b32.xlu0 %v427, 32
      %v883 = vpop.permute.xlu0 %882
      %884 = vrot.lane.b32.xlu0 %v415, 32
      %v885 = vpop.permute.xlu0 %884
      %vm886 = vcmask 261120
      %v887 = vsel %vm886, %v873, %v875
      %v888 = vsel %vm886, %v875, %v877
      %v889 = vsel %vm886, %v877, %v879
      %v890 = vsel %vm886, %v879, %v881
      %v891 = vsel %vm886, %v881, %v883
      %v892 = vsel %vm886, %v883, %v885
      %v893 = vsel %vm886, %v885, %v870
      %v902 = vsel %vm886, %v870, %v873
      %v903 = vlaneseq
      %v904 = vshrl.u32 %v903, 7
      %v905 = vsub.s32 6, %v904
      %v906 = vrot.slane %v380, %v905
      %v907 = vlaneseq
      %v908 = vshrl.u32 %v907, 7
      %v909 = vsub.s32 6, %v908
      %v910 = vrot.slane %v381, %v909
      %v911 = vlaneseq
      %v912 = vshrl.u32 %v911, 7
      %v913 = vsub.s32 6, %v912
      %v914 = vrot.slane %v382, %v913
      %v915 = vlaneseq
      %v916 = vshrl.u32 %v915, 7
      %v917 = vsub.s32 6, %v916
      %v918 = vrot.slane %v383, %v917
      %v919 = vlaneseq
      %v920 = vshrl.u32 %v919, 7
      %v921 = vsub.s32 6, %v920
      %v922 = vrot.slane %v384, %v921
      %v923 = vlaneseq
      %v924 = vshrl.u32 %v923, 7
      %v925 = vsub.s32 6, %v924
      %v926 = vrot.slane %v385, %v925
      %v927 = vlaneseq
      %v928 = vshrl.u32 %v927, 7
      %v929 = vsub.s32 6, %v928
      %v930 = vrot.slane %v386, %v929
      %v931 = vlaneseq
      %v932 = vshrl.u32 %v931, 7
      %v933 = vsub.s32 6, %v932
      %v934 = vrot.slane %v387, %v933
      %v935 = vmul.f32 %v902, %v906
      %v936 = vmul.f32 %v887, %v910
      %v937 = vmul.f32 %v888, %v914
      %v938 = vmul.f32 %v889, %v918
      %v939 = vmul.f32 %v890, %v922
      %v940 = vmul.f32 %v891, %v926
      %v941 = vmul.f32 %v892, %v930
      %v942 = vmul.f32 %v893, %v934
      %943 = vrot.lane.b32.xlu0 %v418, 31
      %v944 = vpop.permute.xlu0 %943
      %946 = vrot.lane.b32.xlu0 %v412, 31
      %v947 = vpop.permute.xlu0 %946
      %948 = vrot.lane.b32.xlu0 %v425, 31
      %v949 = vpop.permute.xlu0 %948
      %950 = vrot.lane.b32.xlu0 %v413, 31
      %v951 = vpop.permute.xlu0 %950
      %952 = vrot.lane.b32.xlu0 %v426, 31
      %v953 = vpop.permute.xlu0 %952
      %954 = vrot.lane.b32.xlu0 %v414, 31
      %v955 = vpop.permute.xlu0 %954
      %956 = vrot.lane.b32.xlu0 %v427, 31
      %v957 = vpop.permute.xlu0 %956
      %958 = vrot.lane.b32.xlu0 %v415, 31
      %v959 = vpop.permute.xlu0 %958
      %vm960 = vcmask 252928
      %v961 = vsel %vm960, %v947, %v949
      %v962 = vsel %vm960, %v949, %v951
      %v963 = vsel %vm960, %v951, %v953
      %v964 = vsel %vm960, %v953, %v955
      %v965 = vsel %vm960, %v955, %v957
      %v966 = vsel %vm960, %v957, %v959
      %v967 = vsel %vm960, %v959, %v944
      %v976 = vsel %vm960, %v944, %v947
      %v977 = vlaneseq
      %v978 = vshrl.u32 %v977, 7
      %v979 = vsub.s32 7, %v978
      %v980 = vrot.slane %v380, %v979
      %v981 = vlaneseq
      %v982 = vshrl.u32 %v981, 7
      %v983 = vsub.s32 7, %v982
      %v984 = vrot.slane %v381, %v983
      %v985 = vlaneseq
      %v986 = vshrl.u32 %v985, 7
      %v987 = vsub.s32 7, %v986
      %v988 = vrot.slane %v382, %v987
      %v989 = vlaneseq
      %v990 = vshrl.u32 %v989, 7
      %v991 = vsub.s32 7, %v990
      %v992 = vrot.slane %v383, %v991
      %v993 = vlaneseq
      %v994 = vshrl.u32 %v993, 7
      %v995 = vsub.s32 7, %v994
      %v996 = vrot.slane %v384, %v995
      %v997 = vlaneseq
      %v998 = vshrl.u32 %v997, 7
      %v999 = vsub.s32 7, %v998
      %v1000 = vrot.slane %v385, %v999
      %v1001 = vlaneseq
      %v1002 = vshrl.u32 %v1001, 7
      %v1003 = vsub.s32 7, %v1002
      %v1004 = vrot.slane %v386, %v1003
      %v1005 = vlaneseq
      %v1006 = vshrl.u32 %v1005, 7
      %v1007 = vsub.s32 7, %v1006
      %v1008 = vrot.slane %v387, %v1007
      %v1009 = vmul.f32 %v976, %v980
      %v1010 = vmul.f32 %v961, %v984
      %v1011 = vmul.f32 %v962, %v988
      %v1012 = vmul.f32 %v963, %v992
      %v1013 = vmul.f32 %v964, %v996
      %v1014 = vmul.f32 %v965, %v1000
      %v1015 = vmul.f32 %v966, %v1004
      %v1016 = vmul.f32 %v967, %v1008
      %1017 = vrot.lane.b32.xlu0 %v418, 2
      %v1018 = vpop.permute.xlu0 %1017
      %1020 = vrot.lane.b32.xlu0 %v412, 2
      %v1021 = vpop.permute.xlu0 %1020
      %1022 = vrot.lane.b32.xlu0 %v425, 2
      %v1023 = vpop.permute.xlu0 %1022
      %1024 = vrot.lane.b32.xlu0 %v413, 2
      %v1025 = vpop.permute.xlu0 %1024
      %1026 = vrot.lane.b32.xlu0 %v426, 2
      %v1027 = vpop.permute.xlu0 %1026
      %1028 = vrot.lane.b32.xlu0 %v414, 2
      %v1029 = vpop.permute.xlu0 %1028
      %1030 = vrot.lane.b32.xlu0 %v427, 2
      %v1031 = vpop.permute.xlu0 %1030
      %1032 = vrot.lane.b32.xlu0 %v415, 2
      %v1033 = vpop.permute.xlu0 %1032
      %vm1034 = vcmask 15360
      %v1035 = vsel %vm1034, %v1021, %v1023
      %v1036 = vsel %vm1034, %v1023, %v1025
      %v1037 = vsel %vm1034, %v1025, %v1027
      %v1038 = vsel %vm1034, %v1027, %v1029
      %v1039 = vsel %vm1034, %v1029, %v1031
      %v1040 = vsel %vm1034, %v1031, %v1033
      %v1041 = vsel %vm1034, %v1033, %v1018
      %v1050 = vsel %vm1034, %v1018, %v1021
      %v1051 = vlaneseq
      %v1052 = vshrl.u32 %v1051, 7
      %v1053 = vsub.s32 0, %v1052
      %v1054 = vrot.slane %v388, %v1053
      %v1055 = vlaneseq
      %v1056 = vshrl.u32 %v1055, 7
      %v1057 = vsub.s32 0, %v1056
      %v1058 = vrot.slane %v389, %v1057
      %v1059 = vlaneseq
      %v1060 = vshrl.u32 %v1059, 7
      %v1061 = vsub.s32 0, %v1060
      %v1062 = vrot.slane %v390, %v1061
      %v1063 = vlaneseq
      %v1064 = vshrl.u32 %v1063, 7
      %v1065 = vsub.s32 0, %v1064
      %v1066 = vrot.slane %v391, %v1065
      %v1067 = vlaneseq
      %v1068 = vshrl.u32 %v1067, 7
      %v1069 = vsub.s32 0, %v1068
      %v1070 = vrot.slane %v392, %v1069
      %v1071 = vlaneseq
      %v1072 = vshrl.u32 %v1071, 7
      %v1073 = vsub.s32 0, %v1072
      %v1074 = vrot.slane %v393, %v1073
      %v1075 = vlaneseq
      %v1076 = vshrl.u32 %v1075, 7
      %v1077 = vsub.s32 0, %v1076
      %v1078 = vrot.slane %v394, %v1077
      %v1079 = vlaneseq
      %v1080 = vshrl.u32 %v1079, 7
      %v1081 = vsub.s32 0, %v1080
      %v1082 = vrot.slane %v395, %v1081
      %v1083 = vmul.f32 %v1050, %v1054
      %v1084 = vmul.f32 %v1035, %v1058
      %v1085 = vmul.f32 %v1036, %v1062
      %v1086 = vmul.f32 %v1037, %v1066
      %v1087 = vmul.f32 %v1038, %v1070
      %v1088 = vmul.f32 %v1039, %v1074
      %v1089 = vmul.f32 %v1040, %v1078
      %v1090 = vmul.f32 %v1041, %v1082
      %1091 = vrot.lane.b32.xlu0 %v418, 1
      %v1092 = vpop.permute.xlu0 %1091
      %1094 = vrot.lane.b32.xlu0 %v412, 1
      %v1095 = vpop.permute.xlu0 %1094
      %1096 = vrot.lane.b32.xlu0 %v425, 1
      %v1097 = vpop.permute.xlu0 %1096
      %1098 = vrot.lane.b32.xlu0 %v413, 1
      %v1099 = vpop.permute.xlu0 %1098
      %1100 = vrot.lane.b32.xlu0 %v426, 1
      %v1101 = vpop.permute.xlu0 %1100
      %1102 = vrot.lane.b32.xlu0 %v414, 1
      %v1103 = vpop.permute.xlu0 %1102
      %1104 = vrot.lane.b32.xlu0 %v427, 1
      %v1105 = vpop.permute.xlu0 %1104
      %1106 = vrot.lane.b32.xlu0 %v415, 1
      %v1107 = vpop.permute.xlu0 %1106
      %vm1108 = vcmask 7168
      %v1109 = vsel %vm1108, %v1095, %v1097
      %v1110 = vsel %vm1108, %v1097, %v1099
      %v1111 = vsel %vm1108, %v1099, %v1101
      %v1112 = vsel %vm1108, %v1101, %v1103
      %v1113 = vsel %vm1108, %v1103, %v1105
      %v1114 = vsel %vm1108, %v1105, %v1107
      %v1115 = vsel %vm1108, %v1107, %v1092
      %v1124 = vsel %vm1108, %v1092, %v1095
      %v1125 = vlaneseq
      %v1126 = vshrl.u32 %v1125, 7
      %v1127 = vsub.s32 1, %v1126
      %v1128 = vrot.slane %v388, %v1127
      %v1129 = vlaneseq
      %v1130 = vshrl.u32 %v1129, 7
      %v1131 = vsub.s32 1, %v1130
      %v1132 = vrot.slane %v389, %v1131
      %v1133 = vlaneseq
      %v1134 = vshrl.u32 %v1133, 7
      %v1135 = vsub.s32 1, %v1134
      %v1136 = vrot.slane %v390, %v1135
      %v1137 = vlaneseq
      %v1138 = vshrl.u32 %v1137, 7
      %v1139 = vsub.s32 1, %v1138
      %v1140 = vrot.slane %v391, %v1139
      %v1141 = vlaneseq
      %v1142 = vshrl.u32 %v1141, 7
      %v1143 = vsub.s32 1, %v1142
      %v1144 = vrot.slane %v392, %v1143
      %v1145 = vlaneseq
      %v1146 = vshrl.u32 %v1145, 7
      %v1147 = vsub.s32 1, %v1146
      %v1148 = vrot.slane %v393, %v1147
      %v1149 = vlaneseq
      %v1150 = vshrl.u32 %v1149, 7
      %v1151 = vsub.s32 1, %v1150
      %v1152 = vrot.slane %v394, %v1151
      %v1153 = vlaneseq
      %v1154 = vshrl.u32 %v1153, 7
      %v1155 = vsub.s32 1, %v1154
      %v1156 = vrot.slane %v395, %v1155
      %v1157 = vmul.f32 %v1124, %v1128
      %v1158 = vmul.f32 %v1109, %v1132
      %v1159 = vmul.f32 %v1110, %v1136
      %v1160 = vmul.f32 %v1111, %v1140
      %v1161 = vmul.f32 %v1112, %v1144
      %v1162 = vmul.f32 %v1113, %v1148
      %v1163 = vmul.f32 %v1114, %v1152
      %v1164 = vmul.f32 %v1115, %v1156
      %v1165 = vlaneseq
      %v1166 = vshrl.u32 %v1165, 7
      %v1167 = vsub.s32 2, %v1166
      %v1168 = vrot.slane %v388, %v1167
      %v1169 = vlaneseq
      %v1170 = vshrl.u32 %v1169, 7
      %v1171 = vsub.s32 2, %v1170
      %v1172 = vrot.slane %v389, %v1171
      %v1173 = vlaneseq
      %v1174 = vshrl.u32 %v1173, 7
      %v1175 = vsub.s32 2, %v1174
      %v1176 = vrot.slane %v390, %v1175
      %v1177 = vlaneseq
      %v1178 = vshrl.u32 %v1177, 7
      %v1179 = vsub.s32 2, %v1178
      %v1180 = vrot.slane %v391, %v1179
      %v1181 = vlaneseq
      %v1182 = vshrl.u32 %v1181, 7
      %v1183 = vsub.s32 2, %v1182
      %v1184 = vrot.slane %v392, %v1183
      %v1185 = vlaneseq
      %v1186 = vshrl.u32 %v1185, 7
      %v1187 = vsub.s32 2, %v1186
      %v1188 = vrot.slane %v393, %v1187
      %v1189 = vlaneseq
      %v1190 = vshrl.u32 %v1189, 7
      %v1191 = vsub.s32 2, %v1190
      %v1192 = vrot.slane %v394, %v1191
      %v1193 = vlaneseq
      %v1194 = vshrl.u32 %v1193, 7
      %v1195 = vsub.s32 2, %v1194
      %v1196 = vrot.slane %v395, %v1195
      %v1205 = vcombine.low %v1168, %v1172
      %v1206 = vcombine.low %v1176, %v1180
      %v1207 = vcombine.low %v1184, %v1188
      %v1208 = vcombine.low %v1192, %v1196
      %v1213 = vmul.f32 %v412, %v1205
      %v1214 = vmul.f32 %v413, %v1206
      %v1215 = vmul.f32 %v414, %v1207
      %v1216 = vmul.f32 %v415, %v1208
      %1217 = vrot.lane.b32.xlu0 %v412, 127
      %v1218 = vpop.permute.xlu0 %1217
      %1219 = vrot.lane.b32.xlu0 %v425, 127
      %v1220 = vpop.permute.xlu0 %1219
      %1221 = vrot.lane.b32.xlu0 %v413, 127
      %v1222 = vpop.permute.xlu0 %1221
      %1223 = vrot.lane.b32.xlu0 %v426, 127
      %v1224 = vpop.permute.xlu0 %1223
      %1225 = vrot.lane.b32.xlu0 %v414, 127
      %v1226 = vpop.permute.xlu0 %1225
      %1227 = vrot.lane.b32.xlu0 %v427, 127
      %v1228 = vpop.permute.xlu0 %1227
      %1229 = vrot.lane.b32.xlu0 %v415, 127
      %v1230 = vpop.permute.xlu0 %1229
      %1231 = vrot.lane.b32.xlu0 %v418, 127
      %v1232 = vpop.permute.xlu0 %1231
      %vm1233 = vcmask 1039360
      %v1234 = vsel %vm1233, %v1218, %v1220
      %v1235 = vsel %vm1233, %v1220, %v1222
      %v1236 = vsel %vm1233, %v1222, %v1224
      %v1237 = vsel %vm1233, %v1224, %v1226
      %v1238 = vsel %vm1233, %v1226, %v1228
      %v1239 = vsel %vm1233, %v1228, %v1230
      %v1240 = vsel %vm1233, %v1230, %v1232
      %v1250 = vsel %vm1233, %v1232, %v1218
      %v1251 = vlaneseq
      %v1252 = vshrl.u32 %v1251, 7
      %v1253 = vsub.s32 3, %v1252
      %v1254 = vrot.slane %v388, %v1253
      %v1255 = vlaneseq
      %v1256 = vshrl.u32 %v1255, 7
      %v1257 = vsub.s32 3, %v1256
      %v1258 = vrot.slane %v389, %v1257
      %v1259 = vlaneseq
      %v1260 = vshrl.u32 %v1259, 7
      %v1261 = vsub.s32 3, %v1260
      %v1262 = vrot.slane %v390, %v1261
      %v1263 = vlaneseq
      %v1264 = vshrl.u32 %v1263, 7
      %v1265 = vsub.s32 3, %v1264
      %v1266 = vrot.slane %v391, %v1265
      %v1267 = vlaneseq
      %v1268 = vshrl.u32 %v1267, 7
      %v1269 = vsub.s32 3, %v1268
      %v1270 = vrot.slane %v392, %v1269
      %v1271 = vlaneseq
      %v1272 = vshrl.u32 %v1271, 7
      %v1273 = vsub.s32 3, %v1272
      %v1274 = vrot.slane %v393, %v1273
      %v1275 = vlaneseq
      %v1276 = vshrl.u32 %v1275, 7
      %v1277 = vsub.s32 3, %v1276
      %v1278 = vrot.slane %v394, %v1277
      %v1279 = vlaneseq
      %v1280 = vshrl.u32 %v1279, 7
      %v1281 = vsub.s32 3, %v1280
      %v1282 = vrot.slane %v395, %v1281
      %v1283 = vmul.f32 %v1234, %v1254
      %v1284 = vmul.f32 %v1235, %v1258
      %v1285 = vmul.f32 %v1236, %v1262
      %v1286 = vmul.f32 %v1237, %v1266
      %v1287 = vmul.f32 %v1238, %v1270
      %v1288 = vmul.f32 %v1239, %v1274
      %v1289 = vmul.f32 %v1240, %v1278
      %v1290 = vmul.f32 %v1250, %v1282
      %1291 = vrot.lane.b32.xlu0 %v412, 98
      %v1292 = vpop.permute.xlu0 %1291
      %1293 = vrot.lane.b32.xlu0 %v425, 98
      %v1294 = vpop.permute.xlu0 %1293
      %1295 = vrot.lane.b32.xlu0 %v413, 98
      %v1296 = vpop.permute.xlu0 %1295
      %1297 = vrot.lane.b32.xlu0 %v426, 98
      %v1298 = vpop.permute.xlu0 %1297
      %1299 = vrot.lane.b32.xlu0 %v414, 98
      %v1300 = vpop.permute.xlu0 %1299
      %1301 = vrot.lane.b32.xlu0 %v427, 98
      %v1302 = vpop.permute.xlu0 %1301
      %1303 = vrot.lane.b32.xlu0 %v415, 98
      %v1304 = vpop.permute.xlu0 %1303
      %1305 = vrot.lane.b32.xlu0 %v418, 98
      %v1306 = vpop.permute.xlu0 %1305
      %vm1307 = vcmask 801792
      %v1308 = vsel %vm1307, %v1292, %v1294
      %v1309 = vsel %vm1307, %v1294, %v1296
      %v1310 = vsel %vm1307, %v1296, %v1298
      %v1311 = vsel %vm1307, %v1298, %v1300
      %v1312 = vsel %vm1307, %v1300, %v1302
      %v1313 = vsel %vm1307, %v1302, %v1304
      %v1314 = vsel %vm1307, %v1304, %v1306
      %v1324 = vsel %vm1307, %v1306, %v1292
      %v1325 = vlaneseq
      %v1326 = vshrl.u32 %v1325, 7
      %v1327 = vsub.s32 4, %v1326
      %v1328 = vrot.slane %v388, %v1327
      %v1329 = vlaneseq
      %v1330 = vshrl.u32 %v1329, 7
      %v1331 = vsub.s32 4, %v1330
      %v1332 = vrot.slane %v389, %v1331
      %v1333 = vlaneseq
      %v1334 = vshrl.u32 %v1333, 7
      %v1335 = vsub.s32 4, %v1334
      %v1336 = vrot.slane %v390, %v1335
      %v1337 = vlaneseq
      %v1338 = vshrl.u32 %v1337, 7
      %v1339 = vsub.s32 4, %v1338
      %v1340 = vrot.slane %v391, %v1339
      %v1341 = vlaneseq
      %v1342 = vshrl.u32 %v1341, 7
      %v1343 = vsub.s32 4, %v1342
      %v1344 = vrot.slane %v392, %v1343
      %v1345 = vlaneseq
      %v1346 = vshrl.u32 %v1345, 7
      %v1347 = vsub.s32 4, %v1346
      %v1348 = vrot.slane %v393, %v1347
      %v1349 = vlaneseq
      %v1350 = vshrl.u32 %v1349, 7
      %v1351 = vsub.s32 4, %v1350
      %v1352 = vrot.slane %v394, %v1351
      %v1353 = vlaneseq
      %v1354 = vshrl.u32 %v1353, 7
      %v1355 = vsub.s32 4, %v1354
      %v1356 = vrot.slane %v395, %v1355
      %v1357 = vmul.f32 %v1308, %v1328
      %v1358 = vmul.f32 %v1309, %v1332
      %v1359 = vmul.f32 %v1310, %v1336
      %v1360 = vmul.f32 %v1311, %v1340
      %v1361 = vmul.f32 %v1312, %v1344
      %v1362 = vmul.f32 %v1313, %v1348
      %v1363 = vmul.f32 %v1314, %v1352
      %v1364 = vmul.f32 %v1324, %v1356
      %1365 = vrot.lane.b32.xlu0 %v412, 97
      %v1366 = vpop.permute.xlu0 %1365
      %1367 = vrot.lane.b32.xlu0 %v425, 97
      %v1368 = vpop.permute.xlu0 %1367
      %1369 = vrot.lane.b32.xlu0 %v413, 97
      %v1370 = vpop.permute.xlu0 %1369
      %1371 = vrot.lane.b32.xlu0 %v426, 97
      %v1372 = vpop.permute.xlu0 %1371
      %1373 = vrot.lane.b32.xlu0 %v414, 97
      %v1374 = vpop.permute.xlu0 %1373
      %1375 = vrot.lane.b32.xlu0 %v427, 97
      %v1376 = vpop.permute.xlu0 %1375
      %1377 = vrot.lane.b32.xlu0 %v415, 97
      %v1378 = vpop.permute.xlu0 %1377
      %1379 = vrot.lane.b32.xlu0 %v418, 97
      %v1380 = vpop.permute.xlu0 %1379
      %vm1381 = vcmask 793600
      %v1382 = vsel %vm1381, %v1366, %v1368
      %v1383 = vsel %vm1381, %v1368, %v1370
      %v1384 = vsel %vm1381, %v1370, %v1372
      %v1385 = vsel %vm1381, %v1372, %v1374
      %v1386 = vsel %vm1381, %v1374, %v1376
      %v1387 = vsel %vm1381, %v1376, %v1378
      %v1388 = vsel %vm1381, %v1378, %v1380
      %v1398 = vsel %vm1381, %v1380, %v1366
      %v1399 = vlaneseq
      %v1400 = vshrl.u32 %v1399, 7
      %v1401 = vsub.s32 5, %v1400
      %v1402 = vrot.slane %v388, %v1401
      %v1403 = vlaneseq
      %v1404 = vshrl.u32 %v1403, 7
      %v1405 = vsub.s32 5, %v1404
      %v1406 = vrot.slane %v389, %v1405
      %v1407 = vlaneseq
      %v1408 = vshrl.u32 %v1407, 7
      %v1409 = vsub.s32 5, %v1408
      %v1410 = vrot.slane %v390, %v1409
      %v1411 = vlaneseq
      %v1412 = vshrl.u32 %v1411, 7
      %v1413 = vsub.s32 5, %v1412
      %v1414 = vrot.slane %v391, %v1413
      %v1415 = vlaneseq
      %v1416 = vshrl.u32 %v1415, 7
      %v1417 = vsub.s32 5, %v1416
      %v1418 = vrot.slane %v392, %v1417
      %v1419 = vlaneseq
      %v1420 = vshrl.u32 %v1419, 7
      %v1421 = vsub.s32 5, %v1420
      %v1422 = vrot.slane %v393, %v1421
      %v1423 = vlaneseq
      %v1424 = vshrl.u32 %v1423, 7
      %v1425 = vsub.s32 5, %v1424
      %v1426 = vrot.slane %v394, %v1425
      %v1427 = vlaneseq
      %v1428 = vshrl.u32 %v1427, 7
      %v1429 = vsub.s32 5, %v1428
      %v1430 = vrot.slane %v395, %v1429
      %v1431 = vmul.f32 %v1382, %v1402
      %v1432 = vmul.f32 %v1383, %v1406
      %v1433 = vmul.f32 %v1384, %v1410
      %v1434 = vmul.f32 %v1385, %v1414
      %v1435 = vmul.f32 %v1386, %v1418
      %v1436 = vmul.f32 %v1387, %v1422
      %v1437 = vmul.f32 %v1388, %v1426
      %v1438 = vmul.f32 %v1398, %v1430
      %1439 = vrot.lane.b32.xlu0 %v412, 96
      %v1440 = vpop.permute.xlu0 %1439
      %1441 = vrot.lane.b32.xlu0 %v425, 96
      %v1442 = vpop.permute.xlu0 %1441
      %1443 = vrot.lane.b32.xlu0 %v413, 96
      %v1444 = vpop.permute.xlu0 %1443
      %1445 = vrot.lane.b32.xlu0 %v426, 96
      %v1446 = vpop.permute.xlu0 %1445
      %1447 = vrot.lane.b32.xlu0 %v414, 96
      %v1448 = vpop.permute.xlu0 %1447
      %1449 = vrot.lane.b32.xlu0 %v427, 96
      %v1450 = vpop.permute.xlu0 %1449
      %1451 = vrot.lane.b32.xlu0 %v415, 96
      %v1452 = vpop.permute.xlu0 %1451
      %1453 = vrot.lane.b32.xlu0 %v418, 96
      %v1454 = vpop.permute.xlu0 %1453
      %vm1455 = vcmask 785408
      %v1456 = vsel %vm1455, %v1440, %v1442
      %v1457 = vsel %vm1455, %v1442, %v1444
      %v1458 = vsel %vm1455, %v1444, %v1446
      %v1459 = vsel %vm1455, %v1446, %v1448
      %v1460 = vsel %vm1455, %v1448, %v1450
      %v1461 = vsel %vm1455, %v1450, %v1452
      %v1462 = vsel %vm1455, %v1452, %v1454
      %v1472 = vsel %vm1455, %v1454, %v1440
      %v1473 = vlaneseq
      %v1474 = vshrl.u32 %v1473, 7
      %v1475 = vsub.s32 6, %v1474
      %v1476 = vrot.slane %v388, %v1475
      %v1477 = vlaneseq
      %v1478 = vshrl.u32 %v1477, 7
      %v1479 = vsub.s32 6, %v1478
      %v1480 = vrot.slane %v389, %v1479
      %v1481 = vlaneseq
      %v1482 = vshrl.u32 %v1481, 7
      %v1483 = vsub.s32 6, %v1482
      %v1484 = vrot.slane %v390, %v1483
      %v1485 = vlaneseq
      %v1486 = vshrl.u32 %v1485, 7
      %v1487 = vsub.s32 6, %v1486
      %v1488 = vrot.slane %v391, %v1487
      %v1489 = vlaneseq
      %v1490 = vshrl.u32 %v1489, 7
      %v1491 = vsub.s32 6, %v1490
      %v1492 = vrot.slane %v392, %v1491
      %v1493 = vlaneseq
      %v1494 = vshrl.u32 %v1493, 7
      %v1495 = vsub.s32 6, %v1494
      %v1496 = vrot.slane %v393, %v1495
      %v1497 = vlaneseq
      %v1498 = vshrl.u32 %v1497, 7
      %v1499 = vsub.s32 6, %v1498
      %v1500 = vrot.slane %v394, %v1499
      %v1501 = vlaneseq
      %v1502 = vshrl.u32 %v1501, 7
      %v1503 = vsub.s32 6, %v1502
      %v1504 = vrot.slane %v395, %v1503
      %v1505 = vmul.f32 %v1456, %v1476
      %v1506 = vmul.f32 %v1457, %v1480
      %v1507 = vmul.f32 %v1458, %v1484
      %v1508 = vmul.f32 %v1459, %v1488
      %v1509 = vmul.f32 %v1460, %v1492
      %v1510 = vmul.f32 %v1461, %v1496
      %v1511 = vmul.f32 %v1462, %v1500
      %v1512 = vmul.f32 %v1472, %v1504
      %1513 = vrot.lane.b32.xlu0 %v412, 95
      %v1514 = vpop.permute.xlu0 %1513
      %1515 = vrot.lane.b32.xlu0 %v425, 95
      %v1516 = vpop.permute.xlu0 %1515
      %1517 = vrot.lane.b32.xlu0 %v413, 95
      %v1518 = vpop.permute.xlu0 %1517
      %1519 = vrot.lane.b32.xlu0 %v426, 95
      %v1520 = vpop.permute.xlu0 %1519
      %1521 = vrot.lane.b32.xlu0 %v414, 95
      %v1522 = vpop.permute.xlu0 %1521
      %1523 = vrot.lane.b32.xlu0 %v427, 95
      %v1524 = vpop.permute.xlu0 %1523
      %1525 = vrot.lane.b32.xlu0 %v415, 95
      %v1526 = vpop.permute.xlu0 %1525
      %1527 = vrot.lane.b32.xlu0 %v418, 95
      %v1528 = vpop.permute.xlu0 %1527
      %vm1529 = vcmask 777216
      %v1530 = vsel %vm1529, %v1514, %v1516
      %v1531 = vsel %vm1529, %v1516, %v1518
      %v1532 = vsel %vm1529, %v1518, %v1520
      %v1533 = vsel %vm1529, %v1520, %v1522
      %v1534 = vsel %vm1529, %v1522, %v1524
      %v1535 = vsel %vm1529, %v1524, %v1526
      %v1536 = vsel %vm1529, %v1526, %v1528
      %v1546 = vsel %vm1529, %v1528, %v1514
      %v1547 = vlaneseq
      %v1548 = vshrl.u32 %v1547, 7
      %v1549 = vsub.s32 7, %v1548
      %v1550 = vrot.slane %v388, %v1549
      %v1551 = vlaneseq
      %v1552 = vshrl.u32 %v1551, 7
      %v1553 = vsub.s32 7, %v1552
      %v1554 = vrot.slane %v389, %v1553
      %v1555 = vlaneseq
      %v1556 = vshrl.u32 %v1555, 7
      %v1557 = vsub.s32 7, %v1556
      %v1558 = vrot.slane %v390, %v1557
      %v1559 = vlaneseq
      %v1560 = vshrl.u32 %v1559, 7
      %v1561 = vsub.s32 7, %v1560
      %v1562 = vrot.slane %v391, %v1561
      %v1563 = vlaneseq
      %v1564 = vshrl.u32 %v1563, 7
      %v1565 = vsub.s32 7, %v1564
      %v1566 = vrot.slane %v392, %v1565
      %v1567 = vlaneseq
      %v1568 = vshrl.u32 %v1567, 7
      %v1569 = vsub.s32 7, %v1568
      %v1570 = vrot.slane %v393, %v1569
      %v1571 = vlaneseq
      %v1572 = vshrl.u32 %v1571, 7
      %v1573 = vsub.s32 7, %v1572
      %v1574 = vrot.slane %v394, %v1573
      %v1575 = vlaneseq
      %v1576 = vshrl.u32 %v1575, 7
      %v1577 = vsub.s32 7, %v1576
      %v1578 = vrot.slane %v395, %v1577
      %v1579 = vmul.f32 %v1530, %v1550
      %v1580 = vmul.f32 %v1531, %v1554
      %v1581 = vmul.f32 %v1532, %v1558
      %v1582 = vmul.f32 %v1533, %v1562
      %v1583 = vmul.f32 %v1534, %v1566
      %v1584 = vmul.f32 %v1535, %v1570
      %v1585 = vmul.f32 %v1536, %v1574
      %v1586 = vmul.f32 %v1546, %v1578
      %v1595 = vrot.slane %v565, 4
      %v1596 = vrot.slane %v566, 4
      %v1597 = vrot.slane %v567, 4
      %v1598 = vrot.slane %v568, 4
      %v1599 = vrot.slane %v569, 4
      %v1600 = vrot.slane %v570, 4
      %v1601 = vrot.slane %v571, 4
      %v1602 = vrot.slane %v572, 4
      %v1619 = vrot.slane %v713, 4
      %v1620 = vrot.slane %v714, 4
      %v1621 = vrot.slane %v715, 4
      %v1622 = vrot.slane %v716, 4
      %v1623 = vrot.slane %v717, 4
      %v1624 = vrot.slane %v718, 4
      %v1625 = vrot.slane %v719, 4
      %v1626 = vrot.slane %v720, 4
      %v1643 = vrot.slane %v861, 4
      %v1644 = vrot.slane %v862, 4
      %v1645 = vrot.slane %v863, 4
      %v1646 = vrot.slane %v864, 4
      %v1647 = vrot.slane %v865, 4
      %v1648 = vrot.slane %v866, 4
      %v1649 = vrot.slane %v867, 4
      %v1650 = vrot.slane %v868, 4
      %v1667 = vrot.slane %v1009, 4
      %v1668 = vrot.slane %v1010, 4
      %v1669 = vrot.slane %v1011, 4
      %v1670 = vrot.slane %v1012, 4
      %v1671 = vrot.slane %v1013, 4
      %v1672 = vrot.slane %v1014, 4
      %v1673 = vrot.slane %v1015, 4
      %v1674 = vrot.slane %v1016, 4
      %v1691 = vrot.slane %v1157, 4
      %v1692 = vrot.slane %v1158, 4
      %v1693 = vrot.slane %v1159, 4
      %v1694 = vrot.slane %v1160, 4
      %v1695 = vrot.slane %v1161, 4
      %v1696 = vrot.slane %v1162, 4
      %v1697 = vrot.slane %v1163, 4
      %v1698 = vrot.slane %v1164, 4
      %v1711 = vcombine.high %v1213, %v1213
      %v1712 = vcombine.high %v1214, %v1214
      %v1713 = vcombine.high %v1215, %v1215
      %v1714 = vcombine.high %v1216, %v1216
      %v1727 = vrot.slane %v1283, 4
      %v1728 = vrot.slane %v1284, 4
      %v1729 = vrot.slane %v1285, 4
      %v1730 = vrot.slane %v1286, 4
      %v1731 = vrot.slane %v1287, 4
      %v1732 = vrot.slane %v1288, 4
      %v1733 = vrot.slane %v1289, 4
      %v1734 = vrot.slane %v1290, 4
      %v1751 = vrot.slane %v1431, 4
      %v1752 = vrot.slane %v1432, 4
      %v1753 = vrot.slane %v1433, 4
      %v1754 = vrot.slane %v1434, 4
      %v1755 = vrot.slane %v1435, 4
      %v1756 = vrot.slane %v1436, 4
      %v1757 = vrot.slane %v1437, 4
      %v1758 = vrot.slane %v1438, 4
      %v1775 = vrot.slane %v1579, 4
      %v1776 = vrot.slane %v1580, 4
      %v1777 = vrot.slane %v1581, 4
      %v1778 = vrot.slane %v1582, 4
      %v1779 = vrot.slane %v1583, 4
      %v1780 = vrot.slane %v1584, 4
      %v1781 = vrot.slane %v1585, 4
      %v1782 = vrot.slane %v1586, 4
      %vm1791 = vcmask 1043456
      %v1792 = vsel %vm1791, %v491, %v1595
      %v1793 = vsel %vm1791, %v492, %v1596
      %v1794 = vsel %vm1791, %v493, %v1597
      %v1795 = vsel %vm1791, %v494, %v1598
      %v1796 = vsel %vm1791, %v495, %v1599
      %v1797 = vsel %vm1791, %v496, %v1600
      %v1798 = vsel %vm1791, %v497, %v1601
      %v1799 = vsel %vm1791, %v498, %v1602
      %v1800 = vsel %vm1791, %v639, %v1619
      %v1801 = vsel %vm1791, %v640, %v1620
      %v1802 = vsel %vm1791, %v641, %v1621
      %v1803 = vsel %vm1791, %v642, %v1622
      %v1804 = vsel %vm1791, %v643, %v1623
      %v1805 = vsel %vm1791, %v644, %v1624
      %v1806 = vsel %vm1791, %v645, %v1625
      %v1807 = vsel %vm1791, %v646, %v1626
      %v1808 = vsel %vm1791, %v787, %v1643
      %v1809 = vsel %vm1791, %v788, %v1644
      %v1810 = vsel %vm1791, %v789, %v1645
      %v1811 = vsel %vm1791, %v790, %v1646
      %v1812 = vsel %vm1791, %v791, %v1647
      %v1813 = vsel %vm1791, %v792, %v1648
      %v1814 = vsel %vm1791, %v793, %v1649
      %v1815 = vsel %vm1791, %v794, %v1650
      %v1816 = vsel %vm1791, %v935, %v1667
      %v1817 = vsel %vm1791, %v936, %v1668
      %v1818 = vsel %vm1791, %v937, %v1669
      %v1819 = vsel %vm1791, %v938, %v1670
      %v1820 = vsel %vm1791, %v939, %v1671
      %v1821 = vsel %vm1791, %v940, %v1672
      %v1822 = vsel %vm1791, %v941, %v1673
      %v1823 = vsel %vm1791, %v942, %v1674
      %v1824 = vsel %vm1791, %v1083, %v1691
      %v1825 = vsel %vm1791, %v1084, %v1692
      %v1826 = vsel %vm1791, %v1085, %v1693
      %v1827 = vsel %vm1791, %v1086, %v1694
      %v1828 = vsel %vm1791, %v1087, %v1695
      %v1829 = vsel %vm1791, %v1088, %v1696
      %v1830 = vsel %vm1791, %v1089, %v1697
      %v1831 = vsel %vm1791, %v1090, %v1698
      %v1832 = vsel %vm1791, %v1213, %v1727
      %v1833 = vsel %vm1791, %v1711, %v1728
      %v1834 = vsel %vm1791, %v1214, %v1729
      %v1835 = vsel %vm1791, %v1712, %v1730
      %v1836 = vsel %vm1791, %v1215, %v1731
      %v1837 = vsel %vm1791, %v1713, %v1732
      %v1838 = vsel %vm1791, %v1216, %v1733
      %v1839 = vsel %vm1791, %v1714, %v1734
      %v1840 = vsel %vm1791, %v1357, %v1751
      %v1841 = vsel %vm1791, %v1358, %v1752
      %v1842 = vsel %vm1791, %v1359, %v1753
      %v1843 = vsel %vm1791, %v1360, %v1754
      %v1844 = vsel %vm1791, %v1361, %v1755
      %v1845 = vsel %vm1791, %v1362, %v1756
      %v1846 = vsel %vm1791, %v1363, %v1757
      %v1847 = vsel %vm1791, %v1364, %v1758
      %v1848 = vsel %vm1791, %v1505, %v1775
      %v1849 = vsel %vm1791, %v1506, %v1776
      %v1850 = vsel %vm1791, %v1507, %v1777
      %v1851 = vsel %vm1791, %v1508, %v1778
      %v1852 = vsel %vm1791, %v1509, %v1779
      %v1853 = vsel %vm1791, %v1510, %v1780
      %v1854 = vsel %vm1791, %v1511, %v1781
      %v1855 = vsel %vm1791, %v1512, %v1782
      %v1856 = vld [vmem:[%s5] sm:$0xf]
      %1858 = vset.pattern.permute.xlu0 0
      %1859 = vperm.xlu0 %1858, %v1856
      %v1860 = vpop.permute.xlu0 %1859
      %v1863 = vsel %vm590, %v416, 0
      %1865 = vmatprep.subr.mxu0 %v1793
      %1866 = vmatpush1.msra.mxu0 %v1792
      %1867 = vmatprep.subr.mxu0 %v1801
      %1868 = vmatpush1.msra.mxu0 %v1800
      %1869 = vmatprep.subr.mxu0 %v1809
      %1870 = vmatpush1.msra.mxu0 %v1808
      %1871 = vmatprep.subr.mxu0 %v1817
      %1872 = vmatpush1.msra.mxu0 %v1816
      %1873 = vmatprep.subr.mxu0 %v1825
      %1874 = vmatpush1.msra.mxu0 %v1824
      %1875 = vmatprep.subr.mxu0 %v1833
      %1876 = vmatpush1.msra.mxu0 %v1832
      %1877 = vmatprep.subr.mxu0 %v1841
      %1878 = vmatpush1.msra.mxu0 %v1840
      %1879 = vmatprep.subr.mxu0 %v1849
      %1880 = vmatpush1.msra.mxu0 %v1848
      %1881 = vmatprep.subr.mxu0 0.0
      %1882 = vmatpush1.msra.mxu0 0.0
      %1883 = vmatprep.subr.mxu0 0.0
      %1884 = vmatpush1.msra.mxu0 0.0
      %1885 = vmatprep.subr.mxu0 0.0
      %1886 = vmatpush1.msra.mxu0 0.0
      %1887 = vmatprep.subr.mxu0 0.0
      %1888 = vmatpush1.msra.mxu0 0.0
      %1889 = vmatprep.subr.mxu0 0.0
      %1890 = vmatpush1.msra.mxu0 0.0
      %1891 = vmatprep.subr.mxu0 0.0
      %1892 = vmatpush1.msra.mxu0 0.0
      %1893 = vmatprep.subr.mxu0 0.0
      %1894 = vmatpush1.msra.mxu0 0.0
      %1895 = vmatprep.subr.mxu0 0.0
      %1896 = vmatpush1.msra.mxu0 0.0
      %1897 = vmatprep.subr.mxu0 0.0
      %1898 = vmatpush1.msra.mxu0 0.0
      %1899 = vmatprep.subr.mxu0 0.0
      %1900 = vmatpush1.msra.mxu0 0.0
      %1901 = vmatprep.subr.mxu0 0.0
      %1902 = vmatpush1.msra.mxu0 0.0
      %1903 = vmatprep.subr.mxu0 0.0
      %1904 = vmatpush1.msra.mxu0 0.0
      %1905 = vmatprep.subr.mxu0 0.0
      %1906 = vmatpush1.msra.mxu0 0.0
      %1907 = vmatprep.subr.mxu0 0.0
      %1908 = vmatpush1.msra.mxu0 0.0
      %1909 = vmatprep.subr.mxu0 0.0
      %1910 = vmatpush1.msra.mxu0 0.0
      %1911 = vmatprep.subr.mxu0 0.0
      %1912 = vmatpush1.msra.mxu0 0.0
      %1913 = vmatprep.subr.mxu0 0.0
      %1914 = vmatpush1.msra.mxu0 0.0
      %1915 = vmatprep.subr.mxu0 0.0
      %1916 = vmatpush1.msra.mxu0 0.0
      %1917 = vmatprep.subr.mxu0 0.0
      %1918 = vmatpush1.msra.mxu0 0.0
      %1919 = vmatprep.subr.mxu0 0.0
      %1920 = vmatpush1.msra.mxu0 0.0
      %1921 = vmatprep.subr.mxu0 0.0
      %1922 = vmatpush1.msra.mxu0 0.0
      %1923 = vmatprep.subr.mxu0 0.0
      %1924 = vmatpush1.msra.mxu0 0.0
      %1925 = vmatprep.subr.mxu0 0.0
      %1926 = vmatpush1.msra.mxu0 0.0
      %1927 = vmatprep.subr.mxu0 0.0
      %1928 = vmatpush1.msra.mxu0 0.0
      %1929 = vmatprep.mubr.f32.mxu0 0.0
      %1930 = vmatmul.mubr.f32.gmra.mrb[0].mxu0 %v1863
      %v1931 = vpop.f32.mrb[0].mxu0
      %v1932 = vadd.f32 %v1860, %v1931
      %v1933 = vpop.f32.mrb[0].mxu0
      %v1934 = vadd.f32 %v1860, %v1933
      %1935 = vdwg.mxu0
      %1936 = vmatprep.subr.mxu0 %v1795
      %1937 = vmatpush1.msra.mxu0 %v1794
      %1938 = vmatprep.subr.mxu0 %v1803
      %1939 = vmatpush1.msra.mxu0 %v1802
      %1940 = vmatprep.subr.mxu0 %v1811
      %1941 = vmatpush1.msra.mxu0 %v1810
      %1942 = vmatprep.subr.mxu0 %v1819
      %1943 = vmatpush1.msra.mxu0 %v1818
      %1944 = vmatprep.subr.mxu0 %v1827
      %1945 = vmatpush1.msra.mxu0 %v1826
      %1946 = vmatprep.subr.mxu0 %v1835
      %1947 = vmatpush1.msra.mxu0 %v1834
      %1948 = vmatprep.subr.mxu0 %v1843
      %1949 = vmatpush1.msra.mxu0 %v1842
      %1950 = vmatprep.subr.mxu0 %v1851
      %1951 = vmatpush1.msra.mxu0 %v1850
      %1952 = vmatprep.subr.mxu0 0.0
      %1953 = vmatpush1.msra.mxu0 0.0
      %1954 = vmatprep.subr.mxu0 0.0
      %1955 = vmatpush1.msra.mxu0 0.0
      %1956 = vmatprep.subr.mxu0 0.0
      %1957 = vmatpush1.msra.mxu0 0.0
      %1958 = vmatprep.subr.mxu0 0.0
      %1959 = vmatpush1.msra.mxu0 0.0
      %1960 = vmatprep.subr.mxu0 0.0
      %1961 = vmatpush1.msra.mxu0 0.0
      %1962 = vmatprep.subr.mxu0 0.0
      %1963 = vmatpush1.msra.mxu0 0.0
      %1964 = vmatprep.subr.mxu0 0.0
      %1965 = vmatpush1.msra.mxu0 0.0
      %1966 = vmatprep.subr.mxu0 0.0
      %1967 = vmatpush1.msra.mxu0 0.0
      %1968 = vmatprep.subr.mxu0 0.0
      %1969 = vmatpush1.msra.mxu0 0.0
      %1970 = vmatprep.subr.mxu0 0.0
      %1971 = vmatpush1.msra.mxu0 0.0
      %1972 = vmatprep.subr.mxu0 0.0
      %1973 = vmatpush1.msra.mxu0 0.0
      %1974 = vmatprep.subr.mxu0 0.0
      %1975 = vmatpush1.msra.mxu0 0.0
      %1976 = vmatprep.subr.mxu0 0.0
      %1977 = vmatpush1.msra.mxu0 0.0
      %1978 = vmatprep.subr.mxu0 0.0
      %1979 = vmatpush1.msra.mxu0 0.0
      %1980 = vmatprep.subr.mxu0 0.0
      %1981 = vmatpush1.msra.mxu0 0.0
      %1982 = vmatprep.subr.mxu0 0.0
      %1983 = vmatpush1.msra.mxu0 0.0
      %1984 = vmatprep.subr.mxu0 0.0
      %1985 = vmatpush1.msra.mxu0 0.0
      %1986 = vmatprep.subr.mxu0 0.0
      %1987 = vmatpush1.msra.mxu0 0.0
      %1988 = vmatprep.subr.mxu0 0.0
      %1989 = vmatpush1.msra.mxu0 0.0
      %1990 = vmatprep.subr.mxu0 0.0
      %1991 = vmatpush1.msra.mxu0 0.0
      %1992 = vmatprep.subr.mxu0 0.0
      %1993 = vmatpush1.msra.mxu0 0.0
      %1994 = vmatprep.subr.mxu0 0.0
      %1995 = vmatpush1.msra.mxu0 0.0
      %1996 = vmatprep.subr.mxu0 0.0
      %1997 = vmatpush1.msra.mxu0 0.0
      %1998 = vmatprep.subr.mxu0 0.0
      %1999 = vmatpush1.msra.mxu0 0.0
      %2000 = vmatprep.mubr.f32.mxu0 0.0
      %2001 = vmatmul.mubr.f32.gmra.mrb[0].mxu0 %v1863
      %v2002 = vpop.f32.mrb[0].mxu0
      %v2003 = vadd.f32 %v1860, %v2002
      %v2004 = vpop.f32.mrb[0].mxu0
      %v2005 = vadd.f32 %v1860, %v2004
      %2006 = vdwg.mxu0
      %2007 = vmatprep.subr.mxu0 %v1797
      %2008 = vmatpush1.msra.mxu0 %v1796
      %2009 = vmatprep.subr.mxu0 %v1805
      %2010 = vmatpush1.msra.mxu0 %v1804
      %2011 = vmatprep.subr.mxu0 %v1813
      %2012 = vmatpush1.msra.mxu0 %v1812
      %2013 = vmatprep.subr.mxu0 %v1821
      %2014 = vmatpush1.msra.mxu0 %v1820
      %2015 = vmatprep.subr.mxu0 %v1829
      %2016 = vmatpush1.msra.mxu0 %v1828
      %2017 = vmatprep.subr.mxu0 %v1837
      %2018 = vmatpush1.msra.mxu0 %v1836
      %2019 = vmatprep.subr.mxu0 %v1845
      %2020 = vmatpush1.msra.mxu0 %v1844
      %2021 = vmatprep.subr.mxu0 %v1853
      %2022 = vmatpush1.msra.mxu0 %v1852
      %2023 = vmatprep.subr.mxu0 0.0
      %2024 = vmatpush1.msra.mxu0 0.0
      %2025 = vmatprep.subr.mxu0 0.0
      %2026 = vmatpush1.msra.mxu0 0.0
      %2027 = vmatprep.subr.mxu0 0.0
      %2028 = vmatpush1.msra.mxu0 0.0
      %2029 = vmatprep.subr.mxu0 0.0
      %2030 = vmatpush1.msra.mxu0 0.0
      %2031 = vmatprep.subr.mxu0 0.0
      %2032 = vmatpush1.msra.mxu0 0.0
      %2033 = vmatprep.subr.mxu0 0.0
      %2034 = vmatpush1.msra.mxu0 0.0
      %2035 = vmatprep.subr.mxu0 0.0
      %2036 = vmatpush1.msra.mxu0 0.0
      %2037 = vmatprep.subr.mxu0 0.0
      %2038 = vmatpush1.msra.mxu0 0.0
      %2039 = vmatprep.subr.mxu0 0.0
      %2040 = vmatpush1.msra.mxu0 0.0
      %2041 = vmatprep.subr.mxu0 0.0
      %2042 = vmatpush1.msra.mxu0 0.0
      %2043 = vmatprep.subr.mxu0 0.0
      %2044 = vmatpush1.msra.mxu0 0.0
      %2045 = vmatprep.subr.mxu0 0.0
      %2046 = vmatpush1.msra.mxu0 0.0
      %2047 = vmatprep.subr.mxu0 0.0
      %2048 = vmatpush1.msra.mxu0 0.0
      %2049 = vmatprep.subr.mxu0 0.0
      %2050 = vmatpush1.msra.mxu0 0.0
      %2051 = vmatprep.subr.mxu0 0.0
      %2052 = vmatpush1.msra.mxu0 0.0
      %2053 = vmatprep.subr.mxu0 0.0
      %2054 = vmatpush1.msra.mxu0 0.0
      %2055 = vmatprep.subr.mxu0 0.0
      %2056 = vmatpush1.msra.mxu0 0.0
      %2057 = vmatprep.subr.mxu0 0.0
      %2058 = vmatpush1.msra.mxu0 0.0
      %2059 = vmatprep.subr.mxu0 0.0
      %2060 = vmatpush1.msra.mxu0 0.0
      %2061 = vmatprep.subr.mxu0 0.0
      %2062 = vmatpush1.msra.mxu0 0.0
      %2063 = vmatprep.subr.mxu0 0.0
      %2064 = vmatpush1.msra.mxu0 0.0
      %2065 = vmatprep.subr.mxu0 0.0
      %2066 = vmatpush1.msra.mxu0 0.0
      %2067 = vmatprep.subr.mxu0 0.0
      %2068 = vmatpush1.msra.mxu0 0.0
      %2069 = vmatprep.subr.mxu0 0.0
      %2070 = vmatpush1.msra.mxu0 0.0
      %2071 = vmatprep.mubr.f32.mxu0 0.0
      %2072 = vmatmul.mubr.f32.gmra.mrb[0].mxu0 %v1863
      %v2073 = vpop.f32.mrb[0].mxu0
      %v2074 = vadd.f32 %v1860, %v2073
      %v2075 = vpop.f32.mrb[0].mxu0
      %v2076 = vadd.f32 %v1860, %v2075
      %2077 = vdwg.mxu0
      %2078 = vmatprep.subr.mxu0 %v1799
      %2079 = vmatpush1.msra.mxu0 %v1798
      %2080 = vmatprep.subr.mxu0 %v1807
      %2081 = vmatpush1.msra.mxu0 %v1806
      %2082 = vmatprep.subr.mxu0 %v1815
      %2083 = vmatpush1.msra.mxu0 %v1814
      %2084 = vmatprep.subr.mxu0 %v1823
      %2085 = vmatpush1.msra.mxu0 %v1822
      %2086 = vmatprep.subr.mxu0 %v1831
      %2087 = vmatpush1.msra.mxu0 %v1830
      %2088 = vmatprep.subr.mxu0 %v1839
      %2089 = vmatpush1.msra.mxu0 %v1838
      %2090 = vmatprep.subr.mxu0 %v1847
      %2091 = vmatpush1.msra.mxu0 %v1846
      %2092 = vmatprep.subr.mxu0 %v1855
      %2093 = vmatpush1.msra.mxu0 %v1854
      %2094 = vmatprep.subr.mxu0 0.0
      %2095 = vmatpush1.msra.mxu0 0.0
      %2096 = vmatprep.subr.mxu0 0.0
      %2097 = vmatpush1.msra.mxu0 0.0
      %2098 = vmatprep.subr.mxu0 0.0
      %2099 = vmatpush1.msra.mxu0 0.0
      %2100 = vmatprep.subr.mxu0 0.0
      %2101 = vmatpush1.msra.mxu0 0.0
      %2102 = vmatprep.subr.mxu0 0.0
      %2103 = vmatpush1.msra.mxu0 0.0
      %2104 = vmatprep.subr.mxu0 0.0
      %2105 = vmatpush1.msra.mxu0 0.0
      %2106 = vmatprep.subr.mxu0 0.0
      %2107 = vmatpush1.msra.mxu0 0.0
      %2108 = vmatprep.subr.mxu0 0.0
      %2109 = vmatpush1.msra.mxu0 0.0
      %2110 = vmatprep.subr.mxu0 0.0
      %2111 = vmatpush1.msra.mxu0 0.0
      %2112 = vmatprep.subr.mxu0 0.0
      %2113 = vmatpush1.msra.mxu0 0.0
      %2114 = vmatprep.subr.mxu0 0.0
      %2115 = vmatpush1.msra.mxu0 0.0
      %2116 = vmatprep.subr.mxu0 0.0
      %2117 = vmatpush1.msra.mxu0 0.0
      %2118 = vmatprep.subr.mxu0 0.0
      %2119 = vmatpush1.msra.mxu0 0.0
      %2120 = vmatprep.subr.mxu0 0.0
      %2121 = vmatpush1.msra.mxu0 0.0
      %2122 = vmatprep.subr.mxu0 0.0
      %2123 = vmatpush1.msra.mxu0 0.0
      %2124 = vmatprep.subr.mxu0 0.0
      %2125 = vmatpush1.msra.mxu0 0.0
      %2126 = vmatprep.subr.mxu0 0.0
      %2127 = vmatpush1.msra.mxu0 0.0
      %2128 = vmatprep.subr.mxu0 0.0
      %2129 = vmatpush1.msra.mxu0 0.0
      %2130 = vmatprep.subr.mxu0 0.0
      %2131 = vmatpush1.msra.mxu0 0.0
      %2132 = vmatprep.subr.mxu0 0.0
      %2133 = vmatpush1.msra.mxu0 0.0
      %2134 = vmatprep.subr.mxu0 0.0
      %2135 = vmatpush1.msra.mxu0 0.0
      %2136 = vmatprep.subr.mxu0 0.0
      %2137 = vmatpush1.msra.mxu0 0.0
      %2138 = vmatprep.subr.mxu0 0.0
      %2139 = vmatpush1.msra.mxu0 0.0
      %2140 = vmatprep.subr.mxu0 0.0
      %2141 = vmatpush1.msra.mxu0 0.0
      %2142 = vmatprep.mubr.f32.mxu0 0.0
      %2143 = vmatmul.mubr.f32.gmra.mrb[0].mxu0 %v1863
      %v2144 = vpop.f32.mrb[0].mxu0
      %v2145 = vadd.f32 %v1860, %v2144
      %v2146 = vpop.f32.mrb[0].mxu0
      %v2147 = vadd.f32 %v1860, %v2146
      %2148 = vdwg.mxu0
      %vm2149 = vcmp.ge.f32.partialorder %v1932, 0.0
      %vm2150 = vcmp.ge.f32.partialorder %v1934, 0.0
      %vm2151 = vcmp.ge.f32.partialorder %v2003, 0.0
      %vm2152 = vcmp.ge.f32.partialorder %v2005, 0.0
      %vm2153 = vcmp.ge.f32.partialorder %v2074, 0.0
      %vm2154 = vcmp.ge.f32.partialorder %v2076, 0.0
      %vm2155 = vcmp.ge.f32.partialorder %v2145, 0.0
      %vm2156 = vcmp.ge.f32.partialorder %v2147, 0.0
      %v2157 = vmul.f32 %v1932, 0.1
      %v2158 = vmul.f32 %v1934, 0.1
      %v2159 = vmul.f32 %v2003, 0.1
      %v2160 = vmul.f32 %v2005, 0.1
      %v2161 = vmul.f32 %v2074, 0.1
      %v2162 = vmul.f32 %v2076, 0.1
      %v2163 = vmul.f32 %v2145, 0.1
      %v2164 = vmul.f32 %v2147, 0.1
      %v2165 = vsel %vm2149, %v1932, %v2157
      %v2166 = vsel %vm2150, %v1934, %v2158
      %v2167 = vsel %vm2151, %v2003, %v2159
      %v2168 = vsel %vm2152, %v2005, %v2160
      %v2169 = vsel %vm2153, %v2074, %v2161
      %v2170 = vsel %vm2154, %v2076, %v2162
      %v2171 = vsel %vm2155, %v2145, %v2163
      %v2172 = vsel %vm2156, %v2147, %v2164
      %v2173 = vld [vmem:[%s6] sm:$0xf]
      %2175 = vrot.lane.b32.xlu0 %v2172, 33
      %v2176 = vpop.permute.xlu0 %2175
      %2185 = vrot.lane.b32.xlu0 %v2165, 33
      %v2186 = vpop.permute.xlu0 %2185
      %2187 = vrot.lane.b32.xlu0 %v2166, 33
      %v2188 = vpop.permute.xlu0 %2187
      %2189 = vrot.lane.b32.xlu0 %v2167, 33
      %v2190 = vpop.permute.xlu0 %2189
      %2191 = vrot.lane.b32.xlu0 %v2168, 33
      %v2192 = vpop.permute.xlu0 %2191
      %2193 = vrot.lane.b32.xlu0 %v2169, 33
      %v2194 = vpop.permute.xlu0 %2193
      %2195 = vrot.lane.b32.xlu0 %v2170, 33
      %v2196 = vpop.permute.xlu0 %2195
      %2197 = vrot.lane.b32.xlu0 %v2171, 33
      %v2198 = vpop.permute.xlu0 %2197
      %v2199 = vsel %vm812, %v2186, %v2188
      %v2200 = vsel %vm812, %v2188, %v2190
      %v2201 = vsel %vm812, %v2190, %v2192
      %v2202 = vsel %vm812, %v2192, %v2194
      %v2203 = vsel %vm812, %v2194, %v2196
      %v2204 = vsel %vm812, %v2196, %v2198
      %v2205 = vsel %vm812, %v2198, %v2176
      %v2214 = vsel %vm812, %v2176, %v2186
      %v2215 = vlaneseq
      %v2216 = vshrl.u32 %v2215, 7
      %v2217 = vsub.s32 0, %v2216
      %v2218 = vrot.slane %v396, %v2217
      %v2219 = vlaneseq
      %v2220 = vshrl.u32 %v2219, 7
      %v2221 = vsub.s32 0, %v2220
      %v2222 = vrot.slane %v397, %v2221
      %v2223 = vlaneseq
      %v2224 = vshrl.u32 %v2223, 7
      %v2225 = vsub.s32 0, %v2224
      %v2226 = vrot.slane %v398, %v2225
      %v2227 = vlaneseq
      %v2228 = vshrl.u32 %v2227, 7
      %v2229 = vsub.s32 0, %v2228
      %v2230 = vrot.slane %v399, %v2229
      %v2231 = vlaneseq
      %v2232 = vshrl.u32 %v2231, 7
      %v2233 = vsub.s32 0, %v2232
      %v2234 = vrot.slane %v400, %v2233
      %v2235 = vlaneseq
      %v2236 = vshrl.u32 %v2235, 7
      %v2237 = vsub.s32 0, %v2236
      %v2238 = vrot.slane %v401, %v2237
      %v2239 = vlaneseq
      %v2240 = vshrl.u32 %v2239, 7
      %v2241 = vsub.s32 0, %v2240
      %v2242 = vrot.slane %v402, %v2241
      %v2243 = vlaneseq
      %v2244 = vshrl.u32 %v2243, 7
      %v2245 = vsub.s32 0, %v2244
      %v2246 = vrot.slane %v403, %v2245
      %v2247 = vmul.f32 %v2214, %v2218
      %v2248 = vmul.f32 %v2199, %v2222
      %v2249 = vmul.f32 %v2200, %v2226
      %v2250 = vmul.f32 %v2201, %v2230
      %v2251 = vmul.f32 %v2202, %v2234
      %v2252 = vmul.f32 %v2203, %v2238
      %v2253 = vmul.f32 %v2204, %v2242
      %v2254 = vmul.f32 %v2205, %v2246
      %2255 = vrot.lane.b32.xlu0 %v2172, 32
      %v2256 = vpop.permute.xlu0 %2255
      %2258 = vrot.lane.b32.xlu0 %v2165, 32
      %v2259 = vpop.permute.xlu0 %2258
      %2260 = vrot.lane.b32.xlu0 %v2166, 32
      %v2261 = vpop.permute.xlu0 %2260
      %2262 = vrot.lane.b32.xlu0 %v2167, 32
      %v2263 = vpop.permute.xlu0 %2262
      %2264 = vrot.lane.b32.xlu0 %v2168, 32
      %v2265 = vpop.permute.xlu0 %2264
      %2266 = vrot.lane.b32.xlu0 %v2169, 32
      %v2267 = vpop.permute.xlu0 %2266
      %2268 = vrot.lane.b32.xlu0 %v2170, 32
      %v2269 = vpop.permute.xlu0 %2268
      %2270 = vrot.lane.b32.xlu0 %v2171, 32
      %v2271 = vpop.permute.xlu0 %2270
      %v2272 = vsel %vm886, %v2259, %v2261
      %v2273 = vsel %vm886, %v2261, %v2263
      %v2274 = vsel %vm886, %v2263, %v2265
      %v2275 = vsel %vm886, %v2265, %v2267
      %v2276 = vsel %vm886, %v2267, %v2269
      %v2277 = vsel %vm886, %v2269, %v2271
      %v2278 = vsel %vm886, %v2271, %v2256
      %v2287 = vsel %vm886, %v2256, %v2259
      %v2288 = vlaneseq
      %v2289 = vshrl.u32 %v2288, 7
      %v2290 = vsub.s32 1, %v2289
      %v2291 = vrot.slane %v396, %v2290
      %v2292 = vlaneseq
      %v2293 = vshrl.u32 %v2292, 7
      %v2294 = vsub.s32 1, %v2293
      %v2295 = vrot.slane %v397, %v2294
      %v2296 = vlaneseq
      %v2297 = vshrl.u32 %v2296, 7
      %v2298 = vsub.s32 1, %v2297
      %v2299 = vrot.slane %v398, %v2298
      %v2300 = vlaneseq
      %v2301 = vshrl.u32 %v2300, 7
      %v2302 = vsub.s32 1, %v2301
      %v2303 = vrot.slane %v399, %v2302
      %v2304 = vlaneseq
      %v2305 = vshrl.u32 %v2304, 7
      %v2306 = vsub.s32 1, %v2305
      %v2307 = vrot.slane %v400, %v2306
      %v2308 = vlaneseq
      %v2309 = vshrl.u32 %v2308, 7
      %v2310 = vsub.s32 1, %v2309
      %v2311 = vrot.slane %v401, %v2310
      %v2312 = vlaneseq
      %v2313 = vshrl.u32 %v2312, 7
      %v2314 = vsub.s32 1, %v2313
      %v2315 = vrot.slane %v402, %v2314
      %v2316 = vlaneseq
      %v2317 = vshrl.u32 %v2316, 7
      %v2318 = vsub.s32 1, %v2317
      %v2319 = vrot.slane %v403, %v2318
      %v2320 = vmul.f32 %v2287, %v2291
      %v2321 = vmul.f32 %v2272, %v2295
      %v2322 = vmul.f32 %v2273, %v2299
      %v2323 = vmul.f32 %v2274, %v2303
      %v2324 = vmul.f32 %v2275, %v2307
      %v2325 = vmul.f32 %v2276, %v2311
      %v2326 = vmul.f32 %v2277, %v2315
      %v2327 = vmul.f32 %v2278, %v2319
      %2328 = vrot.lane.b32.xlu0 %v2172, 31
      %v2329 = vpop.permute.xlu0 %2328
      %2331 = vrot.lane.b32.xlu0 %v2165, 31
      %v2332 = vpop.permute.xlu0 %2331
      %2333 = vrot.lane.b32.xlu0 %v2166, 31
      %v2334 = vpop.permute.xlu0 %2333
      %2335 = vrot.lane.b32.xlu0 %v2167, 31
      %v2336 = vpop.permute.xlu0 %2335
      %2337 = vrot.lane.b32.xlu0 %v2168, 31
      %v2338 = vpop.permute.xlu0 %2337
      %2339 = vrot.lane.b32.xlu0 %v2169, 31
      %v2340 = vpop.permute.xlu0 %2339
      %2341 = vrot.lane.b32.xlu0 %v2170, 31
      %v2342 = vpop.permute.xlu0 %2341
      %2343 = vrot.lane.b32.xlu0 %v2171, 31
      %v2344 = vpop.permute.xlu0 %2343
      %v2345 = vsel %vm960, %v2332, %v2334
      %v2346 = vsel %vm960, %v2334, %v2336
      %v2347 = vsel %vm960, %v2336, %v2338
      %v2348 = vsel %vm960, %v2338, %v2340
      %v2349 = vsel %vm960, %v2340, %v2342
      %v2350 = vsel %vm960, %v2342, %v2344
      %v2351 = vsel %vm960, %v2344, %v2329
      %v2360 = vsel %vm960, %v2329, %v2332
      %v2361 = vlaneseq
      %v2362 = vshrl.u32 %v2361, 7
      %v2363 = vsub.s32 2, %v2362
      %v2364 = vrot.slane %v396, %v2363
      %v2365 = vlaneseq
      %v2366 = vshrl.u32 %v2365, 7
      %v2367 = vsub.s32 2, %v2366
      %v2368 = vrot.slane %v397, %v2367
      %v2369 = vlaneseq
      %v2370 = vshrl.u32 %v2369, 7
      %v2371 = vsub.s32 2, %v2370
      %v2372 = vrot.slane %v398, %v2371
      %v2373 = vlaneseq
      %v2374 = vshrl.u32 %v2373, 7
      %v2375 = vsub.s32 2, %v2374
      %v2376 = vrot.slane %v399, %v2375
      %v2377 = vlaneseq
      %v2378 = vshrl.u32 %v2377, 7
      %v2379 = vsub.s32 2, %v2378
      %v2380 = vrot.slane %v400, %v2379
      %v2381 = vlaneseq
      %v2382 = vshrl.u32 %v2381, 7
      %v2383 = vsub.s32 2, %v2382
      %v2384 = vrot.slane %v401, %v2383
      %v2385 = vlaneseq
      %v2386 = vshrl.u32 %v2385, 7
      %v2387 = vsub.s32 2, %v2386
      %v2388 = vrot.slane %v402, %v2387
      %v2389 = vlaneseq
      %v2390 = vshrl.u32 %v2389, 7
      %v2391 = vsub.s32 2, %v2390
      %v2392 = vrot.slane %v403, %v2391
      %v2393 = vmul.f32 %v2360, %v2364
      %v2394 = vmul.f32 %v2345, %v2368
      %v2395 = vmul.f32 %v2346, %v2372
      %v2396 = vmul.f32 %v2347, %v2376
      %v2397 = vmul.f32 %v2348, %v2380
      %v2398 = vmul.f32 %v2349, %v2384
      %v2399 = vmul.f32 %v2350, %v2388
      %v2400 = vmul.f32 %v2351, %v2392
      %2401 = vrot.lane.b32.xlu0 %v2172, 1
      %v2402 = vpop.permute.xlu0 %2401
      %2404 = vrot.lane.b32.xlu0 %v2165, 1
      %v2405 = vpop.permute.xlu0 %2404
      %2406 = vrot.lane.b32.xlu0 %v2166, 1
      %v2407 = vpop.permute.xlu0 %2406
      %2408 = vrot.lane.b32.xlu0 %v2167, 1
      %v2409 = vpop.permute.xlu0 %2408
      %2410 = vrot.lane.b32.xlu0 %v2168, 1
      %v2411 = vpop.permute.xlu0 %2410
      %2412 = vrot.lane.b32.xlu0 %v2169, 1
      %v2413 = vpop.permute.xlu0 %2412
      %2414 = vrot.lane.b32.xlu0 %v2170, 1
      %v2415 = vpop.permute.xlu0 %2414
      %2416 = vrot.lane.b32.xlu0 %v2171, 1
      %v2417 = vpop.permute.xlu0 %2416
      %v2418 = vsel %vm1108, %v2405, %v2407
      %v2419 = vsel %vm1108, %v2407, %v2409
      %v2420 = vsel %vm1108, %v2409, %v2411
      %v2421 = vsel %vm1108, %v2411, %v2413
      %v2422 = vsel %vm1108, %v2413, %v2415
      %v2423 = vsel %vm1108, %v2415, %v2417
      %v2424 = vsel %vm1108, %v2417, %v2402
      %v2433 = vsel %vm1108, %v2402, %v2405
      %v2434 = vlaneseq
      %v2435 = vshrl.u32 %v2434, 7
      %v2436 = vsub.s32 3, %v2435
      %v2437 = vrot.slane %v396, %v2436
      %v2438 = vlaneseq
      %v2439 = vshrl.u32 %v2438, 7
      %v2440 = vsub.s32 3, %v2439
      %v2441 = vrot.slane %v397, %v2440
      %v2442 = vlaneseq
      %v2443 = vshrl.u32 %v2442, 7
      %v2444 = vsub.s32 3, %v2443
      %v2445 = vrot.slane %v398, %v2444
      %v2446 = vlaneseq
      %v2447 = vshrl.u32 %v2446, 7
      %v2448 = vsub.s32 3, %v2447
      %v2449 = vrot.slane %v399, %v2448
      %v2450 = vlaneseq
      %v2451 = vshrl.u32 %v2450, 7
      %v2452 = vsub.s32 3, %v2451
      %v2453 = vrot.slane %v400, %v2452
      %v2454 = vlaneseq
      %v2455 = vshrl.u32 %v2454, 7
      %v2456 = vsub.s32 3, %v2455
      %v2457 = vrot.slane %v401, %v2456
      %v2458 = vlaneseq
      %v2459 = vshrl.u32 %v2458, 7
      %v2460 = vsub.s32 3, %v2459
      %v2461 = vrot.slane %v402, %v2460
      %v2462 = vlaneseq
      %v2463 = vshrl.u32 %v2462, 7
      %v2464 = vsub.s32 3, %v2463
      %v2465 = vrot.slane %v403, %v2464
      %v2466 = vmul.f32 %v2433, %v2437
      %v2467 = vmul.f32 %v2418, %v2441
      %v2468 = vmul.f32 %v2419, %v2445
      %v2469 = vmul.f32 %v2420, %v2449
      %v2470 = vmul.f32 %v2421, %v2453
      %v2471 = vmul.f32 %v2422, %v2457
      %v2472 = vmul.f32 %v2423, %v2461
      %v2473 = vmul.f32 %v2424, %v2465
      %v2474 = vlaneseq
      %v2475 = vshrl.u32 %v2474, 7
      %v2476 = vsub.s32 4, %v2475
      %v2477 = vrot.slane %v396, %v2476
      %v2478 = vlaneseq
      %v2479 = vshrl.u32 %v2478, 7
      %v2480 = vsub.s32 4, %v2479
      %v2481 = vrot.slane %v397, %v2480
      %v2482 = vlaneseq
      %v2483 = vshrl.u32 %v2482, 7
      %v2484 = vsub.s32 4, %v2483
      %v2485 = vrot.slane %v398, %v2484
      %v2486 = vlaneseq
      %v2487 = vshrl.u32 %v2486, 7
      %v2488 = vsub.s32 4, %v2487
      %v2489 = vrot.slane %v399, %v2488
      %v2490 = vlaneseq
      %v2491 = vshrl.u32 %v2490, 7
      %v2492 = vsub.s32 4, %v2491
      %v2493 = vrot.slane %v400, %v2492
      %v2494 = vlaneseq
      %v2495 = vshrl.u32 %v2494, 7
      %v2496 = vsub.s32 4, %v2495
      %v2497 = vrot.slane %v401, %v2496
      %v2498 = vlaneseq
      %v2499 = vshrl.u32 %v2498, 7
      %v2500 = vsub.s32 4, %v2499
      %v2501 = vrot.slane %v402, %v2500
      %v2502 = vlaneseq
      %v2503 = vshrl.u32 %v2502, 7
      %v2504 = vsub.s32 4, %v2503
      %v2505 = vrot.slane %v403, %v2504
      %v2506 = vmul.f32 %v2165, %v2477
      %v2507 = vmul.f32 %v2166, %v2481
      %v2508 = vmul.f32 %v2167, %v2485
      %v2509 = vmul.f32 %v2168, %v2489
      %v2510 = vmul.f32 %v2169, %v2493
      %v2511 = vmul.f32 %v2170, %v2497
      %v2512 = vmul.f32 %v2171, %v2501
      %v2513 = vmul.f32 %v2172, %v2505
      %2514 = vrot.lane.b32.xlu0 %v2165, 127
      %v2515 = vpop.permute.xlu0 %2514
      %2516 = vrot.lane.b32.xlu0 %v2166, 127
      %v2517 = vpop.permute.xlu0 %2516
      %2518 = vrot.lane.b32.xlu0 %v2167, 127
      %v2519 = vpop.permute.xlu0 %2518
      %2520 = vrot.lane.b32.xlu0 %v2168, 127
      %v2521 = vpop.permute.xlu0 %2520
      %2522 = vrot.lane.b32.xlu0 %v2169, 127
      %v2523 = vpop.permute.xlu0 %2522
      %2524 = vrot.lane.b32.xlu0 %v2170, 127
      %v2525 = vpop.permute.xlu0 %2524
      %2526 = vrot.lane.b32.xlu0 %v2171, 127
      %v2527 = vpop.permute.xlu0 %2526
      %2528 = vrot.lane.b32.xlu0 %v2172, 127
      %v2529 = vpop.permute.xlu0 %2528
      %v2530 = vsel %vm1233, %v2515, %v2517
      %v2531 = vsel %vm1233, %v2517, %v2519
      %v2532 = vsel %vm1233, %v2519, %v2521
      %v2533 = vsel %vm1233, %v2521, %v2523
      %v2534 = vsel %vm1233, %v2523, %v2525
      %v2535 = vsel %vm1233, %v2525, %v2527
      %v2536 = vsel %vm1233, %v2527, %v2529
      %v2546 = vsel %vm1233, %v2529, %v2515
      %v2547 = vlaneseq
      %v2548 = vshrl.u32 %v2547, 7
      %v2549 = vsub.s32 5, %v2548
      %v2550 = vrot.slane %v396, %v2549
      %v2551 = vlaneseq
      %v2552 = vshrl.u32 %v2551, 7
      %v2553 = vsub.s32 5, %v2552
      %v2554 = vrot.slane %v397, %v2553
      %v2555 = vlaneseq
      %v2556 = vshrl.u32 %v2555, 7
      %v2557 = vsub.s32 5, %v2556
      %v2558 = vrot.slane %v398, %v2557
      %v2559 = vlaneseq
      %v2560 = vshrl.u32 %v2559, 7
      %v2561 = vsub.s32 5, %v2560
      %v2562 = vrot.slane %v399, %v2561
      %v2563 = vlaneseq
      %v2564 = vshrl.u32 %v2563, 7
      %v2565 = vsub.s32 5, %v2564
      %v2566 = vrot.slane %v400, %v2565
      %v2567 = vlaneseq
      %v2568 = vshrl.u32 %v2567, 7
      %v2569 = vsub.s32 5, %v2568
      %v2570 = vrot.slane %v401, %v2569
      %v2571 = vlaneseq
      %v2572 = vshrl.u32 %v2571, 7
      %v2573 = vsub.s32 5, %v2572
      %v2574 = vrot.slane %v402, %v2573
      %v2575 = vlaneseq
      %v2576 = vshrl.u32 %v2575, 7
      %v2577 = vsub.s32 5, %v2576
      %v2578 = vrot.slane %v403, %v2577
      %v2579 = vmul.f32 %v2530, %v2550
      %v2580 = vmul.f32 %v2531, %v2554
      %v2581 = vmul.f32 %v2532, %v2558
      %v2582 = vmul.f32 %v2533, %v2562
      %v2583 = vmul.f32 %v2534, %v2566
      %v2584 = vmul.f32 %v2535, %v2570
      %v2585 = vmul.f32 %v2536, %v2574
      %v2586 = vmul.f32 %v2546, %v2578
      %2587 = vrot.lane.b32.xlu0 %v2165, 97
      %v2588 = vpop.permute.xlu0 %2587
      %2589 = vrot.lane.b32.xlu0 %v2166, 97
      %v2590 = vpop.permute.xlu0 %2589
      %2591 = vrot.lane.b32.xlu0 %v2167, 97
      %v2592 = vpop.permute.xlu0 %2591
      %2593 = vrot.lane.b32.xlu0 %v2168, 97
      %v2594 = vpop.permute.xlu0 %2593
      %2595 = vrot.lane.b32.xlu0 %v2169, 97
      %v2596 = vpop.permute.xlu0 %2595
      %2597 = vrot.lane.b32.xlu0 %v2170, 97
      %v2598 = vpop.permute.xlu0 %2597
      %2599 = vrot.lane.b32.xlu0 %v2171, 97
      %v2600 = vpop.permute.xlu0 %2599
      %2601 = vrot.lane.b32.xlu0 %v2172, 97
      %v2602 = vpop.permute.xlu0 %2601
      %v2603 = vsel %vm1381, %v2588, %v2590
      %v2604 = vsel %vm1381, %v2590, %v2592
      %v2605 = vsel %vm1381, %v2592, %v2594
      %v2606 = vsel %vm1381, %v2594, %v2596
      %v2607 = vsel %vm1381, %v2596, %v2598
      %v2608 = vsel %vm1381, %v2598, %v2600
      %v2609 = vsel %vm1381, %v2600, %v2602
      %v2619 = vsel %vm1381, %v2602, %v2588
      %v2620 = vlaneseq
      %v2621 = vshrl.u32 %v2620, 7
      %v2622 = vsub.s32 6, %v2621
      %v2623 = vrot.slane %v396, %v2622
      %v2624 = vlaneseq
      %v2625 = vshrl.u32 %v2624, 7
      %v2626 = vsub.s32 6, %v2625
      %v2627 = vrot.slane %v397, %v2626
      %v2628 = vlaneseq
      %v2629 = vshrl.u32 %v2628, 7
      %v2630 = vsub.s32 6, %v2629
      %v2631 = vrot.slane %v398, %v2630
      %v2632 = vlaneseq
      %v2633 = vshrl.u32 %v2632, 7
      %v2634 = vsub.s32 6, %v2633
      %v2635 = vrot.slane %v399, %v2634
      %v2636 = vlaneseq
      %v2637 = vshrl.u32 %v2636, 7
      %v2638 = vsub.s32 6, %v2637
      %v2639 = vrot.slane %v400, %v2638
      %v2640 = vlaneseq
      %v2641 = vshrl.u32 %v2640, 7
      %v2642 = vsub.s32 6, %v2641
      %v2643 = vrot.slane %v401, %v2642
      %v2644 = vlaneseq
      %v2645 = vshrl.u32 %v2644, 7
      %v2646 = vsub.s32 6, %v2645
      %v2647 = vrot.slane %v402, %v2646
      %v2648 = vlaneseq
      %v2649 = vshrl.u32 %v2648, 7
      %v2650 = vsub.s32 6, %v2649
      %v2651 = vrot.slane %v403, %v2650
      %v2652 = vmul.f32 %v2603, %v2623
      %v2653 = vmul.f32 %v2604, %v2627
      %v2654 = vmul.f32 %v2605, %v2631
      %v2655 = vmul.f32 %v2606, %v2635
      %v2656 = vmul.f32 %v2607, %v2639
      %v2657 = vmul.f32 %v2608, %v2643
      %v2658 = vmul.f32 %v2609, %v2647
      %v2659 = vmul.f32 %v2619, %v2651
      %2660 = vrot.lane.b32.xlu0 %v2165, 96
      %v2661 = vpop.permute.xlu0 %2660
      %2662 = vrot.lane.b32.xlu0 %v2166, 96
      %v2663 = vpop.permute.xlu0 %2662
      %2664 = vrot.lane.b32.xlu0 %v2167, 96
      %v2665 = vpop.permute.xlu0 %2664
      %2666 = vrot.lane.b32.xlu0 %v2168, 96
      %v2667 = vpop.permute.xlu0 %2666
      %2668 = vrot.lane.b32.xlu0 %v2169, 96
      %v2669 = vpop.permute.xlu0 %2668
      %2670 = vrot.lane.b32.xlu0 %v2170, 96
      %v2671 = vpop.permute.xlu0 %2670
      %2672 = vrot.lane.b32.xlu0 %v2171, 96
      %v2673 = vpop.permute.xlu0 %2672
      %2674 = vrot.lane.b32.xlu0 %v2172, 96
      %v2675 = vpop.permute.xlu0 %2674
      %v2676 = vsel %vm1455, %v2661, %v2663
      %v2677 = vsel %vm1455, %v2663, %v2665
      %v2678 = vsel %vm1455, %v2665, %v2667
      %v2679 = vsel %vm1455, %v2667, %v2669
      %v2680 = vsel %vm1455, %v2669, %v2671
      %v2681 = vsel %vm1455, %v2671, %v2673
      %v2682 = vsel %vm1455, %v2673, %v2675
      %v2692 = vsel %vm1455, %v2675, %v2661
      %v2693 = vlaneseq
      %v2694 = vshrl.u32 %v2693, 7
      %v2695 = vsub.s32 7, %v2694
      %v2696 = vrot.slane %v396, %v2695
      %v2697 = vlaneseq
      %v2698 = vshrl.u32 %v2697, 7
      %v2699 = vsub.s32 7, %v2698
      %v2700 = vrot.slane %v397, %v2699
      %v2701 = vlaneseq
      %v2702 = vshrl.u32 %v2701, 7
      %v2703 = vsub.s32 7, %v2702
      %v2704 = vrot.slane %v398, %v2703
      %v2705 = vlaneseq
      %v2706 = vshrl.u32 %v2705, 7
      %v2707 = vsub.s32 7, %v2706
      %v2708 = vrot.slane %v399, %v2707
      %v2709 = vlaneseq
      %v2710 = vshrl.u32 %v2709, 7
      %v2711 = vsub.s32 7, %v2710
      %v2712 = vrot.slane %v400, %v2711
      %v2713 = vlaneseq
      %v2714 = vshrl.u32 %v2713, 7
      %v2715 = vsub.s32 7, %v2714
      %v2716 = vrot.slane %v401, %v2715
      %v2717 = vlaneseq
      %v2718 = vshrl.u32 %v2717, 7
      %v2719 = vsub.s32 7, %v2718
      %v2720 = vrot.slane %v402, %v2719
      %v2721 = vlaneseq
      %v2722 = vshrl.u32 %v2721, 7
      %v2723 = vsub.s32 7, %v2722
      %v2724 = vrot.slane %v403, %v2723
      %v2725 = vmul.f32 %v2676, %v2696
      %v2726 = vmul.f32 %v2677, %v2700
      %v2727 = vmul.f32 %v2678, %v2704
      %v2728 = vmul.f32 %v2679, %v2708
      %v2729 = vmul.f32 %v2680, %v2712
      %v2730 = vmul.f32 %v2681, %v2716
      %v2731 = vmul.f32 %v2682, %v2720
      %v2732 = vmul.f32 %v2692, %v2724
      %2733 = vrot.lane.b32.xlu0 %v2165, 95
      %v2734 = vpop.permute.xlu0 %2733
      %2735 = vrot.lane.b32.xlu0 %v2166, 95
      %v2736 = vpop.permute.xlu0 %2735
      %2737 = vrot.lane.b32.xlu0 %v2167, 95
      %v2738 = vpop.permute.xlu0 %2737
      %2739 = vrot.lane.b32.xlu0 %v2168, 95
      %v2740 = vpop.permute.xlu0 %2739
      %2741 = vrot.lane.b32.xlu0 %v2169, 95
      %v2742 = vpop.permute.xlu0 %2741
      %2743 = vrot.lane.b32.xlu0 %v2170, 95
      %v2744 = vpop.permute.xlu0 %2743
      %2745 = vrot.lane.b32.xlu0 %v2171, 95
      %v2746 = vpop.permute.xlu0 %2745
      %2747 = vrot.lane.b32.xlu0 %v2172, 95
      %v2748 = vpop.permute.xlu0 %2747
      %v2749 = vsel %vm1529, %v2734, %v2736
      %v2750 = vsel %vm1529, %v2736, %v2738
      %v2751 = vsel %vm1529, %v2738, %v2740
      %v2752 = vsel %vm1529, %v2740, %v2742
      %v2753 = vsel %vm1529, %v2742, %v2744
      %v2754 = vsel %vm1529, %v2744, %v2746
      %v2755 = vsel %vm1529, %v2746, %v2748
      %v2765 = vsel %vm1529, %v2748, %v2734
      %v2766 = vlaneseq
      %v2767 = vshrl.u32 %v2766, 7
      %v2768 = vsub.s32 0, %v2767
      %v2769 = vrot.slane %v404, %v2768
      %v2770 = vlaneseq
      %v2771 = vshrl.u32 %v2770, 7
      %v2772 = vsub.s32 0, %v2771
      %v2773 = vrot.slane %v405, %v2772
      %v2774 = vlaneseq
      %v2775 = vshrl.u32 %v2774, 7
      %v2776 = vsub.s32 0, %v2775
      %v2777 = vrot.slane %v406, %v2776
      %v2778 = vlaneseq
      %v2779 = vshrl.u32 %v2778, 7
      %v2780 = vsub.s32 0, %v2779
      %v2781 = vrot.slane %v407, %v2780
      %v2782 = vlaneseq
      %v2783 = vshrl.u32 %v2782, 7
      %v2784 = vsub.s32 0, %v2783
      %v2785 = vrot.slane %v408, %v2784
      %v2786 = vlaneseq
      %v2787 = vshrl.u32 %v2786, 7
      %v2788 = vsub.s32 0, %v2787
      %v2789 = vrot.slane %v409, %v2788
      %v2790 = vlaneseq
      %v2791 = vshrl.u32 %v2790, 7
      %v2792 = vsub.s32 0, %v2791
      %v2793 = vrot.slane %v410, %v2792
      %v2794 = vlaneseq
      %v2795 = vshrl.u32 %v2794, 7
      %v2796 = vsub.s32 0, %v2795
      %v2797 = vrot.slane %v411, %v2796
      %v2798 = vmul.f32 %v2749, %v2769
      %v2799 = vmul.f32 %v2750, %v2773
      %v2800 = vmul.f32 %v2751, %v2777
      %v2801 = vmul.f32 %v2752, %v2781
      %v2802 = vmul.f32 %v2753, %v2785
      %v2803 = vmul.f32 %v2754, %v2789
      %v2804 = vmul.f32 %v2755, %v2793
      %v2805 = vmul.f32 %v2765, %v2797
      %v2814 = vrot.slane %v2320, 4
      %v2815 = vrot.slane %v2321, 4
      %v2816 = vrot.slane %v2322, 4
      %v2817 = vrot.slane %v2323, 4
      %v2818 = vrot.slane %v2324, 4
      %v2819 = vrot.slane %v2325, 4
      %v2820 = vrot.slane %v2326, 4
      %v2821 = vrot.slane %v2327, 4
      %v2838 = vrot.slane %v2466, 4
      %v2839 = vrot.slane %v2467, 4
      %v2840 = vrot.slane %v2468, 4
      %v2841 = vrot.slane %v2469, 4
      %v2842 = vrot.slane %v2470, 4
      %v2843 = vrot.slane %v2471, 4
      %v2844 = vrot.slane %v2472, 4
      %v2845 = vrot.slane %v2473, 4
      %v2862 = vrot.slane %v2579, 4
      %v2863 = vrot.slane %v2580, 4
      %v2864 = vrot.slane %v2581, 4
      %v2865 = vrot.slane %v2582, 4
      %v2866 = vrot.slane %v2583, 4
      %v2867 = vrot.slane %v2584, 4
      %v2868 = vrot.slane %v2585, 4
      %v2869 = vrot.slane %v2586, 4
      %v2886 = vrot.slane %v2725, 4
      %v2887 = vrot.slane %v2726, 4
      %v2888 = vrot.slane %v2727, 4
      %v2889 = vrot.slane %v2728, 4
      %v2890 = vrot.slane %v2729, 4
      %v2891 = vrot.slane %v2730, 4
      %v2892 = vrot.slane %v2731, 4
      %v2893 = vrot.slane %v2732, 4
      %v2902 = vsel %vm1791, %v2247, %v2814
      %v2903 = vsel %vm1791, %v2248, %v2815
      %v2904 = vsel %vm1791, %v2249, %v2816
      %v2905 = vsel %vm1791, %v2250, %v2817
      %v2906 = vsel %vm1791, %v2251, %v2818
      %v2907 = vsel %vm1791, %v2252, %v2819
      %v2908 = vsel %vm1791, %v2253, %v2820
      %v2909 = vsel %vm1791, %v2254, %v2821
      %v2910 = vsel %vm1791, %v2393, %v2838
      %v2911 = vsel %vm1791, %v2394, %v2839
      %v2912 = vsel %vm1791, %v2395, %v2840
      %v2913 = vsel %vm1791, %v2396, %v2841
      %v2914 = vsel %vm1791, %v2397, %v2842
      %v2915 = vsel %vm1791, %v2398, %v2843
      %v2916 = vsel %vm1791, %v2399, %v2844
      %v2917 = vsel %vm1791, %v2400, %v2845
      %v2918 = vsel %vm1791, %v2506, %v2862
      %v2919 = vsel %vm1791, %v2507, %v2863
      %v2920 = vsel %vm1791, %v2508, %v2864
      %v2921 = vsel %vm1791, %v2509, %v2865
      %v2922 = vsel %vm1791, %v2510, %v2866
      %v2923 = vsel %vm1791, %v2511, %v2867
      %v2924 = vsel %vm1791, %v2512, %v2868
      %v2925 = vsel %vm1791, %v2513, %v2869
      %v2926 = vsel %vm1791, %v2652, %v2886
      %v2927 = vsel %vm1791, %v2653, %v2887
      %v2928 = vsel %vm1791, %v2654, %v2888
      %v2929 = vsel %vm1791, %v2655, %v2889
      %v2930 = vsel %vm1791, %v2656, %v2890
      %v2931 = vsel %vm1791, %v2657, %v2891
      %v2932 = vsel %vm1791, %v2658, %v2892
      %v2933 = vsel %vm1791, %v2659, %v2893
      %v2934 = vld [vmem:[%s7] sm:$0xf]
      %2936 = vset.pattern.permute.xlu0 0
      %2937 = vperm.xlu0 %2936, %v2934
      %v2938 = vpop.permute.xlu0 %2937
      %vm2940 = vcmask 293888
      %v2942 = vsel %vm2940, %v2173, 0
      %v2945 = vsel %vm1791, %v2798, 0
      %v2948 = vsel %vm1791, %v2799, 0
      %v2951 = vsel %vm1791, %v2800, 0
      %v2954 = vsel %vm1791, %v2801, 0
      %v2957 = vsel %vm1791, %v2802, 0
      %v2960 = vsel %vm1791, %v2803, 0
      %v2963 = vsel %vm1791, %v2804, 0
      %v2966 = vsel %vm1791, %v2805, 0
      %2968 = vmatprep.subr.mxu0 %v2903
      %2969 = vmatpush1.msra.mxu0 %v2902
      %2970 = vmatprep.subr.mxu0 %v2911
      %2971 = vmatpush1.msra.mxu0 %v2910
      %2972 = vmatprep.subr.mxu0 %v2919
      %2973 = vmatpush1.msra.mxu0 %v2918
      %2974 = vmatprep.subr.mxu0 %v2927
      %2975 = vmatpush1.msra.mxu0 %v2926
      %2976 = vmatprep.subr.mxu0 %v2948
      %2977 = vmatpush1.msra.mxu0 %v2945
      %2978 = vmatprep.subr.mxu0 0.0
      %2979 = vmatpush1.msra.mxu0 0.0
      %2980 = vmatprep.subr.mxu0 0.0
      %2981 = vmatpush1.msra.mxu0 0.0
      %2982 = vmatprep.subr.mxu0 0.0
      %2983 = vmatpush1.msra.mxu0 0.0
      %2984 = vmatprep.subr.mxu0 0.0
      %2985 = vmatpush1.msra.mxu0 0.0
      %2986 = vmatprep.subr.mxu0 0.0
      %2987 = vmatpush1.msra.mxu0 0.0
      %2988 = vmatprep.subr.mxu0 0.0
      %2989 = vmatpush1.msra.mxu0 0.0
      %2990 = vmatprep.subr.mxu0 0.0
      %2991 = vmatpush1.msra.mxu0 0.0
      %2992 = vmatprep.subr.mxu0 0.0
      %2993 = vmatpush1.msra.mxu0 0.0
      %2994 = vmatprep.subr.mxu0 0.0
      %2995 = vmatpush1.msra.mxu0 0.0
      %2996 = vmatprep.subr.mxu0 0.0
      %2997 = vmatpush1.msra.mxu0 0.0
      %2998 = vmatprep.subr.mxu0 0.0
      %2999 = vmatpush1.msra.mxu0 0.0
      %3000 = vmatprep.subr.mxu0 0.0
      %3001 = vmatpush1.msra.mxu0 0.0
      %3002 = vmatprep.subr.mxu0 0.0
      %3003 = vmatpush1.msra.mxu0 0.0
      %3004 = vmatprep.subr.mxu0 0.0
      %3005 = vmatpush1.msra.mxu0 0.0
      %3006 = vmatprep.subr.mxu0 0.0
      %3007 = vmatpush1.msra.mxu0 0.0
      %3008 = vmatprep.subr.mxu0 0.0
      %3009 = vmatpush1.msra.mxu0 0.0
      %3010 = vmatprep.subr.mxu0 0.0
      %3011 = vmatpush1.msra.mxu0 0.0
      %3012 = vmatprep.subr.mxu0 0.0
      %3013 = vmatpush1.msra.mxu0 0.0
      %3014 = vmatprep.subr.mxu0 0.0
      %3015 = vmatpush1.msra.mxu0 0.0
      %3016 = vmatprep.subr.mxu0 0.0
      %3017 = vmatpush1.msra.mxu0 0.0
      %3018 = vmatprep.subr.mxu0 0.0
      %3019 = vmatpush1.msra.mxu0 0.0
      %3020 = vmatprep.subr.mxu0 0.0
      %3021 = vmatpush1.msra.mxu0 0.0
      %3022 = vmatprep.subr.mxu0 0.0
      %3023 = vmatpush1.msra.mxu0 0.0
      %3024 = vmatprep.subr.mxu0 0.0
      %3025 = vmatpush1.msra.mxu0 0.0
      %3026 = vmatprep.subr.mxu0 0.0
      %3027 = vmatpush1.msra.mxu0 0.0
      %3028 = vmatprep.subr.mxu0 0.0
      %3029 = vmatpush1.msra.mxu0 0.0
      %3030 = vmatprep.subr.mxu0 0.0
      %3031 = vmatpush1.msra.mxu0 0.0
      %3032 = vmatprep.mubr.f32.mxu0 0.0
      %3033 = vmatmul.mubr.f32.gmra.mrb[0].mxu0 %v2942
      %v3034 = vpop.f32.mrb[0].mxu0
      %v3035 = vadd.f32 %v2938, %v3034
      %v3036 = vpop.f32.mrb[0].mxu0
      %v3037 = vadd.f32 %v2938, %v3036
      %3038 = vdwg.mxu0
      %3039 = vmatprep.subr.mxu0 %v2905
      %3040 = vmatpush1.msra.mxu0 %v2904
      %3041 = vmatprep.subr.mxu0 %v2913
      %3042 = vmatpush1.msra.mxu0 %v2912
      %3043 = vmatprep.subr.mxu0 %v2921
      %3044 = vmatpush1.msra.mxu0 %v2920
      %3045 = vmatprep.subr.mxu0 %v2929
      %3046 = vmatpush1.msra.mxu0 %v2928
      %3047 = vmatprep.subr.mxu0 %v2954
      %3048 = vmatpush1.msra.mxu0 %v2951
      %3049 = vmatprep.subr.mxu0 0.0
      %3050 = vmatpush1.msra.mxu0 0.0
      %3051 = vmatprep.subr.mxu0 0.0
      %3052 = vmatpush1.msra.mxu0 0.0
      %3053 = vmatprep.subr.mxu0 0.0
      %3054 = vmatpush1.msra.mxu0 0.0
      %3055 = vmatprep.subr.mxu0 0.0
      %3056 = vmatpush1.msra.mxu0 0.0
      %3057 = vmatprep.subr.mxu0 0.0
      %3058 = vmatpush1.msra.mxu0 0.0
      %3059 = vmatprep.subr.mxu0 0.0
      %3060 = vmatpush1.msra.mxu0 0.0
      %3061 = vmatprep.subr.mxu0 0.0
      %3062 = vmatpush1.msra.mxu0 0.0
      %3063 = vmatprep.subr.mxu0 0.0
      %3064 = vmatpush1.msra.mxu0 0.0
      %3065 = vmatprep.subr.mxu0 0.0
      %3066 = vmatpush1.msra.mxu0 0.0
      %3067 = vmatprep.subr.mxu0 0.0
      %3068 = vmatpush1.msra.mxu0 0.0
      %3069 = vmatprep.subr.mxu0 0.0
      %3070 = vmatpush1.msra.mxu0 0.0
      %3071 = vmatprep.subr.mxu0 0.0
      %3072 = vmatpush1.msra.mxu0 0.0
      %3073 = vmatprep.subr.mxu0 0.0
      %3074 = vmatpush1.msra.mxu0 0.0
      %3075 = vmatprep.subr.mxu0 0.0
      %3076 = vmatpush1.msra.mxu0 0.0
      %3077 = vmatprep.subr.mxu0 0.0
      %3078 = vmatpush1.msra.mxu0 0.0
      %3079 = vmatprep.subr.mxu0 0.0
      %3080 = vmatpush1.msra.mxu0 0.0
      %3081 = vmatprep.subr.mxu0 0.0
      %3082 = vmatpush1.msra.mxu0 0.0
      %3083 = vmatprep.subr.mxu0 0.0
      %3084 = vmatpush1.msra.mxu0 0.0
      %3085 = vmatprep.subr.mxu0 0.0
      %3086 = vmatpush1.msra.mxu0 0.0
      %3087 = vmatprep.subr.mxu0 0.0
      %3088 = vmatpush1.msra.mxu0 0.0
      %3089 = vmatprep.subr.mxu0 0.0
      %3090 = vmatpush1.msra.mxu0 0.0
      %3091 = vmatprep.subr.mxu0 0.0
      %3092 = vmatpush1.msra.mxu0 0.0
      %3093 = vmatprep.subr.mxu0 0.0
      %3094 = vmatpush1.msra.mxu0 0.0
      %3095 = vmatprep.subr.mxu0 0.0
      %3096 = vmatpush1.msra.mxu0 0.0
      %3097 = vmatprep.subr.mxu0 0.0
      %3098 = vmatpush1.msra.mxu0 0.0
      %3099 = vmatprep.subr.mxu0 0.0
      %3100 = vmatpush1.msra.mxu0 0.0
      %3101 = vmatprep.subr.mxu0 0.0
      %3102 = vmatpush1.msra.mxu0 0.0
      %3103 = vmatprep.mubr.f32.mxu0 0.0
      %3104 = vmatmul.mubr.f32.gmra.mrb[0].mxu0 %v2942
      %v3105 = vpop.f32.mrb[0].mxu0
      %v3106 = vadd.f32 %v2938, %v3105
      %v3107 = vpop.f32.mrb[0].mxu0
      %v3108 = vadd.f32 %v2938, %v3107
      %3109 = vdwg.mxu0
      %3110 = vmatprep.subr.mxu0 %v2907
      %3111 = vmatpush1.msra.mxu0 %v2906
      %3112 = vmatprep.subr.mxu0 %v2915
      %3113 = vmatpush1.msra.mxu0 %v2914
      %3114 = vmatprep.subr.mxu0 %v2923
      %3115 = vmatpush1.msra.mxu0 %v2922
      %3116 = vmatprep.subr.mxu0 %v2931
      %3117 = vmatpush1.msra.mxu0 %v2930
      %3118 = vmatprep.subr.mxu0 %v2960
      %3119 = vmatpush1.msra.mxu0 %v2957
      %3120 = vmatprep.subr.mxu0 0.0
      %3121 = vmatpush1.msra.mxu0 0.0
      %3122 = vmatprep.subr.mxu0 0.0
      %3123 = vmatpush1.msra.mxu0 0.0
      %3124 = vmatprep.subr.mxu0 0.0
      %3125 = vmatpush1.msra.mxu0 0.0
      %3126 = vmatprep.subr.mxu0 0.0
      %3127 = vmatpush1.msra.mxu0 0.0
      %3128 = vmatprep.subr.mxu0 0.0
      %3129 = vmatpush1.msra.mxu0 0.0
      %3130 = vmatprep.subr.mxu0 0.0
      %3131 = vmatpush1.msra.mxu0 0.0
      %3132 = vmatprep.subr.mxu0 0.0
      %3133 = vmatpush1.msra.mxu0 0.0
      %3134 = vmatprep.subr.mxu0 0.0
      %3135 = vmatpush1.msra.mxu0 0.0
      %3136 = vmatprep.subr.mxu0 0.0
      %3137 = vmatpush1.msra.mxu0 0.0
      %3138 = vmatprep.subr.mxu0 0.0
      %3139 = vmatpush1.msra.mxu0 0.0
      %3140 = vmatprep.subr.mxu0 0.0
      %3141 = vmatpush1.msra.mxu0 0.0
      %3142 = vmatprep.subr.mxu0 0.0
      %3143 = vmatpush1.msra.mxu0 0.0
      %3144 = vmatprep.subr.mxu0 0.0
      %3145 = vmatpush1.msra.mxu0 0.0
      %3146 = vmatprep.subr.mxu0 0.0
      %3147 = vmatpush1.msra.mxu0 0.0
      %3148 = vmatprep.subr.mxu0 0.0
      %3149 = vmatpush1.msra.mxu0 0.0
      %3150 = vmatprep.subr.mxu0 0.0
      %3151 = vmatpush1.msra.mxu0 0.0
      %3152 = vmatprep.subr.mxu0 0.0
      %3153 = vmatpush1.msra.mxu0 0.0
      %3154 = vmatprep.subr.mxu0 0.0
      %3155 = vmatpush1.msra.mxu0 0.0
      %3156 = vmatprep.subr.mxu0 0.0
      %3157 = vmatpush1.msra.mxu0 0.0
      %3158 = vmatprep.subr.mxu0 0.0
      %3159 = vmatpush1.msra.mxu0 0.0
      %3160 = vmatprep.subr.mxu0 0.0
      %3161 = vmatpush1.msra.mxu0 0.0
      %3162 = vmatprep.subr.mxu0 0.0
      %3163 = vmatpush1.msra.mxu0 0.0
      %3164 = vmatprep.subr.mxu0 0.0
      %3165 = vmatpush1.msra.mxu0 0.0
      %3166 = vmatprep.subr.mxu0 0.0
      %3167 = vmatpush1.msra.mxu0 0.0
      %3168 = vmatprep.subr.mxu0 0.0
      %3169 = vmatpush1.msra.mxu0 0.0
      %3170 = vmatprep.subr.mxu0 0.0
      %3171 = vmatpush1.msra.mxu0 0.0
      %3172 = vmatprep.subr.mxu0 0.0
      %3173 = vmatpush1.msra.mxu0 0.0
      %3174 = vmatprep.mubr.f32.mxu0 0.0
      %3175 = vmatmul.mubr.f32.gmra.mrb[0].mxu0 %v2942
      %v3176 = vpop.f32.mrb[0].mxu0
      %v3177 = vadd.f32 %v2938, %v3176
      %v3178 = vpop.f32.mrb[0].mxu0
      %v3179 = vadd.f32 %v2938, %v3178
      %3180 = vdwg.mxu0
      %3181 = vmatprep.subr.mxu0 %v2909
      %3182 = vmatpush1.msra.mxu0 %v2908
      %3183 = vmatprep.subr.mxu0 %v2917
      %3184 = vmatpush1.msra.mxu0 %v2916
      %3185 = vmatprep.subr.mxu0 %v2925
      %3186 = vmatpush1.msra.mxu0 %v2924
      %3187 = vmatprep.subr.mxu0 %v2933
      %3188 = vmatpush1.msra.mxu0 %v2932
      %3189 = vmatprep.subr.mxu0 %v2966
      %3190 = vmatpush1.msra.mxu0 %v2963
      %3191 = vmatprep.subr.mxu0 0.0
      %3192 = vmatpush1.msra.mxu0 0.0
      %3193 = vmatprep.subr.mxu0 0.0
      %3194 = vmatpush1.msra.mxu0 0.0
      %3195 = vmatprep.subr.mxu0 0.0
      %3196 = vmatpush1.msra.mxu0 0.0
      %3197 = vmatprep.subr.mxu0 0.0
      %3198 = vmatpush1.msra.mxu0 0.0
      %3199 = vmatprep.subr.mxu0 0.0
      %3200 = vmatpush1.msra.mxu0 0.0
      %3201 = vmatprep.subr.mxu0 0.0
      %3202 = vmatpush1.msra.mxu0 0.0
      %3203 = vmatprep.subr.mxu0 0.0
      %3204 = vmatpush1.msra.mxu0 0.0
      %3205 = vmatprep.subr.mxu0 0.0
      %3206 = vmatpush1.msra.mxu0 0.0
      %3207 = vmatprep.subr.mxu0 0.0
      %3208 = vmatpush1.msra.mxu0 0.0
      %3209 = vmatprep.subr.mxu0 0.0
      %3210 = vmatpush1.msra.mxu0 0.0
      %3211 = vmatprep.subr.mxu0 0.0
      %3212 = vmatpush1.msra.mxu0 0.0
      %3213 = vmatprep.subr.mxu0 0.0
      %3214 = vmatpush1.msra.mxu0 0.0
      %3215 = vmatprep.subr.mxu0 0.0
      %3216 = vmatpush1.msra.mxu0 0.0
      %3217 = vmatprep.subr.mxu0 0.0
      %3218 = vmatpush1.msra.mxu0 0.0
      %3219 = vmatprep.subr.mxu0 0.0
      %3220 = vmatpush1.msra.mxu0 0.0
      %3221 = vmatprep.subr.mxu0 0.0
      %3222 = vmatpush1.msra.mxu0 0.0
      %3223 = vmatprep.subr.mxu0 0.0
      %3224 = vmatpush1.msra.mxu0 0.0
      %3225 = vmatprep.subr.mxu0 0.0
      %3226 = vmatpush1.msra.mxu0 0.0
      %3227 = vmatprep.subr.mxu0 0.0
      %3228 = vmatpush1.msra.mxu0 0.0
      %3229 = vmatprep.subr.mxu0 0.0
      %3230 = vmatpush1.msra.mxu0 0.0
      %3231 = vmatprep.subr.mxu0 0.0
      %3232 = vmatpush1.msra.mxu0 0.0
      %3233 = vmatprep.subr.mxu0 0.0
      %3234 = vmatpush1.msra.mxu0 0.0
      %3235 = vmatprep.subr.mxu0 0.0
      %3236 = vmatpush1.msra.mxu0 0.0
      %3237 = vmatprep.subr.mxu0 0.0
      %3238 = vmatpush1.msra.mxu0 0.0
      %3239 = vmatprep.subr.mxu0 0.0
      %3240 = vmatpush1.msra.mxu0 0.0
      %3241 = vmatprep.subr.mxu0 0.0
      %3242 = vmatpush1.msra.mxu0 0.0
      %3243 = vmatprep.subr.mxu0 0.0
      %3244 = vmatpush1.msra.mxu0 0.0
      %3245 = vmatprep.mubr.f32.mxu0 0.0
      %3246 = vmatmul.mubr.f32.gmra.mrb[0].mxu0 %v2942
      %v3247 = vpop.f32.mrb[0].mxu0
      %v3248 = vadd.f32 %v2938, %v3247
      %v3249 = vpop.f32.mrb[0].mxu0
      %v3250 = vadd.f32 %v2938, %v3249
      %3251 = vdwg.mxu0
      %vm3252 = vcmp.ge.f32.partialorder %v3035, 0.0
      %vm3253 = vcmp.ge.f32.partialorder %v3037, 0.0
      %vm3254 = vcmp.ge.f32.partialorder %v3106, 0.0
      %vm3255 = vcmp.ge.f32.partialorder %v3108, 0.0
      %vm3256 = vcmp.ge.f32.partialorder %v3177, 0.0
      %vm3257 = vcmp.ge.f32.partialorder %v3179, 0.0
      %vm3258 = vcmp.ge.f32.partialorder %v3248, 0.0
      %vm3259 = vcmp.ge.f32.partialorder %v3250, 0.0
      %v3260 = vmul.f32 %v3035, 0.1
      %v3261 = vmul.f32 %v3037, 0.1
      %v3262 = vmul.f32 %v3106, 0.1
      %v3263 = vmul.f32 %v3108, 0.1
      %v3264 = vmul.f32 %v3177, 0.1
      %v3265 = vmul.f32 %v3179, 0.1
      %v3266 = vmul.f32 %v3248, 0.1
      %v3267 = vmul.f32 %v3250, 0.1
      %v3268 = vsel %vm3252, %v3035, %v3260
      %v3269 = vsel %vm3253, %v3037, %v3261
      %v3270 = vsel %vm3254, %v3106, %v3262
      %v3271 = vsel %vm3255, %v3108, %v3263
      %v3272 = vsel %vm3256, %v3177, %v3264
      %v3273 = vsel %vm3257, %v3179, %v3265
      %v3274 = vsel %vm3258, %v3248, %v3266
      %v3275 = vsel %vm3259, %v3250, %v3267
      %3277 = vrot.lane.b32.xlu0 %v3275, 33
      %v3278 = vpop.permute.xlu0 %3277
      %3287 = vrot.lane.b32.xlu0 %v3268, 33
      %v3288 = vpop.permute.xlu0 %3287
      %3289 = vrot.lane.b32.xlu0 %v3269, 33
      %v3290 = vpop.permute.xlu0 %3289
      %3291 = vrot.lane.b32.xlu0 %v3270, 33
      %v3292 = vpop.permute.xlu0 %3291
      %3293 = vrot.lane.b32.xlu0 %v3271, 33
      %v3294 = vpop.permute.xlu0 %3293
      %3295 = vrot.lane.b32.xlu0 %v3272, 33
      %v3296 = vpop.permute.xlu0 %3295
      %3297 = vrot.lane.b32.xlu0 %v3273, 33
      %v3298 = vpop.permute.xlu0 %3297
      %3299 = vrot.lane.b32.xlu0 %v3274, 33
      %v3300 = vpop.permute.xlu0 %3299
      %v3301 = vsel %vm812, %v3288, %v3290
      %v3302 = vsel %vm812, %v3290, %v3292
      %v3303 = vsel %vm812, %v3292, %v3294
      %v3304 = vsel %vm812, %v3294, %v3296
      %v3305 = vsel %vm812, %v3296, %v3298
      %v3306 = vsel %vm812, %v3298, %v3300
      %v3307 = vsel %vm812, %v3300, %v3278
      %v3316 = vsel %vm812, %v3278, %v3288
      %v3317 = vmul.f32 %v3316, %v2218
      %v3318 = vmul.f32 %v3301, %v2222
      %v3319 = vmul.f32 %v3302, %v2226
      %v3320 = vmul.f32 %v3303, %v2230
      %v3321 = vmul.f32 %v3304, %v2234
      %v3322 = vmul.f32 %v3305, %v2238
      %v3323 = vmul.f32 %v3306, %v2242
      %v3324 = vmul.f32 %v3307, %v2246
      %3325 = vrot.lane.b32.xlu0 %v3275, 32
      %v3326 = vpop.permute.xlu0 %3325
      %3328 = vrot.lane.b32.xlu0 %v3268, 32
      %v3329 = vpop.permute.xlu0 %3328
      %3330 = vrot.lane.b32.xlu0 %v3269, 32
      %v3331 = vpop.permute.xlu0 %3330
      %3332 = vrot.lane.b32.xlu0 %v3270, 32
      %v3333 = vpop.permute.xlu0 %3332
      %3334 = vrot.lane.b32.xlu0 %v3271, 32
      %v3335 = vpop.permute.xlu0 %3334
      %3336 = vrot.lane.b32.xlu0 %v3272, 32
      %v3337 = vpop.permute.xlu0 %3336
      %3338 = vrot.lane.b32.xlu0 %v3273, 32
      %v3339 = vpop.permute.xlu0 %3338
      %3340 = vrot.lane.b32.xlu0 %v3274, 32
      %v3341 = vpop.permute.xlu0 %3340
      %v3342 = vsel %vm886, %v3329, %v3331
      %v3343 = vsel %vm886, %v3331, %v3333
      %v3344 = vsel %vm886, %v3333, %v3335
      %v3345 = vsel %vm886, %v3335, %v3337
      %v3346 = vsel %vm886, %v3337, %v3339
      %v3347 = vsel %vm886, %v3339, %v3341
      %v3348 = vsel %vm886, %v3341, %v3326
      %v3357 = vsel %vm886, %v3326, %v3329
      %v3358 = vmul.f32 %v3357, %v2291
      %v3359 = vmul.f32 %v3342, %v2295
      %v3360 = vmul.f32 %v3343, %v2299
      %v3361 = vmul.f32 %v3344, %v2303
      %v3362 = vmul.f32 %v3345, %v2307
      %v3363 = vmul.f32 %v3346, %v2311
      %v3364 = vmul.f32 %v3347, %v2315
      %v3365 = vmul.f32 %v3348, %v2319
      %3366 = vrot.lane.b32.xlu0 %v3275, 31
      %v3367 = vpop.permute.xlu0 %3366
      %3369 = vrot.lane.b32.xlu0 %v3268, 31
      %v3370 = vpop.permute.xlu0 %3369
      %3371 = vrot.lane.b32.xlu0 %v3269, 31
      %v3372 = vpop.permute.xlu0 %3371
      %3373 = vrot.lane.b32.xlu0 %v3270, 31
      %v3374 = vpop.permute.xlu0 %3373
      %3375 = vrot.lane.b32.xlu0 %v3271, 31
      %v3376 = vpop.permute.xlu0 %3375
      %3377 = vrot.lane.b32.xlu0 %v3272, 31
      %v3378 = vpop.permute.xlu0 %3377
      %3379 = vrot.lane.b32.xlu0 %v3273, 31
      %v3380 = vpop.permute.xlu0 %3379
      %3381 = vrot.lane.b32.xlu0 %v3274, 31
      %v3382 = vpop.permute.xlu0 %3381
      %v3383 = vsel %vm960, %v3370, %v3372
      %v3384 = vsel %vm960, %v3372, %v3374
      %v3385 = vsel %vm960, %v3374, %v3376
      %v3386 = vsel %vm960, %v3376, %v3378
      %v3387 = vsel %vm960, %v3378, %v3380
      %v3388 = vsel %vm960, %v3380, %v3382
      %v3389 = vsel %vm960, %v3382, %v3367
      %v3398 = vsel %vm960, %v3367, %v3370
      %v3399 = vmul.f32 %v3398, %v2364
      %v3400 = vmul.f32 %v3383, %v2368
      %v3401 = vmul.f32 %v3384, %v2372
      %v3402 = vmul.f32 %v3385, %v2376
      %v3403 = vmul.f32 %v3386, %v2380
      %v3404 = vmul.f32 %v3387, %v2384
      %v3405 = vmul.f32 %v3388, %v2388
      %v3406 = vmul.f32 %v3389, %v2392
      %3407 = vrot.lane.b32.xlu0 %v3275, 1
      %v3408 = vpop.permute.xlu0 %3407
      %3410 = vrot.lane.b32.xlu0 %v3268, 1
      %v3411 = vpop.permute.xlu0 %3410
      %3412 = vrot.lane.b32.xlu0 %v3269, 1
      %v3413 = vpop.permute.xlu0 %3412
      %3414 = vrot.lane.b32.xlu0 %v3270, 1
      %v3415 = vpop.permute.xlu0 %3414
      %3416 = vrot.lane.b32.xlu0 %v3271, 1
      %v3417 = vpop.permute.xlu0 %3416
      %3418 = vrot.lane.b32.xlu0 %v3272, 1
      %v3419 = vpop.permute.xlu0 %3418
      %3420 = vrot.lane.b32.xlu0 %v3273, 1
      %v3421 = vpop.permute.xlu0 %3420
      %3422 = vrot.lane.b32.xlu0 %v3274, 1
      %v3423 = vpop.permute.xlu0 %3422
      %v3424 = vsel %vm1108, %v3411, %v3413
      %v3425 = vsel %vm1108, %v3413, %v3415
      %v3426 = vsel %vm1108, %v3415, %v3417
      %v3427 = vsel %vm1108, %v3417, %v3419
      %v3428 = vsel %vm1108, %v3419, %v3421
      %v3429 = vsel %vm1108, %v3421, %v3423
      %v3430 = vsel %vm1108, %v3423, %v3408
      %v3439 = vsel %vm1108, %v3408, %v3411
      %v3440 = vmul.f32 %v3439, %v2437
      %v3441 = vmul.f32 %v3424, %v2441
      %v3442 = vmul.f32 %v3425, %v2445
      %v3443 = vmul.f32 %v3426, %v2449
      %v3444 = vmul.f32 %v3427, %v2453
      %v3445 = vmul.f32 %v3428, %v2457
      %v3446 = vmul.f32 %v3429, %v2461
      %v3447 = vmul.f32 %v3430, %v2465
      %v3448 = vmul.f32 %v3268, %v2477
      %v3449 = vmul.f32 %v3269, %v2481
      %v3450 = vmul.f32 %v3270, %v2485
      %v3451 = vmul.f32 %v3271, %v2489
      %v3452 = vmul.f32 %v3272, %v2493
      %v3453 = vmul.f32 %v3273, %v2497
      %v3454 = vmul.f32 %v3274, %v2501
      %v3455 = vmul.f32 %v3275, %v2505
      %3456 = vrot.lane.b32.xlu0 %v3268, 127
      %v3457 = vpop.permute.xlu0 %3456
      %3458 = vrot.lane.b32.xlu0 %v3269, 127
      %v3459 = vpop.permute.xlu0 %3458
      %3460 = vrot.lane.b32.xlu0 %v3270, 127
      %v3461 = vpop.permute.xlu0 %3460
      %3462 = vrot.lane.b32.xlu0 %v3271, 127
      %v3463 = vpop.permute.xlu0 %3462
      %3464 = vrot.lane.b32.xlu0 %v3272, 127
      %v3465 = vpop.permute.xlu0 %3464
      %3466 = vrot.lane.b32.xlu0 %v3273, 127
      %v3467 = vpop.permute.xlu0 %3466
      %3468 = vrot.lane.b32.xlu0 %v3274, 127
      %v3469 = vpop.permute.xlu0 %3468
      %3470 = vrot.lane.b32.xlu0 %v3275, 127
      %v3471 = vpop.permute.xlu0 %3470
      %v3472 = vsel %vm1233, %v3457, %v3459
      %v3473 = vsel %vm1233, %v3459, %v3461
      %v3474 = vsel %vm1233, %v3461, %v3463
      %v3475 = vsel %vm1233, %v3463, %v3465
      %v3476 = vsel %vm1233, %v3465, %v3467
      %v3477 = vsel %vm1233, %v3467, %v3469
      %v3478 = vsel %vm1233, %v3469, %v3471
      %v3488 = vsel %vm1233, %v3471, %v3457
      %v3489 = vmul.f32 %v3472, %v2550
      %v3490 = vmul.f32 %v3473, %v2554
      %v3491 = vmul.f32 %v3474, %v2558
      %v3492 = vmul.f32 %v3475, %v2562
      %v3493 = vmul.f32 %v3476, %v2566
      %v3494 = vmul.f32 %v3477, %v2570
      %v3495 = vmul.f32 %v3478, %v2574
      %v3496 = vmul.f32 %v3488, %v2578
      %3497 = vrot.lane.b32.xlu0 %v3268, 97
      %v3498 = vpop.permute.xlu0 %3497
      %3499 = vrot.lane.b32.xlu0 %v3269, 97
      %v3500 = vpop.permute.xlu0 %3499
      %3501 = vrot.lane.b32.xlu0 %v3270, 97
      %v3502 = vpop.permute.xlu0 %3501
      %3503 = vrot.lane.b32.xlu0 %v3271, 97
      %v3504 = vpop.permute.xlu0 %3503
      %3505 = vrot.lane.b32.xlu0 %v3272, 97
      %v3506 = vpop.permute.xlu0 %3505
      %3507 = vrot.lane.b32.xlu0 %v3273, 97
      %v3508 = vpop.permute.xlu0 %3507
      %3509 = vrot.lane.b32.xlu0 %v3274, 97
      %v3510 = vpop.permute.xlu0 %3509
      %3511 = vrot.lane.b32.xlu0 %v3275, 97
      %v3512 = vpop.permute.xlu0 %3511
      %v3513 = vsel %vm1381, %v3498, %v3500
      %v3514 = vsel %vm1381, %v3500, %v3502
      %v3515 = vsel %vm1381, %v3502, %v3504
      %v3516 = vsel %vm1381, %v3504, %v3506
      %v3517 = vsel %vm1381, %v3506, %v3508
      %v3518 = vsel %vm1381, %v3508, %v3510
      %v3519 = vsel %vm1381, %v3510, %v3512
      %v3529 = vsel %vm1381, %v3512, %v3498
      %v3530 = vmul.f32 %v3513, %v2623
      %v3531 = vmul.f32 %v3514, %v2627
      %v3532 = vmul.f32 %v3515, %v2631
      %v3533 = vmul.f32 %v3516, %v2635
      %v3534 = vmul.f32 %v3517, %v2639
      %v3535 = vmul.f32 %v3518, %v2643
      %v3536 = vmul.f32 %v3519, %v2647
      %v3537 = vmul.f32 %v3529, %v2651
      %3538 = vrot.lane.b32.xlu0 %v3268, 96
      %v3539 = vpop.permute.xlu0 %3538
      %3540 = vrot.lane.b32.xlu0 %v3269, 96
      %v3541 = vpop.permute.xlu0 %3540
      %3542 = vrot.lane.b32.xlu0 %v3270, 96
      %v3543 = vpop.permute.xlu0 %3542
      %3544 = vrot.lane.b32.xlu0 %v3271, 96
      %v3545 = vpop.permute.xlu0 %3544
      %3546 = vrot.lane.b32.xlu0 %v3272, 96
      %v3547 = vpop.permute.xlu0 %3546
      %3548 = vrot.lane.b32.xlu0 %v3273, 96
      %v3549 = vpop.permute.xlu0 %3548
      %3550 = vrot.lane.b32.xlu0 %v3274, 96
      %v3551 = vpop.permute.xlu0 %3550
      %3552 = vrot.lane.b32.xlu0 %v3275, 96
      %v3553 = vpop.permute.xlu0 %3552
      %v3554 = vsel %vm1455, %v3539, %v3541
      %v3555 = vsel %vm1455, %v3541, %v3543
      %v3556 = vsel %vm1455, %v3543, %v3545
      %v3557 = vsel %vm1455, %v3545, %v3547
      %v3558 = vsel %vm1455, %v3547, %v3549
      %v3559 = vsel %vm1455, %v3549, %v3551
      %v3560 = vsel %vm1455, %v3551, %v3553
      %v3570 = vsel %vm1455, %v3553, %v3539
      %v3571 = vmul.f32 %v3554, %v2696
      %v3572 = vmul.f32 %v3555, %v2700
      %v3573 = vmul.f32 %v3556, %v2704
      %v3574 = vmul.f32 %v3557, %v2708
      %v3575 = vmul.f32 %v3558, %v2712
      %v3576 = vmul.f32 %v3559, %v2716
      %v3577 = vmul.f32 %v3560, %v2720
      %v3578 = vmul.f32 %v3570, %v2724
      %3579 = vrot.lane.b32.xlu0 %v3268, 95
      %v3580 = vpop.permute.xlu0 %3579
      %3581 = vrot.lane.b32.xlu0 %v3269, 95
      %v3582 = vpop.permute.xlu0 %3581
      %3583 = vrot.lane.b32.xlu0 %v3270, 95
      %v3584 = vpop.permute.xlu0 %3583
      %3585 = vrot.lane.b32.xlu0 %v3271, 95
      %v3586 = vpop.permute.xlu0 %3585
      %3587 = vrot.lane.b32.xlu0 %v3272, 95
      %v3588 = vpop.permute.xlu0 %3587
      %3589 = vrot.lane.b32.xlu0 %v3273, 95
      %v3590 = vpop.permute.xlu0 %3589
      %3591 = vrot.lane.b32.xlu0 %v3274, 95
      %v3592 = vpop.permute.xlu0 %3591
      %3593 = vrot.lane.b32.xlu0 %v3275, 95
      %v3594 = vpop.permute.xlu0 %3593
      %v3595 = vsel %vm1529, %v3580, %v3582
      %v3596 = vsel %vm1529, %v3582, %v3584
      %v3597 = vsel %vm1529, %v3584, %v3586
      %v3598 = vsel %vm1529, %v3586, %v3588
      %v3599 = vsel %vm1529, %v3588, %v3590
      %v3600 = vsel %vm1529, %v3590, %v3592
      %v3601 = vsel %vm1529, %v3592, %v3594
      %v3611 = vsel %vm1529, %v3594, %v3580
      %v3612 = vmul.f32 %v3595, %v2769
      %v3613 = vmul.f32 %v3596, %v2773
      %v3614 = vmul.f32 %v3597, %v2777
      %v3615 = vmul.f32 %v3598, %v2781
      %v3616 = vmul.f32 %v3599, %v2785
      %v3617 = vmul.f32 %v3600, %v2789
      %v3618 = vmul.f32 %v3601, %v2793
      %v3619 = vmul.f32 %v3611, %v2797
      %v3628 = vrot.slane %v3358, 4
      %v3629 = vrot.slane %v3359, 4
      %v3630 = vrot.slane %v3360, 4
      %v3631 = vrot.slane %v3361, 4
      %v3632 = vrot.slane %v3362, 4
      %v3633 = vrot.slane %v3363, 4
      %v3634 = vrot.slane %v3364, 4
      %v3635 = vrot.slane %v3365, 4
      %v3652 = vrot.slane %v3440, 4
      %v3653 = vrot.slane %v3441, 4
      %v3654 = vrot.slane %v3442, 4
      %v3655 = vrot.slane %v3443, 4
      %v3656 = vrot.slane %v3444, 4
      %v3657 = vrot.slane %v3445, 4
      %v3658 = vrot.slane %v3446, 4
      %v3659 = vrot.slane %v3447, 4
      %v3676 = vrot.slane %v3489, 4
      %v3677 = vrot.slane %v3490, 4
      %v3678 = vrot.slane %v3491, 4
      %v3679 = vrot.slane %v3492, 4
      %v3680 = vrot.slane %v3493, 4
      %v3681 = vrot.slane %v3494, 4
      %v3682 = vrot.slane %v3495, 4
      %v3683 = vrot.slane %v3496, 4
      %v3700 = vrot.slane %v3571, 4
      %v3701 = vrot.slane %v3572, 4
      %v3702 = vrot.slane %v3573, 4
      %v3703 = vrot.slane %v3574, 4
      %v3704 = vrot.slane %v3575, 4
      %v3705 = vrot.slane %v3576, 4
      %v3706 = vrot.slane %v3577, 4
      %v3707 = vrot.slane %v3578, 4
      %v3716 = vsel %vm1791, %v3317, %v3628
      %v3717 = vsel %vm1791, %v3318, %v3629
      %v3718 = vsel %vm1791, %v3319, %v3630
      %v3719 = vsel %vm1791, %v3320, %v3631
      %v3720 = vsel %vm1791, %v3321, %v3632
      %v3721 = vsel %vm1791, %v3322, %v3633
      %v3722 = vsel %vm1791, %v3323, %v3634
      %v3723 = vsel %vm1791, %v3324, %v3635
      %v3724 = vsel %vm1791, %v3399, %v3652
      %v3725 = vsel %vm1791, %v3400, %v3653
      %v3726 = vsel %vm1791, %v3401, %v3654
      %v3727 = vsel %vm1791, %v3402, %v3655
      %v3728 = vsel %vm1791, %v3403, %v3656
      %v3729 = vsel %vm1791, %v3404, %v3657
      %v3730 = vsel %vm1791, %v3405, %v3658
      %v3731 = vsel %vm1791, %v3406, %v3659
      %v3732 = vsel %vm1791, %v3448, %v3676
      %v3733 = vsel %vm1791, %v3449, %v3677
      %v3734 = vsel %vm1791, %v3450, %v3678
      %v3735 = vsel %vm1791, %v3451, %v3679
      %v3736 = vsel %vm1791, %v3452, %v3680
      %v3737 = vsel %vm1791, %v3453, %v3681
      %v3738 = vsel %vm1791, %v3454, %v3682
      %v3739 = vsel %vm1791, %v3455, %v3683
      %v3740 = vsel %vm1791, %v3530, %v3700
      %v3741 = vsel %vm1791, %v3531, %v3701
      %v3742 = vsel %vm1791, %v3532, %v3702
      %v3743 = vsel %vm1791, %v3533, %v3703
      %v3744 = vsel %vm1791, %v3534, %v3704
      %v3745 = vsel %vm1791, %v3535, %v3705
      %v3746 = vsel %vm1791, %v3536, %v3706
      %v3747 = vsel %vm1791, %v3537, %v3707
      %v3748 = vld [vmem:[%s374] sm:$0xff]
      %v3749 = vld [vmem:[%s374 + $0x8] sm:$0xff]
      %v3750 = vld [vmem:[%s374 + $0x10] sm:$0xff]
      %v3751 = vld [vmem:[%s374 + $0x18] sm:$0xff]
      %v3753 = vcombine.high %v3751, %v3751
      %3754 = vrot.lane.b32.xlu0 %v3753, 33
      %v3755 = vpop.permute.xlu0 %3754
      %v3760 = vcombine.high %v3748, %v3748
      %v3761 = vcombine.high %v3749, %v3749
      %v3762 = vcombine.high %v3750, %v3750
      %3763 = vrot.lane.b32.xlu0 %v3748, 33
      %v3764 = vpop.permute.xlu0 %3763
      %3765 = vrot.lane.b32.xlu0 %v3760, 33
      %v3766 = vpop.permute.xlu0 %3765
      %3767 = vrot.lane.b32.xlu0 %v3749, 33
      %v3768 = vpop.permute.xlu0 %3767
      %3769 = vrot.lane.b32.xlu0 %v3761, 33
      %v3770 = vpop.permute.xlu0 %3769
      %3771 = vrot.lane.b32.xlu0 %v3750, 33
      %v3772 = vpop.permute.xlu0 %3771
      %3773 = vrot.lane.b32.xlu0 %v3762, 33
      %v3774 = vpop.permute.xlu0 %3773
      %3775 = vrot.lane.b32.xlu0 %v3751, 33
      %v3776 = vpop.permute.xlu0 %3775
      %v3777 = vsel %vm812, %v3764, %v3766
      %v3778 = vsel %vm812, %v3766, %v3768
      %v3779 = vsel %vm812, %v3768, %v3770
      %v3780 = vsel %vm812, %v3770, %v3772
      %v3781 = vsel %vm812, %v3772, %v3774
      %v3782 = vsel %vm812, %v3774, %v3776
      %v3783 = vsel %vm812, %v3776, %v3755
      %v3792 = vsel %vm812, %v3755, %v3764
      %v3793 = vmul.f32 %v3792, %v2218
      %v3794 = vmul.f32 %v3777, %v2222
      %v3795 = vmul.f32 %v3778, %v2226
      %v3796 = vmul.f32 %v3779, %v2230
      %v3797 = vmul.f32 %v3780, %v2234
      %v3798 = vmul.f32 %v3781, %v2238
      %v3799 = vmul.f32 %v3782, %v2242
      %v3800 = vmul.f32 %v3783, %v2246
      %3801 = vrot.lane.b32.xlu0 %v3753, 32
      %v3802 = vpop.permute.xlu0 %3801
      %3804 = vrot.lane.b32.xlu0 %v3748, 32
      %v3805 = vpop.permute.xlu0 %3804
      %3806 = vrot.lane.b32.xlu0 %v3760, 32
      %v3807 = vpop.permute.xlu0 %3806
      %3808 = vrot.lane.b32.xlu0 %v3749, 32
      %v3809 = vpop.permute.xlu0 %3808
      %3810 = vrot.lane.b32.xlu0 %v3761, 32
      %v3811 = vpop.permute.xlu0 %3810
      %3812 = vrot.lane.b32.xlu0 %v3750, 32
      %v3813 = vpop.permute.xlu0 %3812
      %3814 = vrot.lane.b32.xlu0 %v3762, 32
      %v3815 = vpop.permute.xlu0 %3814
      %3816 = vrot.lane.b32.xlu0 %v3751, 32
      %v3817 = vpop.permute.xlu0 %3816
      %v3818 = vsel %vm886, %v3805, %v3807
      %v3819 = vsel %vm886, %v3807, %v3809
      %v3820 = vsel %vm886, %v3809, %v3811
      %v3821 = vsel %vm886, %v3811, %v3813
      %v3822 = vsel %vm886, %v3813, %v3815
      %v3823 = vsel %vm886, %v3815, %v3817
      %v3824 = vsel %vm886, %v3817, %v3802
      %v3833 = vsel %vm886, %v3802, %v3805
      %v3834 = vmul.f32 %v3833, %v2291
      %v3835 = vmul.f32 %v3818, %v2295
      %v3836 = vmul.f32 %v3819, %v2299
      %v3837 = vmul.f32 %v3820, %v2303
      %v3838 = vmul.f32 %v3821, %v2307
      %v3839 = vmul.f32 %v3822, %v2311
      %v3840 = vmul.f32 %v3823, %v2315
      %v3841 = vmul.f32 %v3824, %v2319
      %3842 = vrot.lane.b32.xlu0 %v3753, 31
      %v3843 = vpop.permute.xlu0 %3842
      %3845 = vrot.lane.b32.xlu0 %v3748, 31
      %v3846 = vpop.permute.xlu0 %3845
      %3847 = vrot.lane.b32.xlu0 %v3760, 31
      %v3848 = vpop.permute.xlu0 %3847
      %3849 = vrot.lane.b32.xlu0 %v3749, 31
      %v3850 = vpop.permute.xlu0 %3849
      %3851 = vrot.lane.b32.xlu0 %v3761, 31
      %v3852 = vpop.permute.xlu0 %3851
      %3853 = vrot.lane.b32.xlu0 %v3750, 31
      %v3854 = vpop.permute.xlu0 %3853
      %3855 = vrot.lane.b32.xlu0 %v3762, 31
      %v3856 = vpop.permute.xlu0 %3855
      %3857 = vrot.lane.b32.xlu0 %v3751, 31
      %v3858 = vpop.permute.xlu0 %3857
      %v3859 = vsel %vm960, %v3846, %v3848
      %v3860 = vsel %vm960, %v3848, %v3850
      %v3861 = vsel %vm960, %v3850, %v3852
      %v3862 = vsel %vm960, %v3852, %v3854
      %v3863 = vsel %vm960, %v3854, %v3856
      %v3864 = vsel %vm960, %v3856, %v3858
      %v3865 = vsel %vm960, %v3858, %v3843
      %v3874 = vsel %vm960, %v3843, %v3846
      %v3875 = vmul.f32 %v3874, %v2364
      %v3876 = vmul.f32 %v3859, %v2368
      %v3877 = vmul.f32 %v3860, %v2372
      %v3878 = vmul.f32 %v3861, %v2376
      %v3879 = vmul.f32 %v3862, %v2380
      %v3880 = vmul.f32 %v3863, %v2384
      %v3881 = vmul.f32 %v3864, %v2388
      %v3882 = vmul.f32 %v3865, %v2392
      %3883 = vrot.lane.b32.xlu0 %v3753, 1
      %v3884 = vpop.permute.xlu0 %3883
      %3886 = vrot.lane.b32.xlu0 %v3748, 1
      %v3887 = vpop.permute.xlu0 %3886
      %3888 = vrot.lane.b32.xlu0 %v3760, 1
      %v3889 = vpop.permute.xlu0 %3888
      %3890 = vrot.lane.b32.xlu0 %v3749, 1
      %v3891 = vpop.permute.xlu0 %3890
      %3892 = vrot.lane.b32.xlu0 %v3761, 1
      %v3893 = vpop.permute.xlu0 %3892
      %3894 = vrot.lane.b32.xlu0 %v3750, 1
      %v3895 = vpop.permute.xlu0 %3894
      %3896 = vrot.lane.b32.xlu0 %v3762, 1
      %v3897 = vpop.permute.xlu0 %3896
      %3898 = vrot.lane.b32.xlu0 %v3751, 1
      %v3899 = vpop.permute.xlu0 %3898
      %v3900 = vsel %vm1108, %v3887, %v3889
      %v3901 = vsel %vm1108, %v3889, %v3891
      %v3902 = vsel %vm1108, %v3891, %v3893
      %v3903 = vsel %vm1108, %v3893, %v3895
      %v3904 = vsel %vm1108, %v3895, %v3897
      %v3905 = vsel %vm1108, %v3897, %v3899
      %v3906 = vsel %vm1108, %v3899, %v3884
      %v3915 = vsel %vm1108, %v3884, %v3887
      %v3916 = vmul.f32 %v3915, %v2437
      %v3917 = vmul.f32 %v3900, %v2441
      %v3918 = vmul.f32 %v3901, %v2445
      %v3919 = vmul.f32 %v3902, %v2449
      %v3920 = vmul.f32 %v3903, %v2453
      %v3921 = vmul.f32 %v3904, %v2457
      %v3922 = vmul.f32 %v3905, %v2461
      %v3923 = vmul.f32 %v3906, %v2465
      %v3932 = vcombine.low %v2477, %v2481
      %v3933 = vcombine.low %v2485, %v2489
      %v3934 = vcombine.low %v2493, %v2497
      %v3935 = vcombine.low %v2501, %v2505
      %v3940 = vmul.f32 %v3748, %v3932
      %v3941 = vmul.f32 %v3749, %v3933
      %v3942 = vmul.f32 %v3750, %v3934
      %v3943 = vmul.f32 %v3751, %v3935
      %3944 = vrot.lane.b32.xlu0 %v3748, 127
      %v3945 = vpop.permute.xlu0 %3944
      %3946 = vrot.lane.b32.xlu0 %v3760, 127
      %v3947 = vpop.permute.xlu0 %3946
      %3948 = vrot.lane.b32.xlu0 %v3749, 127
      %v3949 = vpop.permute.xlu0 %3948
      %3950 = vrot.lane.b32.xlu0 %v3761, 127
      %v3951 = vpop.permute.xlu0 %3950
      %3952 = vrot.lane.b32.xlu0 %v3750, 127
      %v3953 = vpop.permute.xlu0 %3952
      %3954 = vrot.lane.b32.xlu0 %v3762, 127
      %v3955 = vpop.permute.xlu0 %3954
      %3956 = vrot.lane.b32.xlu0 %v3751, 127
      %v3957 = vpop.permute.xlu0 %3956
      %3958 = vrot.lane.b32.xlu0 %v3753, 127
      %v3959 = vpop.permute.xlu0 %3958
      %v3960 = vsel %vm1233, %v3945, %v3947
      %v3961 = vsel %vm1233, %v3947, %v3949
      %v3962 = vsel %vm1233, %v3949, %v3951
      %v3963 = vsel %vm1233, %v3951, %v3953
      %v3964 = vsel %vm1233, %v3953, %v3955
      %v3965 = vsel %vm1233, %v3955, %v3957
      %v3966 = vsel %vm1233, %v3957, %v3959
      %v3976 = vsel %vm1233, %v3959, %v3945
      %v3977 = vmul.f32 %v3960, %v2550
      %v3978 = vmul.f32 %v3961, %v2554
      %v3979 = vmul.f32 %v3962, %v2558
      %v3980 = vmul.f32 %v3963, %v2562
      %v3981 = vmul.f32 %v3964, %v2566
      %v3982 = vmul.f32 %v3965, %v2570
      %v3983 = vmul.f32 %v3966, %v2574
      %v3984 = vmul.f32 %v3976, %v2578
      %3985 = vrot.lane.b32.xlu0 %v3748, 97
      %v3986 = vpop.permute.xlu0 %3985
      %3987 = vrot.lane.b32.xlu0 %v3760, 97
      %v3988 = vpop.permute.xlu0 %3987
      %3989 = vrot.lane.b32.xlu0 %v3749, 97
      %v3990 = vpop.permute.xlu0 %3989
      %3991 = vrot.lane.b32.xlu0 %v3761, 97
      %v3992 = vpop.permute.xlu0 %3991
      %3993 = vrot.lane.b32.xlu0 %v3750, 97
      %v3994 = vpop.permute.xlu0 %3993
      %3995 = vrot.lane.b32.xlu0 %v3762, 97
      %v3996 = vpop.permute.xlu0 %3995
      %3997 = vrot.lane.b32.xlu0 %v3751, 97
      %v3998 = vpop.permute.xlu0 %3997
      %3999 = vrot.lane.b32.xlu0 %v3753, 97
      %v4000 = vpop.permute.xlu0 %3999
      %v4001 = vsel %vm1381, %v3986, %v3988
      %v4002 = vsel %vm1381, %v3988, %v3990
      %v4003 = vsel %vm1381, %v3990, %v3992
      %v4004 = vsel %vm1381, %v3992, %v3994
      %v4005 = vsel %vm1381, %v3994, %v3996
      %v4006 = vsel %vm1381, %v3996, %v3998
      %v4007 = vsel %vm1381, %v3998, %v4000
      %v4017 = vsel %vm1381, %v4000, %v3986
      %v4018 = vmul.f32 %v4001, %v2623
      %v4019 = vmul.f32 %v4002, %v2627
      %v4020 = vmul.f32 %v4003, %v2631
      %v4021 = vmul.f32 %v4004, %v2635
      %v4022 = vmul.f32 %v4005, %v2639
      %v4023 = vmul.f32 %v4006, %v2643
      %v4024 = vmul.f32 %v4007, %v2647
      %v4025 = vmul.f32 %v4017, %v2651
      %4026 = vrot.lane.b32.xlu0 %v3748, 96
      %v4027 = vpop.permute.xlu0 %4026
      %4028 = vrot.lane.b32.xlu0 %v3760, 96
      %v4029 = vpop.permute.xlu0 %4028
      %4030 = vrot.lane.b32.xlu0 %v3749, 96
      %v4031 = vpop.permute.xlu0 %4030
      %4032 = vrot.lane.b32.xlu0 %v3761, 96
      %v4033 = vpop.permute.xlu0 %4032
      %4034 = vrot.lane.b32.xlu0 %v3750, 96
      %v4035 = vpop.permute.xlu0 %4034
      %4036 = vrot.lane.b32.xlu0 %v3762, 96
      %v4037 = vpop.permute.xlu0 %4036
      %4038 = vrot.lane.b32.xlu0 %v3751, 96
      %v4039 = vpop.permute.xlu0 %4038
      %4040 = vrot.lane.b32.xlu0 %v3753, 96
      %v4041 = vpop.permute.xlu0 %4040
      %v4042 = vsel %vm1455, %v4027, %v4029
      %v4043 = vsel %vm1455, %v4029, %v4031
      %v4044 = vsel %vm1455, %v4031, %v4033
      %v4045 = vsel %vm1455, %v4033, %v4035
      %v4046 = vsel %vm1455, %v4035, %v4037
      %v4047 = vsel %vm1455, %v4037, %v4039
      %v4048 = vsel %vm1455, %v4039, %v4041
      %v4058 = vsel %vm1455, %v4041, %v4027
      %v4059 = vmul.f32 %v4042, %v2696
      %v4060 = vmul.f32 %v4043, %v2700
      %v4061 = vmul.f32 %v4044, %v2704
      %v4062 = vmul.f32 %v4045, %v2708
      %v4063 = vmul.f32 %v4046, %v2712
      %v4064 = vmul.f32 %v4047, %v2716
      %v4065 = vmul.f32 %v4048, %v2720
      %v4066 = vmul.f32 %v4058, %v2724
      %4067 = vrot.lane.b32.xlu0 %v3748, 95
      %v4068 = vpop.permute.xlu0 %4067
      %4069 = vrot.lane.b32.xlu0 %v3760, 95
      %v4070 = vpop.permute.xlu0 %4069
      %4071 = vrot.lane.b32.xlu0 %v3749, 95
      %v4072 = vpop.permute.xlu0 %4071
      %4073 = vrot.lane.b32.xlu0 %v3761, 95
      %v4074 = vpop.permute.xlu0 %4073
      %4075 = vrot.lane.b32.xlu0 %v3750, 95
      %v4076 = vpop.permute.xlu0 %4075
      %4077 = vrot.lane.b32.xlu0 %v3762, 95
      %v4078 = vpop.permute.xlu0 %4077
      %4079 = vrot.lane.b32.xlu0 %v3751, 95
      %v4080 = vpop.permute.xlu0 %4079
      %4081 = vrot.lane.b32.xlu0 %v3753, 95
      %v4082 = vpop.permute.xlu0 %4081
      %v4083 = vsel %vm1529, %v4068, %v4070
      %v4084 = vsel %vm1529, %v4070, %v4072
      %v4085 = vsel %vm1529, %v4072, %v4074
      %v4086 = vsel %vm1529, %v4074, %v4076
      %v4087 = vsel %vm1529, %v4076, %v4078
      %v4088 = vsel %vm1529, %v4078, %v4080
      %v4089 = vsel %vm1529, %v4080, %v4082
      %v4099 = vsel %vm1529, %v4082, %v4068
      %v4100 = vmul.f32 %v4083, %v2769
      %v4101 = vmul.f32 %v4084, %v2773
      %v4102 = vmul.f32 %v4085, %v2777
      %v4103 = vmul.f32 %v4086, %v2781
      %v4104 = vmul.f32 %v4087, %v2785
      %v4105 = vmul.f32 %v4088, %v2789
      %v4106 = vmul.f32 %v4089, %v2793
      %v4107 = vmul.f32 %v4099, %v2797
      %v4116 = vrot.slane %v3834, 4
      %v4117 = vrot.slane %v3835, 4
      %v4118 = vrot.slane %v3836, 4
      %v4119 = vrot.slane %v3837, 4
      %v4120 = vrot.slane %v3838, 4
      %v4121 = vrot.slane %v3839, 4
      %v4122 = vrot.slane %v3840, 4
      %v4123 = vrot.slane %v3841, 4
      %v4140 = vrot.slane %v3916, 4
      %v4141 = vrot.slane %v3917, 4
      %v4142 = vrot.slane %v3918, 4
      %v4143 = vrot.slane %v3919, 4
      %v4144 = vrot.slane %v3920, 4
      %v4145 = vrot.slane %v3921, 4
      %v4146 = vrot.slane %v3922, 4
      %v4147 = vrot.slane %v3923, 4
      %v4160 = vcombine.high %v3940, %v3940
      %v4161 = vcombine.high %v3941, %v3941
      %v4162 = vcombine.high %v3942, %v3942
      %v4163 = vcombine.high %v3943, %v3943
      %v4176 = vrot.slane %v3977, 4
      %v4177 = vrot.slane %v3978, 4
      %v4178 = vrot.slane %v3979, 4
      %v4179 = vrot.slane %v3980, 4
      %v4180 = vrot.slane %v3981, 4
      %v4181 = vrot.slane %v3982, 4
      %v4182 = vrot.slane %v3983, 4
      %v4183 = vrot.slane %v3984, 4
      %v4200 = vrot.slane %v4059, 4
      %v4201 = vrot.slane %v4060, 4
      %v4202 = vrot.slane %v4061, 4
      %v4203 = vrot.slane %v4062, 4
      %v4204 = vrot.slane %v4063, 4
      %v4205 = vrot.slane %v4064, 4
      %v4206 = vrot.slane %v4065, 4
      %v4207 = vrot.slane %v4066, 4
      %v4216 = vsel %vm1791, %v3793, %v4116
      %v4217 = vsel %vm1791, %v3794, %v4117
      %v4218 = vsel %vm1791, %v3795, %v4118
      %v4219 = vsel %vm1791, %v3796, %v4119
      %v4220 = vsel %vm1791, %v3797, %v4120
      %v4221 = vsel %vm1791, %v3798, %v4121
      %v4222 = vsel %vm1791, %v3799, %v4122
      %v4223 = vsel %vm1791, %v3800, %v4123
      %v4224 = vsel %vm1791, %v3875, %v4140
      %v4225 = vsel %vm1791, %v3876, %v4141
      %v4226 = vsel %vm1791, %v3877, %v4142
      %v4227 = vsel %vm1791, %v3878, %v4143
      %v4228 = vsel %vm1791, %v3879, %v4144
      %v4229 = vsel %vm1791, %v3880, %v4145
      %v4230 = vsel %vm1791, %v3881, %v4146
      %v4231 = vsel %vm1791, %v3882, %v4147
      %v4232 = vsel %vm1791, %v3940, %v4176
      %v4233 = vsel %vm1791, %v4160, %v4177
      %v4234 = vsel %vm1791, %v3941, %v4178
      %v4235 = vsel %vm1791, %v4161, %v4179
      %v4236 = vsel %vm1791, %v3942, %v4180
      %v4237 = vsel %vm1791, %v4162, %v4181
      %v4238 = vsel %vm1791, %v3943, %v4182
      %v4239 = vsel %vm1791, %v4163, %v4183
      %v4240 = vsel %vm1791, %v4018, %v4200
      %v4241 = vsel %vm1791, %v4019, %v4201
      %v4242 = vsel %vm1791, %v4020, %v4202
      %v4243 = vsel %vm1791, %v4021, %v4203
      %v4244 = vsel %vm1791, %v4022, %v4204
      %v4245 = vsel %vm1791, %v4023, %v4205
      %v4246 = vsel %vm1791, %v4024, %v4206
      %v4247 = vsel %vm1791, %v4025, %v4207
      %v4288 = vrot.slane %v4216, 4
      %v4289 = vrot.slane %v4217, 4
      %v4290 = vrot.slane %v4218, 4
      %v4291 = vrot.slane %v4219, 4
      %v4292 = vrot.slane %v4220, 4
      %v4293 = vrot.slane %v4221, 4
      %v4294 = vrot.slane %v4222, 4
      %v4295 = vrot.slane %v4223, 4
      %v4296 = vrot.slane %v4224, 4
      %v4297 = vsel %vm1791, %v4288, %v4296
      %v4298 = vrot.slane %v4225, 4
      %v4299 = vsel %vm1791, %v4289, %v4298
      %v4300 = vrot.slane %v4226, 4
      %v4301 = vsel %vm1791, %v4290, %v4300
      %v4302 = vrot.slane %v4227, 4
      %v4303 = vsel %vm1791, %v4291, %v4302
      %v4304 = vrot.slane %v4228, 4
      %v4305 = vsel %vm1791, %v4292, %v4304
      %v4306 = vrot.slane %v4229, 4
      %v4307 = vsel %vm1791, %v4293, %v4306
      %v4308 = vrot.slane %v4230, 4
      %v4309 = vsel %vm1791, %v4294, %v4308
      %v4310 = vrot.slane %v4231, 4
      %v4311 = vsel %vm1791, %v4295, %v4310
      %v4312 = vrot.slane %v4232, 4
      %v4313 = vsel %vm1791, %v4296, %v4312
      %v4314 = vrot.slane %v4233, 4
      %v4315 = vsel %vm1791, %v4298, %v4314
      %v4316 = vrot.slane %v4234, 4
      %v4317 = vsel %vm1791, %v4300, %v4316
      %v4318 = vrot.slane %v4235, 4
      %v4319 = vsel %vm1791, %v4302, %v4318
      %v4320 = vrot.slane %v4236, 4
      %v4321 = vsel %vm1791, %v4304, %v4320
      %v4322 = vrot.slane %v4237, 4
      %v4323 = vsel %vm1791, %v4306, %v4322
      %v4324 = vrot.slane %v4238, 4
      %v4325 = vsel %vm1791, %v4308, %v4324
      %v4326 = vrot.slane %v4239, 4
      %v4327 = vsel %vm1791, %v4310, %v4326
      %v4328 = vrot.slane %v4240, 4
      %v4329 = vsel %vm1791, %v4312, %v4328
      %v4330 = vrot.slane %v4241, 4
      %v4331 = vsel %vm1791, %v4314, %v4330
      %v4332 = vrot.slane %v4242, 4
      %v4333 = vsel %vm1791, %v4316, %v4332
      %v4334 = vrot.slane %v4243, 4
      %v4335 = vsel %vm1791, %v4318, %v4334
      %v4336 = vrot.slane %v4244, 4
      %v4337 = vsel %vm1791, %v4320, %v4336
      %v4338 = vrot.slane %v4245, 4
      %v4339 = vsel %vm1791, %v4322, %v4338
      %v4340 = vrot.slane %v4246, 4
      %v4341 = vsel %vm1791, %v4324, %v4340
      %v4342 = vrot.slane %v4247, 4
      %v4343 = vsel %vm1791, %v4326, %v4342
      %v4344 = vrot.slane %v4100, 4
      %v4345 = vsel %vm1791, %v4328, %v4344
      %v4346 = vrot.slane %v4101, 4
      %v4347 = vsel %vm1791, %v4330, %v4346
      %v4348 = vrot.slane %v4102, 4
      %v4349 = vsel %vm1791, %v4332, %v4348
      %v4350 = vrot.slane %v4103, 4
      %v4351 = vsel %vm1791, %v4334, %v4350
      %v4352 = vrot.slane %v4104, 4
      %v4353 = vsel %vm1791, %v4336, %v4352
      %v4354 = vrot.slane %v4105, 4
      %v4355 = vsel %vm1791, %v4338, %v4354
      %v4356 = vrot.slane %v4106, 4
      %v4357 = vsel %vm1791, %v4340, %v4356
      %v4358 = vrot.slane %v4107, 4
      %v4359 = vsel %vm1791, %v4342, %v4358
      %v4400 = vsel %vm1791, %v3612, %v4288
      %v4401 = vsel %vm1791, %v3613, %v4289
      %v4402 = vsel %vm1791, %v3614, %v4290
      %v4403 = vsel %vm1791, %v3615, %v4291
      %v4404 = vsel %vm1791, %v3616, %v4292
      %v4405 = vsel %vm1791, %v3617, %v4293
      %v4406 = vsel %vm1791, %v3618, %v4294
      %v4407 = vsel %vm1791, %v3619, %v4295
      %v4408 = vld [vmem:[%s8] sm:$0xf]
      %v4409 = vld [vmem:[%s9] sm:$0xf]
      %4411 = vset.pattern.permute.xlu0 0
      %4412 = vperm.xlu0 %4411, %v4409
      %v4413 = vpop.permute.xlu0 %4412
      %vm4415 = vcmask 588800
      %v4417 = vsel %vm4415, %v4408, 0
      %4419 = vmatprep.subr.mxu0 %v3717
      %4420 = vmatpush1.msra.mxu0 %v3716
      %4421 = vmatprep.subr.mxu0 %v3725
      %4422 = vmatpush1.msra.mxu0 %v3724
      %4423 = vmatprep.subr.mxu0 %v3733
      %4424 = vmatpush1.msra.mxu0 %v3732
      %4425 = vmatprep.subr.mxu0 %v3741
      %4426 = vmatpush1.msra.mxu0 %v3740
      %4427 = vmatprep.subr.mxu0 %v4401
      %4428 = vmatpush1.msra.mxu0 %v4400
      %4429 = vmatprep.subr.mxu0 %v4299
      %4430 = vmatpush1.msra.mxu0 %v4297
      %4431 = vmatprep.subr.mxu0 %v4315
      %4432 = vmatpush1.msra.mxu0 %v4313
      %4433 = vmatprep.subr.mxu0 %v4331
      %4434 = vmatpush1.msra.mxu0 %v4329
      %4435 = vmatprep.subr.mxu0 %v4347
      %4436 = vmatpush1.msra.mxu0 %v4345
      %4437 = vmatprep.subr.mxu0 0.0
      %4438 = vmatpush1.msra.mxu0 0.0
      %4439 = vmatprep.subr.mxu0 0.0
      %4440 = vmatpush1.msra.mxu0 0.0
      %4441 = vmatprep.subr.mxu0 0.0
      %4442 = vmatpush1.msra.mxu0 0.0
      %4443 = vmatprep.subr.mxu0 0.0
      %4444 = vmatpush1.msra.mxu0 0.0
      %4445 = vmatprep.subr.mxu0 0.0
      %4446 = vmatpush1.msra.mxu0 0.0
      %4447 = vmatprep.subr.mxu0 0.0
      %4448 = vmatpush1.msra.mxu0 0.0
      %4449 = vmatprep.subr.mxu0 0.0
      %4450 = vmatpush1.msra.mxu0 0.0
      %4451 = vmatprep.subr.mxu0 0.0
      %4452 = vmatpush1.msra.mxu0 0.0
      %4453 = vmatprep.subr.mxu0 0.0
      %4454 = vmatpush1.msra.mxu0 0.0
      %4455 = vmatprep.subr.mxu0 0.0
      %4456 = vmatpush1.msra.mxu0 0.0
      %4457 = vmatprep.subr.mxu0 0.0
      %4458 = vmatpush1.msra.mxu0 0.0
      %4459 = vmatprep.subr.mxu0 0.0
      %4460 = vmatpush1.msra.mxu0 0.0
      %4461 = vmatprep.subr.mxu0 0.0
      %4462 = vmatpush1.msra.mxu0 0.0
      %4463 = vmatprep.subr.mxu0 0.0
      %4464 = vmatpush1.msra.mxu0 0.0
      %4465 = vmatprep.subr.mxu0 0.0
      %4466 = vmatpush1.msra.mxu0 0.0
      %4467 = vmatprep.subr.mxu0 0.0
      %4468 = vmatpush1.msra.mxu0 0.0
      %4469 = vmatprep.subr.mxu0 0.0
      %4470 = vmatpush1.msra.mxu0 0.0
      %4471 = vmatprep.subr.mxu0 0.0
      %4472 = vmatpush1.msra.mxu0 0.0
      %4473 = vmatprep.subr.mxu0 0.0
      %4474 = vmatpush1.msra.mxu0 0.0
      %4475 = vmatprep.subr.mxu0 0.0
      %4476 = vmatpush1.msra.mxu0 0.0
      %4477 = vmatprep.subr.mxu0 0.0
      %4478 = vmatpush1.msra.mxu0 0.0
      %4479 = vmatprep.subr.mxu0 0.0
      %4480 = vmatpush1.msra.mxu0 0.0
      %4481 = vmatprep.subr.mxu0 0.0
      %4482 = vmatpush1.msra.mxu0 0.0
      %4483 = vmatprep.mubr.f32.mxu0 0.0
      %4484 = vmatmul.mubr.f32.gmra.mrb[0].mxu0 %v4417
      %v4485 = vpop.f32.mrb[0].mxu0
      %v4486 = vadd.f32 %v4413, %v4485
      %v4487 = vpop.f32.mrb[0].mxu0
      %v4488 = vadd.f32 %v4413, %v4487
      %4489 = vdwg.mxu0
      %4490 = vmatprep.subr.mxu0 %v3719
      %4491 = vmatpush1.msra.mxu0 %v3718
      %4492 = vmatprep.subr.mxu0 %v3727
      %4493 = vmatpush1.msra.mxu0 %v3726
      %4494 = vmatprep.subr.mxu0 %v3735
      %4495 = vmatpush1.msra.mxu0 %v3734
      %4496 = vmatprep.subr.mxu0 %v3743
      %4497 = vmatpush1.msra.mxu0 %v3742
      %4498 = vmatprep.subr.mxu0 %v4403
      %4499 = vmatpush1.msra.mxu0 %v4402
      %4500 = vmatprep.subr.mxu0 %v4303
      %4501 = vmatpush1.msra.mxu0 %v4301
      %4502 = vmatprep.subr.mxu0 %v4319
      %4503 = vmatpush1.msra.mxu0 %v4317
      %4504 = vmatprep.subr.mxu0 %v4335
      %4505 = vmatpush1.msra.mxu0 %v4333
      %4506 = vmatprep.subr.mxu0 %v4351
      %4507 = vmatpush1.msra.mxu0 %v4349
      %4508 = vmatprep.subr.mxu0 0.0
      %4509 = vmatpush1.msra.mxu0 0.0
      %4510 = vmatprep.subr.mxu0 0.0
      %4511 = vmatpush1.msra.mxu0 0.0
      %4512 = vmatprep.subr.mxu0 0.0
      %4513 = vmatpush1.msra.mxu0 0.0
      %4514 = vmatprep.subr.mxu0 0.0
      %4515 = vmatpush1.msra.mxu0 0.0
      %4516 = vmatprep.subr.mxu0 0.0
      %4517 = vmatpush1.msra.mxu0 0.0
      %4518 = vmatprep.subr.mxu0 0.0
      %4519 = vmatpush1.msra.mxu0 0.0
      %4520 = vmatprep.subr.mxu0 0.0
      %4521 = vmatpush1.msra.mxu0 0.0
      %4522 = vmatprep.subr.mxu0 0.0
      %4523 = vmatpush1.msra.mxu0 0.0
      %4524 = vmatprep.subr.mxu0 0.0
      %4525 = vmatpush1.msra.mxu0 0.0
      %4526 = vmatprep.subr.mxu0 0.0
      %4527 = vmatpush1.msra.mxu0 0.0
      %4528 = vmatprep.subr.mxu0 0.0
      %4529 = vmatpush1.msra.mxu0 0.0
      %4530 = vmatprep.subr.mxu0 0.0
      %4531 = vmatpush1.msra.mxu0 0.0
      %4532 = vmatprep.subr.mxu0 0.0
      %4533 = vmatpush1.msra.mxu0 0.0
      %4534 = vmatprep.subr.mxu0 0.0
      %4535 = vmatpush1.msra.mxu0 0.0
      %4536 = vmatprep.subr.mxu0 0.0
      %4537 = vmatpush1.msra.mxu0 0.0
      %4538 = vmatprep.subr.mxu0 0.0
      %4539 = vmatpush1.msra.mxu0 0.0
      %4540 = vmatprep.subr.mxu0 0.0
      %4541 = vmatpush1.msra.mxu0 0.0
      %4542 = vmatprep.subr.mxu0 0.0
      %4543 = vmatpush1.msra.mxu0 0.0
      %4544 = vmatprep.subr.mxu0 0.0
      %4545 = vmatpush1.msra.mxu0 0.0
      %4546 = vmatprep.subr.mxu0 0.0
      %4547 = vmatpush1.msra.mxu0 0.0
      %4548 = vmatprep.subr.mxu0 0.0
      %4549 = vmatpush1.msra.mxu0 0.0
      %4550 = vmatprep.subr.mxu0 0.0
      %4551 = vmatpush1.msra.mxu0 0.0
      %4552 = vmatprep.subr.mxu0 0.0
      %4553 = vmatpush1.msra.mxu0 0.0
      %4554 = vmatprep.mubr.f32.mxu0 0.0
      %4555 = vmatmul.mubr.f32.gmra.mrb[0].mxu0 %v4417
      %v4556 = vpop.f32.mrb[0].mxu0
      %v4557 = vadd.f32 %v4413, %v4556
      %v4558 = vpop.f32.mrb[0].mxu0
      %v4559 = vadd.f32 %v4413, %v4558
      %4560 = vdwg.mxu0
      %4561 = vmatprep.subr.mxu0 %v3721
      %4562 = vmatpush1.msra.mxu0 %v3720
      %4563 = vmatprep.subr.mxu0 %v3729
      %4564 = vmatpush1.msra.mxu0 %v3728
      %4565 = vmatprep.subr.mxu0 %v3737
      %4566 = vmatpush1.msra.mxu0 %v3736
      %4567 = vmatprep.subr.mxu0 %v3745
      %4568 = vmatpush1.msra.mxu0 %v3744
      %4569 = vmatprep.subr.mxu0 %v4405
      %4570 = vmatpush1.msra.mxu0 %v4404
      %4571 = vmatprep.subr.mxu0 %v4307
      %4572 = vmatpush1.msra.mxu0 %v4305
      %4573 = vmatprep.subr.mxu0 %v4323
      %4574 = vmatpush1.msra.mxu0 %v4321
      %4575 = vmatprep.subr.mxu0 %v4339
      %4576 = vmatpush1.msra.mxu0 %v4337
      %4577 = vmatprep.subr.mxu0 %v4355
      %4578 = vmatpush1.msra.mxu0 %v4353
      %4579 = vmatprep.subr.mxu0 0.0
      %4580 = vmatpush1.msra.mxu0 0.0
      %4581 = vmatprep.subr.mxu0 0.0
      %4582 = vmatpush1.msra.mxu0 0.0
      %4583 = vmatprep.subr.mxu0 0.0
      %4584 = vmatpush1.msra.mxu0 0.0
      %4585 = vmatprep.subr.mxu0 0.0
      %4586 = vmatpush1.msra.mxu0 0.0
      %4587 = vmatprep.subr.mxu0 0.0
      %4588 = vmatpush1.msra.mxu0 0.0
      %4589 = vmatprep.subr.mxu0 0.0
      %4590 = vmatpush1.msra.mxu0 0.0
      %4591 = vmatprep.subr.mxu0 0.0
      %4592 = vmatpush1.msra.mxu0 0.0
      %4593 = vmatprep.subr.mxu0 0.0
      %4594 = vmatpush1.msra.mxu0 0.0
      %4595 = vmatprep.subr.mxu0 0.0
      %4596 = vmatpush1.msra.mxu0 0.0
      %4597 = vmatprep.subr.mxu0 0.0
      %4598 = vmatpush1.msra.mxu0 0.0
      %4599 = vmatprep.subr.mxu0 0.0
      %4600 = vmatpush1.msra.mxu0 0.0
      %4601 = vmatprep.subr.mxu0 0.0
      %4602 = vmatpush1.msra.mxu0 0.0
      %4603 = vmatprep.subr.mxu0 0.0
      %4604 = vmatpush1.msra.mxu0 0.0
      %4605 = vmatprep.subr.mxu0 0.0
      %4606 = vmatpush1.msra.mxu0 0.0
      %4607 = vmatprep.subr.mxu0 0.0
      %4608 = vmatpush1.msra.mxu0 0.0
      %4609 = vmatprep.subr.mxu0 0.0
      %4610 = vmatpush1.msra.mxu0 0.0
      %4611 = vmatprep.subr.mxu0 0.0
      %4612 = vmatpush1.msra.mxu0 0.0
      %4613 = vmatprep.subr.mxu0 0.0
      %4614 = vmatpush1.msra.mxu0 0.0
      %4615 = vmatprep.subr.mxu0 0.0
      %4616 = vmatpush1.msra.mxu0 0.0
      %4617 = vmatprep.subr.mxu0 0.0
      %4618 = vmatpush1.msra.mxu0 0.0
      %4619 = vmatprep.subr.mxu0 0.0
      %4620 = vmatpush1.msra.mxu0 0.0
      %4621 = vmatprep.subr.mxu0 0.0
      %4622 = vmatpush1.msra.mxu0 0.0
      %4623 = vmatprep.subr.mxu0 0.0
      %4624 = vmatpush1.msra.mxu0 0.0
      %4625 = vmatprep.mubr.f32.mxu0 0.0
      %4626 = vmatmul.mubr.f32.gmra.mrb[0].mxu0 %v4417
      %v4627 = vpop.f32.mrb[0].mxu0
      %v4628 = vadd.f32 %v4413, %v4627
      %v4629 = vpop.f32.mrb[0].mxu0
      %v4630 = vadd.f32 %v4413, %v4629
      %4631 = vdwg.mxu0
      %4632 = vmatprep.subr.mxu0 %v3723
      %4633 = vmatpush1.msra.mxu0 %v3722
      %4634 = vmatprep.subr.mxu0 %v3731
      %4635 = vmatpush1.msra.mxu0 %v3730
      %4636 = vmatprep.subr.mxu0 %v3739
      %4637 = vmatpush1.msra.mxu0 %v3738
      %4638 = vmatprep.subr.mxu0 %v3747
      %4639 = vmatpush1.msra.mxu0 %v3746
      %4640 = vmatprep.subr.mxu0 %v4407
      %4641 = vmatpush1.msra.mxu0 %v4406
      %4642 = vmatprep.subr.mxu0 %v4311
      %4643 = vmatpush1.msra.mxu0 %v4309
      %4644 = vmatprep.subr.mxu0 %v4327
      %4645 = vmatpush1.msra.mxu0 %v4325
      %4646 = vmatprep.subr.mxu0 %v4343
      %4647 = vmatpush1.msra.mxu0 %v4341
      %4648 = vmatprep.subr.mxu0 %v4359
      %4649 = vmatpush1.msra.mxu0 %v4357
      %4650 = vmatprep.subr.mxu0 0.0
      %4651 = vmatpush1.msra.mxu0 0.0
      %4652 = vmatprep.subr.mxu0 0.0
      %4653 = vmatpush1.msra.mxu0 0.0
      %4654 = vmatprep.subr.mxu0 0.0
      %4655 = vmatpush1.msra.mxu0 0.0
      %4656 = vmatprep.subr.mxu0 0.0
      %4657 = vmatpush1.msra.mxu0 0.0
      %4658 = vmatprep.subr.mxu0 0.0
      %4659 = vmatpush1.msra.mxu0 0.0
      %4660 = vmatprep.subr.mxu0 0.0
      %4661 = vmatpush1.msra.mxu0 0.0
      %4662 = vmatprep.subr.mxu0 0.0
      %4663 = vmatpush1.msra.mxu0 0.0
      %4664 = vmatprep.subr.mxu0 0.0
      %4665 = vmatpush1.msra.mxu0 0.0
      %4666 = vmatprep.subr.mxu0 0.0
      %4667 = vmatpush1.msra.mxu0 0.0
      %4668 = vmatprep.subr.mxu0 0.0
      %4669 = vmatpush1.msra.mxu0 0.0
      %4670 = vmatprep.subr.mxu0 0.0
      %4671 = vmatpush1.msra.mxu0 0.0
      %4672 = vmatprep.subr.mxu0 0.0
      %4673 = vmatpush1.msra.mxu0 0.0
      %4674 = vmatprep.subr.mxu0 0.0
      %4675 = vmatpush1.msra.mxu0 0.0
      %4676 = vmatprep.subr.mxu0 0.0
      %4677 = vmatpush1.msra.mxu0 0.0
      %4678 = vmatprep.subr.mxu0 0.0
      %4679 = vmatpush1.msra.mxu0 0.0
      %4680 = vmatprep.subr.mxu0 0.0
      %4681 = vmatpush1.msra.mxu0 0.0
      %4682 = vmatprep.subr.mxu0 0.0
      %4683 = vmatpush1.msra.mxu0 0.0
      %4684 = vmatprep.subr.mxu0 0.0
      %4685 = vmatpush1.msra.mxu0 0.0
      %4686 = vmatprep.subr.mxu0 0.0
      %4687 = vmatpush1.msra.mxu0 0.0
      %4688 = vmatprep.subr.mxu0 0.0
      %4689 = vmatpush1.msra.mxu0 0.0
      %4690 = vmatprep.subr.mxu0 0.0
      %4691 = vmatpush1.msra.mxu0 0.0
      %4692 = vmatprep.subr.mxu0 0.0
      %4693 = vmatpush1.msra.mxu0 0.0
      %4694 = vmatprep.subr.mxu0 0.0
      %4695 = vmatpush1.msra.mxu0 0.0
      %4696 = vmatprep.mubr.f32.mxu0 0.0
      %4697 = vmatmul.mubr.f32.gmra.mrb[0].mxu0 %v4417
      %v4698 = vpop.f32.mrb[0].mxu0
      %v4699 = vadd.f32 %v4413, %v4698
      %v4700 = vpop.f32.mrb[0].mxu0
      %v4701 = vadd.f32 %v4413, %v4700
      %4702 = vdwg.mxu0
      %vm4703 = vcmp.ge.f32.partialorder %v4486, 0.0
      %vm4704 = vcmp.ge.f32.partialorder %v4488, 0.0
      %vm4705 = vcmp.ge.f32.partialorder %v4557, 0.0
      %vm4706 = vcmp.ge.f32.partialorder %v4559, 0.0
      %vm4707 = vcmp.ge.f32.partialorder %v4628, 0.0
      %vm4708 = vcmp.ge.f32.partialorder %v4630, 0.0
      %vm4709 = vcmp.ge.f32.partialorder %v4699, 0.0
      %vm4710 = vcmp.ge.f32.partialorder %v4701, 0.0
      %v4711 = vmul.f32 %v4486, 0.1
      %v4712 = vmul.f32 %v4488, 0.1
      %v4713 = vmul.f32 %v4557, 0.1
      %v4714 = vmul.f32 %v4559, 0.1
      %v4715 = vmul.f32 %v4628, 0.1
      %v4716 = vmul.f32 %v4630, 0.1
      %v4717 = vmul.f32 %v4699, 0.1
      %v4718 = vmul.f32 %v4701, 0.1
      %v4719 = vsel %vm4703, %v4486, %v4711
      %v4720 = vsel %vm4704, %v4488, %v4712
      %v4721 = vsel %vm4705, %v4557, %v4713
      %v4722 = vsel %vm4706, %v4559, %v4714
      %v4723 = vsel %vm4707, %v4628, %v4715
      %v4724 = vsel %vm4708, %v4630, %v4716
      %v4725 = vsel %vm4709, %v4699, %v4717
      %v4726 = vsel %vm4710, %v4701, %v4718
      %v4735 = vcombine.low %v4719, %v4720
      %v4736 = vcombine.low %v4721, %v4722
      %v4737 = vcombine.low %v4723, %v4724
      %v4738 = vcombine.low %v4725, %v4726
      %4743 = vst [vmem:[%s379] sm:$0xff] %v4735
      %4744 = vst [vmem:[%s379 + $0x8] sm:$0xff] %v4736
      %4745 = vst [vmem:[%s379 + $0x10] sm:$0xff] %v4737
      %4746 = vst [vmem:[%s379 + $0x18] sm:$0xff] %v4738
      %p4747 = scmp.lt.s32.totalorder %s21, 1
      %s4748 = scalar_select %p4747, %s21, 1
      %s4749 = smul.addr %s4748, 8
      %s4750 = smul.addr %s4749, 4
      %s4751 = scalar_lea.vmem %s10, %s4750
      // Predicated region
      $region61: #{up2d_forward.1} parent=59 // pred_check
        %p4752 = pneg %p259
      $region62: #{up2d_forward.1} parent=59 // pred_check_branch
        %4754 = sbr.rel (%p4752) target = $region64
      $region63: #{up2d_forward.1} parent=59 // pred_region
        _
      $region64: #{up2d_forward.1} parent=59 // pred_fallthru
        _
    $region60: #{up2d_forward.1} parent=5 // pred_fallthru
      _
    %p4755 = scmp.le.s32.totalorder 2, %s16
    // Predicated region
    $region65: #{up2d_forward.1} parent=5 // pred_check
      %p4756 = pneg %p4755
    $region66: #{up2d_forward.1} parent=5 // pred_check_branch
      %4758 = sbr.rel (%p4756) target = $region68
    $region67: #{up2d_forward.1} parent=5 // pred_region
      %s4759 = ssub.s32 %s16, 2
      // Predicated region
      $region69: #{up2d_forward.1} parent=67 // pred_check
        %p4760 = pneg %p265
      $region70: #{up2d_forward.1} parent=67 // pred_check_branch
        %4762 = sbr.rel (%p4760) target = $region72
      $region71: #{up2d_forward.1} parent=67 // pred_region
        %p4763 = scmp.lt.s32.totalorder %s22, 1
        %s4764 = scalar_select %p4763, %s22, 1
        %s4765 = smul.addr %s4764, 8
        %s4766 = smul.addr %s4765, 4
        %s4767 = scalar_lea.vmem %s10, %s4766
      $region72: #{up2d_forward.1} parent=67 // pred_fallthru
        _
    $region68: #{up2d_forward.1} parent=5 // pred_fallthru
      _
  $region6: #{up2d_forward.1} parent=0 // loop_footer
    %s20 = sadd.s32 1, %s16
  $region7: #{up2d_forward.1} parent=0 // loop_footer_branch
    %15 = sbr.rel target = $region3
  $region8: #{up2d_forward.1} parent=0 // loop_exit
    _

</llo_original>
